<compile_context>
chip_gen: v5e
topology: v5e:2x2
jax: 0.10.0
libtpu: 0.0.40
codegen_flags: <defaults>
</compile_context>

<pallas_src>
import jax
import jax.numpy as jnp
from jax import lax
from jax.experimental import pallas as pl
from jax.experimental.pallas import tpu as pltpu


# ----------------------------------------------------------------------------
# Fused kernel: LSTM recurrence -> GraphModule (inner_prod=False) -> final FC
# ----------------------------------------------------------------------------
def graph_network_kernel(x_ref, wih_ref, whh_ref, b_ref, rel_ref, mask_ref,
                         w4_ref, relw_s, bias_s, pred_ref, g_scr):
    N, T, F = x_ref.shape
    U = whh_ref.shape[0]
    K = rel_ref.shape[0]

    # ---------------- LSTM (keep only last hidden state) ----------------
    # Hoisted input projection: one (N*T, F) @ (F, 4U) MXU push, bias added once.
    x_flat = x_ref[...].reshape(N * T, F)                        # free leading-dim collapse
    g_all = (jnp.dot(x_flat, wih_ref[...], preferred_element_type=jnp.float32)
             + b_ref[...])                                       # (N*T, 4U)
    g_scr[...] = g_all.reshape(N, T, 4 * U)                      # stash for per-step reads

    whh = whh_ref[...]
    h = jnp.zeros((N, U), jnp.float32)
    c = jnp.zeros((N, U), jnp.float32)
    for t in range(T):                                           # static unroll (T small)
        gates = g_scr[:, t, :] + jnp.dot(h, whh, preferred_element_type=jnp.float32)
        # PyTorch LSTM gate order: i, f, g, o
        i = jax.nn.sigmoid(gates[:, 0 * U:1 * U])
        f = jax.nn.sigmoid(gates[:, 1 * U:2 * U])
        g = jnp.tanh(gates[:, 2 * U:3 * U])
        o = jax.nn.sigmoid(gates[:, 3 * U:4 * U])
        c = f * c + i * g
        h = o * jnp.tanh(c)

    # ---------------- GraphModule + concat + final FC ----------------
    relb = bias_s[0]
    hb = bias_s[1]
    tb = bias_s[2]
    fcb = bias_s[3]

    # rel_weight = relation @ relw + relb, relation passed as (K, N, N):
    # K dense (N, N) scalar-FMAs on the VPU (no cross-lane XLU reduce).
    rel_w = relw_s[0] * rel_ref[0] + relb
    for k in range(1, K):
        rel_w = rel_w + relw_s[k] * rel_ref[k]                   # (N, N)

    # head / tail / fc_x / fc_g projections merged into one (N, 4) matmul.
    proj = jnp.dot(h, w4_ref[...], preferred_element_type=jnp.float32)   # (N, 4)
    head = proj[:, 0:1] + hb                                             # (N, 1)
    tail = proj[:, 1:2] + tb                                             # (N, 1)

    # weight = head @ 1^T + 1 @ tail^T + rel_weight ; masked softmax over dim 0
    logits = mask_ref[...] + head + jnp.transpose(tail) + rel_w          # (N, N)
    m = jnp.max(logits, axis=0, keepdims=True)
    e = jnp.exp(logits - m)
    wm = e / jnp.sum(e, axis=0, keepdims=True)                           # (N, N)

    # prediction = h @ fcw_x + (wm @ h) @ fcw_g + fcb
    #            = proj[:, 2:3] + wm @ proj[:, 3:4] + fcb   (reassociated)
    pred_ref[...] = (proj[:, 2:3]
                     + jnp.dot(wm, proj[:, 3:4], preferred_element_type=jnp.float32)
                     + fcb)                                               # (N, 1)


# ----------------------------------------------------------------------------
# Wrapper: one-time parameter re-layouts + single pallas_call
# ----------------------------------------------------------------------------
@jax.jit
def graph_network_forward(inputs_ntf, params, relation, rel_mask):
    N, T, F = inputs_ntf.shape
    U = params["whh"].shape[0]
    K = relation.shape[-1]

    # One-time re-layouts of constant parameters (tiny, fused under jit):
    rel_t = jnp.transpose(relation, (2, 0, 1)).astype(jnp.float32)       # (K, N, N)
    w4 = jnp.concatenate([params["hw"], params["tw"],
                          params["fcw_x"], params["fcw_g"]],
                         axis=1).astype(jnp.float32)                     # (U, 4)
    relw_s = params["relw"].reshape(K).astype(jnp.float32)               # (K,)
    bias_s = jnp.stack([params["relb"][0, 0], params["hb"][0, 0],
                        params["tb"][0, 0], params["fcb"][0, 0]]
                       ).astype(jnp.float32)                             # (4,)

    vmem = pl.BlockSpec(memory_space=pltpu.MemorySpace.VMEM)
    smem = pl.BlockSpec(memory_space=pltpu.MemorySpace.SMEM)

    return pl.pallas_call(
        graph_network_kernel,
        out_shape=jax.ShapeDtypeStruct((N, 1), jnp.float32),
        in_specs=[vmem, vmem, vmem, vmem, vmem, vmem, vmem, smem, smem],
        out_specs=vmem,
        scratch_shapes=[pltpu.VMEM((N, T, 4 * U), jnp.float32)],
    )(inputs_ntf, params["wih"], params["whh"], params["b"],
      rel_t, rel_mask, w4, relw_s, bias_s)


# ----------------------------------------------------------------------------
# Pure-JAX reference (for correctness check)
# ----------------------------------------------------------------------------
def reference_forward(inputs_ntf, params, relation, rel_mask):
    x_tnf = jnp.transpose(inputs_ntf, (1, 0, 2))
    U = params["whh"].shape[0]
    N = inputs_ntf.shape[0]

    def step(carry, xt):
        h, c = carry
        g = xt @ params["wih"] + h @ params["whh"] + params["b"][0]
        i = jax.nn.sigmoid(g[:, 0 * U:1 * U])
        f = jax.nn.sigmoid(g[:, 1 * U:2 * U])
        gg = jnp.tanh(g[:, 2 * U:3 * U])
        o = jax.nn.sigmoid(g[:, 3 * U:4 * U])
        c = f * c + i * gg
        h = o * jnp.tanh(c)
        return (h, c), None

    (h, _), _ = lax.scan(step, (jnp.zeros((N, U), jnp.float32),
                                jnp.zeros((N, U), jnp.float32)), x_tnf)
    x = h

    rel_w = jnp.sum(relation * params["relw"], axis=-1) + params["relb"][0, 0]
    head = x @ params["hw"] + params["hb"][0, 0]
    tail = x @ params["tw"] + params["tb"][0, 0]
    weight = head + tail.T + rel_w
    wm = jax.nn.softmax(rel_mask + weight, axis=0)
    out_g = wm @ x
    pred = x @ params["fcw_x"] + out_g @ params["fcw_g"] + params["fcb"][0, 0]
    return pred


if __name__ == "__main__":
    # Small shapes consistent with the module:
    #   N = batch_size (graph entities), T = sequence length,
    #   F = feature_dim, U = LSTM units, K = relation-encoding depth.
    N, T, F, U, K = 8, 8, 16, 32, 4

    key = jax.random.PRNGKey(0)
    ks = jax.random.split(key, 12)

    params = {
        "wih":   0.10 * jax.random.normal(ks[0], (F, 4 * U), jnp.float32),
        "whh":   0.10 * jax.random.normal(ks[1], (U, 4 * U), jnp.float32),
        "b":     0.05 * jax.random.normal(ks[2], (1, 4 * U), jnp.float32),
        "relw":  0.20 * jax.random.normal(ks[3], (1, 1, K), jnp.float32),
        "relb":  0.10 * jax.random.normal(ks[4], (1, 1), jnp.float32),
        "hw":    0.20 * jax.random.normal(ks[5], (U, 1), jnp.float32),
        "hb":    0.10 * jax.random.normal(ks[6], (1, 1), jnp.float32),
        "tw":    0.20 * jax.random.normal(ks[7], (U, 1), jnp.float32),
        "tb":    0.10 * jax.random.normal(ks[8], (1, 1), jnp.float32),
        "fcw_x": 0.20 * jax.random.normal(ks[9], (U, 1), jnp.float32),
        "fcw_g": 0.20 * jax.random.normal(ks[10], (U, 1), jnp.float32),
        "fcb":   0.10 * jax.random.normal(ks[11], (1, 1), jnp.float32),
    }

    kd = jax.random.split(jax.random.PRNGKey(1), 3)
    inputs = jax.random.normal(kd[0], (N, T, F), jnp.float32)          # (N, T, F)
    rel_encoding = jax.random.normal(kd[1], (N, N, K), jnp.float32)    # (N, N, K)
    rel_mask = jnp.where(jax.random.uniform(kd[2], (N, N)) > 0.3,
                         0.0, -1e9).astype(jnp.float32)                # (N, N)

    pred = graph_network_forward(inputs, params, rel_encoding, rel_mask)
    pred = jax.block_until_ready(pred)

    ref = reference_forward(inputs, params, rel_encoding, rel_mask)
    ref = jax.block_until_ready(ref)

    assert pred.shape == (N, 1)
    assert jnp.allclose(pred, ref, rtol=1e-4, atol=1e-4), (
        f"max abs diff {jnp.max(jnp.abs(pred - ref))}")

    print("KERNEL_OK")
</pallas_src>

<mosaic_0001>
module attributes {stable_mosaic.version = 11 : i64} {
  func.func @graph_network_kernel(%arg0: memref<8x8x16xf32, #tpu.memory_space<vmem>>, %arg1: memref<16x128xf32, #tpu.memory_space<vmem>>, %arg2: memref<32x128xf32, #tpu.memory_space<vmem>>, %arg3: memref<1x128xf32, #tpu.memory_space<vmem>>, %arg4: memref<4x8x8xf32, #tpu.memory_space<vmem>>, %arg5: memref<8x8xf32, #tpu.memory_space<vmem>>, %arg6: memref<32x4xf32, #tpu.memory_space<vmem>>, %arg7: memref<4xf32, #tpu.memory_space<smem>>, %arg8: memref<4xf32, #tpu.memory_space<smem>>, %arg9: memref<8x1xf32, #tpu.memory_space<vmem>>, %arg10: memref<8x8x128xf32, #tpu.memory_space<vmem>>) attributes {dimension_semantics = [], scalar_prefetch = 0 : i64, scratch_operands = 1 : i64, tpu.core_type = #tpu.core_type<tc>} {
    %c0 = arith.constant 0 : index
    %c0_0 = arith.constant 0 : index
    %c0_1 = arith.constant 0 : index
    %0 = vector.load %arg0[%c0, %c0_0, %c0_1] : memref<8x8x16xf32, #tpu.memory_space<vmem>>, vector<8x8x16xf32>
    %1 = vector.shape_cast %0 : vector<8x8x16xf32> to vector<64x16xf32>
    %c0_2 = arith.constant 0 : index
    %c0_3 = arith.constant 0 : index
    %2 = vector.load %arg1[%c0_2, %c0_3] : memref<16x128xf32, #tpu.memory_space<vmem>>, vector<16x128xf32>
    %cst = arith.constant dense<0.000000e+00> : vector<64x128xf32>
    %3 = tpu.matmul %1, %2, %cst {dimension_numbers = #tpu.dot_dimension_numbers<[1], [0], [0], [1], [0, 0, 1, 1], [], []>} : vector<64x16xf32>, vector<16x128xf32>, vector<64x128xf32> -> vector<64x128xf32>
    %c0_4 = arith.constant 0 : index
    %c0_5 = arith.constant 0 : index
    %4 = vector.load %arg3[%c0_4, %c0_5] : memref<1x128xf32, #tpu.memory_space<vmem>>, vector<1x128xf32>
    %5 = vector.broadcast %4 : vector<1x128xf32> to vector<64x128xf32>
    %6 = arith.addf %3, %5 : vector<64x128xf32>
    %7 = vector.shape_cast %6 : vector<64x128xf32> to vector<8x8x128xf32>
    %c0_6 = arith.constant 0 : index
    %c0_7 = arith.constant 0 : index
    %c0_8 = arith.constant 0 : index
    %8 = vector.load %arg10[%c0_6, %c0_7, %c0_8] : memref<8x8x128xf32, #tpu.memory_space<vmem>>, vector<8x8x128xf32>
    tpu.vector_store %arg10[%c0_6, %c0_7, %c0_8], %7 {strides = array<i32>} : memref<8x8x128xf32, #tpu.memory_space<vmem>>, vector<8x8x128xf32>,
    %c0_9 = arith.constant 0 : index
    %c0_10 = arith.constant 0 : index
    %9 = vector.load %arg2[%c0_9, %c0_10] : memref<32x128xf32, #tpu.memory_space<vmem>>, vector<32x128xf32>
    %cst_11 = arith.constant 0.000000e+00 : f32
    %10 = vector.broadcast %cst_11 : f32 to vector<8x32xf32>
    %cst_12 = arith.constant 0.000000e+00 : f32
    %11 = vector.broadcast %cst_12 : f32 to vector<8x32xf32>
    %c0_13 = arith.constant 0 : index
    %c0_14 = arith.constant 0 : index
    %c0_15 = arith.constant 0 : index
    %12 = vector.load %arg10[%c0_13, %c0_14, %c0_15] : memref<8x8x128xf32, #tpu.memory_space<vmem>>, vector<8x1x128xf32>
    %13 = vector.shape_cast %12 : vector<8x1x128xf32> to vector<8x128xf32>
    %cst_16 = arith.constant dense<0.000000e+00> : vector<8x128xf32>
    %14 = tpu.matmul %10, %9, %cst_16 {dimension_numbers = #tpu.dot_dimension_numbers<[1], [0], [0], [1], [0, 0, 1, 1], [], []>} : vector<8x32xf32>, vector<32x128xf32>, vector<8x128xf32> -> vector<8x128xf32>
    %15 = arith.addf %13, %14 : vector<8x128xf32>
    %16 = vector.extract_strided_slice %15 {offsets = [0, 0], sizes = [8, 32], strides = [1, 1]} : vector<8x128xf32> to vector<8x32xf32>
    %17 = arith.negf %16 : vector<8x32xf32>
    %18 = math.exp %17 : vector<8x32xf32>
    %cst_17 = arith.constant 1.000000e+00 : f32
    %19 = vector.broadcast %cst_17 : f32 to vector<8x32xf32>
    %20 = arith.addf %19, %18 : vector<8x32xf32>
    %21 = arith.divf %19, %20 : vector<8x32xf32>
    %22 = vector.extract_strided_slice %15 {offsets = [0, 32], sizes = [8, 32], strides = [1, 1]} : vector<8x128xf32> to vector<8x32xf32>
    %23 = arith.negf %22 : vector<8x32xf32>
    %24 = math.exp %23 : vector<8x32xf32>
    %cst_18 = arith.constant 1.000000e+00 : f32
    %25 = vector.broadcast %cst_18 : f32 to vector<8x32xf32>
    %26 = arith.addf %25, %24 : vector<8x32xf32>
    %27 = arith.divf %25, %26 : vector<8x32xf32>
    %28 = vector.extract_strided_slice %15 {offsets = [0, 64], sizes = [8, 32], strides = [1, 1]} : vector<8x128xf32> to vector<8x32xf32>
    %29 = math.tanh %28 : vector<8x32xf32>
    %30 = vector.extract_strided_slice %15 {offsets = [0, 96], sizes = [8, 32], strides = [1, 1]} : vector<8x128xf32> to vector<8x32xf32>
    %31 = arith.negf %30 : vector<8x32xf32>
    %32 = math.exp %31 : vector<8x32xf32>
    %cst_19 = arith.constant 1.000000e+00 : f32
    %33 = vector.broadcast %cst_19 : f32 to vector<8x32xf32>
    %34 = arith.addf %33, %32 : vector<8x32xf32>
    %35 = arith.divf %33, %34 : vector<8x32xf32>
    %36 = arith.mulf %27, %11 : vector<8x32xf32>
    %37 = arith.mulf %21, %29 : vector<8x32xf32>
    %38 = arith.addf %36, %37 : vector<8x32xf32>
    %39 = math.tanh %38 : vector<8x32xf32>
    %40 = arith.mulf %35, %39 : vector<8x32xf32>
    %c0_20 = arith.constant 0 : index
    %c1 = arith.constant 1 : index
    %c0_21 = arith.constant 0 : index
    %41 = vector.load %arg10[%c0_20, %c1, %c0_21] : memref<8x8x128xf32, #tpu.memory_space<vmem>>, vector<8x1x128xf32>
    %42 = vector.shape_cast %41 : vector<8x1x128xf32> to vector<8x128xf32>
    %cst_22 = arith.constant dense<0.000000e+00> : vector<8x128xf32>
    %43 = tpu.matmul %40, %9, %cst_22 {dimension_numbers = #tpu.dot_dimension_numbers<[1], [0], [0], [1], [0, 0, 1, 1], [], []>} : vector<8x32xf32>, vector<32x128xf32>, vector<8x128xf32> -> vector<8x128xf32>
    %44 = arith.addf %42, %43 : vector<8x128xf32>
    %45 = vector.extract_strided_slice %44 {offsets = [0, 0], sizes = [8, 32], strides = [1, 1]} : vector<8x128xf32> to vector<8x32xf32>
    %46 = arith.negf %45 : vector<8x32xf32>
    %47 = math.exp %46 : vector<8x32xf32>
    %cst_23 = arith.constant 1.000000e+00 : f32
    %48 = vector.broadcast %cst_23 : f32 to vector<8x32xf32>
    %49 = arith.addf %48, %47 : vector<8x32xf32>
    %50 = arith.divf %48, %49 : vector<8x32xf32>
    %51 = vector.extract_strided_slice %44 {offsets = [0, 32], sizes = [8, 32], strides = [1, 1]} : vector<8x128xf32> to vector<8x32xf32>
    %52 = arith.negf %51 : vector<8x32xf32>
    %53 = math.exp %52 : vector<8x32xf32>
    %cst_24 = arith.constant 1.000000e+00 : f32
    %54 = vector.broadcast %cst_24 : f32 to vector<8x32xf32>
    %55 = arith.addf %54, %53 : vector<8x32xf32>
    %56 = arith.divf %54, %55 : vector<8x32xf32>
    %57 = vector.extract_strided_slice %44 {offsets = [0, 64], sizes = [8, 32], strides = [1, 1]} : vector<8x128xf32> to vector<8x32xf32>
    %58 = math.tanh %57 : vector<8x32xf32>
    %59 = vector.extract_strided_slice %44 {offsets = [0, 96], sizes = [8, 32], strides = [1, 1]} : vector<8x128xf32> to vector<8x32xf32>
    %60 = arith.negf %59 : vector<8x32xf32>
    %61 = math.exp %60 : vector<8x32xf32>
    %cst_25 = arith.constant 1.000000e+00 : f32
    %62 = vector.broadcast %cst_25 : f32 to vector<8x32xf32>
    %63 = arith.addf %62, %61 : vector<8x32xf32>
    %64 = arith.divf %62, %63 : vector<8x32xf32>
    %65 = arith.mulf %56, %38 : vector<8x32xf32>
    %66 = arith.mulf %50, %58 : vector<8x32xf32>
    %67 = arith.addf %65, %66 : vector<8x32xf32>
    %68 = math.tanh %67 : vector<8x32xf32>
    %69 = arith.mulf %64, %68 : vector<8x32xf32>
    %c0_26 = arith.constant 0 : index
    %c2 = arith.constant 2 : index
    %c0_27 = arith.constant 0 : index
    %70 = vector.load %arg10[%c0_26, %c2, %c0_27] : memref<8x8x128xf32, #tpu.memory_space<vmem>>, vector<8x1x128xf32>
    %71 = vector.shape_cast %70 : vector<8x1x128xf32> to vector<8x128xf32>
    %cst_28 = arith.constant dense<0.000000e+00> : vector<8x128xf32>
    %72 = tpu.matmul %69, %9, %cst_28 {dimension_numbers = #tpu.dot_dimension_numbers<[1], [0], [0], [1], [0, 0, 1, 1], [], []>} : vector<8x32xf32>, vector<32x128xf32>, vector<8x128xf32> -> vector<8x128xf32>
    %73 = arith.addf %71, %72 : vector<8x128xf32>
    %74 = vector.extract_strided_slice %73 {offsets = [0, 0], sizes = [8, 32], strides = [1, 1]} : vector<8x128xf32> to vector<8x32xf32>
    %75 = arith.negf %74 : vector<8x32xf32>
    %76 = math.exp %75 : vector<8x32xf32>
    %cst_29 = arith.constant 1.000000e+00 : f32
    %77 = vector.broadcast %cst_29 : f32 to vector<8x32xf32>
    %78 = arith.addf %77, %76 : vector<8x32xf32>
    %79 = arith.divf %77, %78 : vector<8x32xf32>
    %80 = vector.extract_strided_slice %73 {offsets = [0, 32], sizes = [8, 32], strides = [1, 1]} : vector<8x128xf32> to vector<8x32xf32>
    %81 = arith.negf %80 : vector<8x32xf32>
    %82 = math.exp %81 : vector<8x32xf32>
    %cst_30 = arith.constant 1.000000e+00 : f32
    %83 = vector.broadcast %cst_30 : f32 to vector<8x32xf32>
    %84 = arith.addf %83, %82 : vector<8x32xf32>
    %85 = arith.divf %83, %84 : vector<8x32xf32>
    %86 = vector.extract_strided_slice %73 {offsets = [0, 64], sizes = [8, 32], strides = [1, 1]} : vector<8x128xf32> to vector<8x32xf32>
    %87 = math.tanh %86 : vector<8x32xf32>
    %88 = vector.extract_strided_slice %73 {offsets = [0, 96], sizes = [8, 32], strides = [1, 1]} : vector<8x128xf32> to vector<8x32xf32>
    %89 = arith.negf %88 : vector<8x32xf32>
    %90 = math.exp %89 : vector<8x32xf32>
    %cst_31 = arith.constant 1.000000e+00 : f32
    %91 = vector.broadcast %cst_31 : f32 to vector<8x32xf32>
    %92 = arith.addf %91, %90 : vector<8x32xf32>
    %93 = arith.divf %91, %92 : vector<8x32xf32>
    %94 = arith.mulf %85, %67 : vector<8x32xf32>
    %95 = arith.mulf %79, %87 : vector<8x32xf32>
    %96 = arith.addf %94, %95 : vector<8x32xf32>
    %97 = math.tanh %96 : vector<8x32xf32>
    %98 = arith.mulf %93, %97 : vector<8x32xf32>
    %c0_32 = arith.constant 0 : index
    %c3 = arith.constant 3 : index
    %c0_33 = arith.constant 0 : index
    %99 = vector.load %arg10[%c0_32, %c3, %c0_33] : memref<8x8x128xf32, #tpu.memory_space<vmem>>, vector<8x1x128xf32>
    %100 = vector.shape_cast %99 : vector<8x1x128xf32> to vector<8x128xf32>
    %cst_34 = arith.constant dense<0.000000e+00> : vector<8x128xf32>
    %101 = tpu.matmul %98, %9, %cst_34 {dimension_numbers = #tpu.dot_dimension_numbers<[1], [0], [0], [1], [0, 0, 1, 1], [], []>} : vector<8x32xf32>, vector<32x128xf32>, vector<8x128xf32> -> vector<8x128xf32>
    %102 = arith.addf %100, %101 : vector<8x128xf32>
    %103 = vector.extract_strided_slice %102 {offsets = [0, 0], sizes = [8, 32], strides = [1, 1]} : vector<8x128xf32> to vector<8x32xf32>
    %104 = arith.negf %103 : vector<8x32xf32>
    %105 = math.exp %104 : vector<8x32xf32>
    %cst_35 = arith.constant 1.000000e+00 : f32
    %106 = vector.broadcast %cst_35 : f32 to vector<8x32xf32>
    %107 = arith.addf %106, %105 : vector<8x32xf32>
    %108 = arith.divf %106, %107 : vector<8x32xf32>
    %109 = vector.extract_strided_slice %102 {offsets = [0, 32], sizes = [8, 32], strides = [1, 1]} : vector<8x128xf32> to vector<8x32xf32>
    %110 = arith.negf %109 : vector<8x32xf32>
    %111 = math.exp %110 : vector<8x32xf32>
    %cst_36 = arith.constant 1.000000e+00 : f32
    %112 = vector.broadcast %cst_36 : f32 to vector<8x32xf32>
    %113 = arith.addf %112, %111 : vector<8x32xf32>
    %114 = arith.divf %112, %113 : vector<8x32xf32>
    %115 = vector.extract_strided_slice %102 {offsets = [0, 64], sizes = [8, 32], strides = [1, 1]} : vector<8x128xf32> to vector<8x32xf32>
    %116 = math.tanh %115 : vector<8x32xf32>
    %117 = vector.extract_strided_slice %102 {offsets = [0, 96], sizes = [8, 32], strides = [1, 1]} : vector<8x128xf32> to vector<8x32xf32>
    %118 = arith.negf %117 : vector<8x32xf32>
    %119 = math.exp %118 : vector<8x32xf32>
    %cst_37 = arith.constant 1.000000e+00 : f32
    %120 = vector.broadcast %cst_37 : f32 to vector<8x32xf32>
    %121 = arith.addf %120, %119 : vector<8x32xf32>
    %122 = arith.divf %120, %121 : vector<8x32xf32>
    %123 = arith.mulf %114, %96 : vector<8x32xf32>
    %124 = arith.mulf %108, %116 : vector<8x32xf32>
    %125 = arith.addf %123, %124 : vector<8x32xf32>
    %126 = math.tanh %125 : vector<8x32xf32>
    %127 = arith.mulf %122, %126 : vector<8x32xf32>
    %c0_38 = arith.constant 0 : index
    %c4 = arith.constant 4 : index
    %c0_39 = arith.constant 0 : index
    %128 = vector.load %arg10[%c0_38, %c4, %c0_39] : memref<8x8x128xf32, #tpu.memory_space<vmem>>, vector<8x1x128xf32>
    %129 = vector.shape_cast %128 : vector<8x1x128xf32> to vector<8x128xf32>
    %cst_40 = arith.constant dense<0.000000e+00> : vector<8x128xf32>
    %130 = tpu.matmul %127, %9, %cst_40 {dimension_numbers = #tpu.dot_dimension_numbers<[1], [0], [0], [1], [0, 0, 1, 1], [], []>} : vector<8x32xf32>, vector<32x128xf32>, vector<8x128xf32> -> vector<8x128xf32>
    %131 = arith.addf %129, %130 : vector<8x128xf32>
    %132 = vector.extract_strided_slice %131 {offsets = [0, 0], sizes = [8, 32], strides = [1, 1]} : vector<8x128xf32> to vector<8x32xf32>
    %133 = arith.negf %132 : vector<8x32xf32>
    %134 = math.exp %133 : vector<8x32xf32>
    %cst_41 = arith.constant 1.000000e+00 : f32
    %135 = vector.broadcast %cst_41 : f32 to vector<8x32xf32>
    %136 = arith.addf %135, %134 : vector<8x32xf32>
    %137 = arith.divf %135, %136 : vector<8x32xf32>
    %138 = vector.extract_strided_slice %131 {offsets = [0, 32], sizes = [8, 32], strides = [1, 1]} : vector<8x128xf32> to vector<8x32xf32>
    %139 = arith.negf %138 : vector<8x32xf32>
    %140 = math.exp %139 : vector<8x32xf32>
    %cst_42 = arith.constant 1.000000e+00 : f32
    %141 = vector.broadcast %cst_42 : f32 to vector<8x32xf32>
    %142 = arith.addf %141, %140 : vector<8x32xf32>
    %143 = arith.divf %141, %142 : vector<8x32xf32>
    %144 = vector.extract_strided_slice %131 {offsets = [0, 64], sizes = [8, 32], strides = [1, 1]} : vector<8x128xf32> to vector<8x32xf32>
    %145 = math.tanh %144 : vector<8x32xf32>
    %146 = vector.extract_strided_slice %131 {offsets = [0, 96], sizes = [8, 32], strides = [1, 1]} : vector<8x128xf32> to vector<8x32xf32>
    %147 = arith.negf %146 : vector<8x32xf32>
    %148 = math.exp %147 : vector<8x32xf32>
    %cst_43 = arith.constant 1.000000e+00 : f32
    %149 = vector.broadcast %cst_43 : f32 to vector<8x32xf32>
    %150 = arith.addf %149, %148 : vector<8x32xf32>
    %151 = arith.divf %149, %150 : vector<8x32xf32>
    %152 = arith.mulf %143, %125 : vector<8x32xf32>
    %153 = arith.mulf %137, %145 : vector<8x32xf32>
    %154 = arith.addf %152, %153 : vector<8x32xf32>
    %155 = math.tanh %154 : vector<8x32xf32>
    %156 = arith.mulf %151, %155 : vector<8x32xf32>
    %c0_44 = arith.constant 0 : index
    %c5 = arith.constant 5 : index
    %c0_45 = arith.constant 0 : index
    %157 = vector.load %arg10[%c0_44, %c5, %c0_45] : memref<8x8x128xf32, #tpu.memory_space<vmem>>, vector<8x1x128xf32>
    %158 = vector.shape_cast %157 : vector<8x1x128xf32> to vector<8x128xf32>
    %cst_46 = arith.constant dense<0.000000e+00> : vector<8x128xf32>
    %159 = tpu.matmul %156, %9, %cst_46 {dimension_numbers = #tpu.dot_dimension_numbers<[1], [0], [0], [1], [0, 0, 1, 1], [], []>} : vector<8x32xf32>, vector<32x128xf32>, vector<8x128xf32> -> vector<8x128xf32>
    %160 = arith.addf %158, %159 : vector<8x128xf32>
    %161 = vector.extract_strided_slice %160 {offsets = [0, 0], sizes = [8, 32], strides = [1, 1]} : vector<8x128xf32> to vector<8x32xf32>
    %162 = arith.negf %161 : vector<8x32xf32>
    %163 = math.exp %162 : vector<8x32xf32>
    %cst_47 = arith.constant 1.000000e+00 : f32
    %164 = vector.broadcast %cst_47 : f32 to vector<8x32xf32>
    %165 = arith.addf %164, %163 : vector<8x32xf32>
    %166 = arith.divf %164, %165 : vector<8x32xf32>
    %167 = vector.extract_strided_slice %160 {offsets = [0, 32], sizes = [8, 32], strides = [1, 1]} : vector<8x128xf32> to vector<8x32xf32>
    %168 = arith.negf %167 : vector<8x32xf32>
    %169 = math.exp %168 : vector<8x32xf32>
    %cst_48 = arith.constant 1.000000e+00 : f32
    %170 = vector.broadcast %cst_48 : f32 to vector<8x32xf32>
    %171 = arith.addf %170, %169 : vector<8x32xf32>
    %172 = arith.divf %170, %171 : vector<8x32xf32>
    %173 = vector.extract_strided_slice %160 {offsets = [0, 64], sizes = [8, 32], strides = [1, 1]} : vector<8x128xf32> to vector<8x32xf32>
    %174 = math.tanh %173 : vector<8x32xf32>
    %175 = vector.extract_strided_slice %160 {offsets = [0, 96], sizes = [8, 32], strides = [1, 1]} : vector<8x128xf32> to vector<8x32xf32>
    %176 = arith.negf %175 : vector<8x32xf32>
    %177 = math.exp %176 : vector<8x32xf32>
    %cst_49 = arith.constant 1.000000e+00 : f32
    %178 = vector.broadcast %cst_49 : f32 to vector<8x32xf32>
    %179 = arith.addf %178, %177 : vector<8x32xf32>
    %180 = arith.divf %178, %179 : vector<8x32xf32>
    %181 = arith.mulf %172, %154 : vector<8x32xf32>
    %182 = arith.mulf %166, %174 : vector<8x32xf32>
    %183 = arith.addf %181, %182 : vector<8x32xf32>
    %184 = math.tanh %183 : vector<8x32xf32>
    %185 = arith.mulf %180, %184 : vector<8x32xf32>
    %c0_50 = arith.constant 0 : index
    %c6 = arith.constant 6 : index
    %c0_51 = arith.constant 0 : index
    %186 = vector.load %arg10[%c0_50, %c6, %c0_51] : memref<8x8x128xf32, #tpu.memory_space<vmem>>, vector<8x1x128xf32>
    %187 = vector.shape_cast %186 : vector<8x1x128xf32> to vector<8x128xf32>
    %cst_52 = arith.constant dense<0.000000e+00> : vector<8x128xf32>
    %188 = tpu.matmul %185, %9, %cst_52 {dimension_numbers = #tpu.dot_dimension_numbers<[1], [0], [0], [1], [0, 0, 1, 1], [], []>} : vector<8x32xf32>, vector<32x128xf32>, vector<8x128xf32> -> vector<8x128xf32>
    %189 = arith.addf %187, %188 : vector<8x128xf32>
    %190 = vector.extract_strided_slice %189 {offsets = [0, 0], sizes = [8, 32], strides = [1, 1]} : vector<8x128xf32> to vector<8x32xf32>
    %191 = arith.negf %190 : vector<8x32xf32>
    %192 = math.exp %191 : vector<8x32xf32>
    %cst_53 = arith.constant 1.000000e+00 : f32
    %193 = vector.broadcast %cst_53 : f32 to vector<8x32xf32>
    %194 = arith.addf %193, %192 : vector<8x32xf32>
    %195 = arith.divf %193, %194 : vector<8x32xf32>
    %196 = vector.extract_strided_slice %189 {offsets = [0, 32], sizes = [8, 32], strides = [1, 1]} : vector<8x128xf32> to vector<8x32xf32>
    %197 = arith.negf %196 : vector<8x32xf32>
    %198 = math.exp %197 : vector<8x32xf32>
    %cst_54 = arith.constant 1.000000e+00 : f32
    %199 = vector.broadcast %cst_54 : f32 to vector<8x32xf32>
    %200 = arith.addf %199, %198 : vector<8x32xf32>
    %201 = arith.divf %199, %200 : vector<8x32xf32>
    %202 = vector.extract_strided_slice %189 {offsets = [0, 64], sizes = [8, 32], strides = [1, 1]} : vector<8x128xf32> to vector<8x32xf32>
    %203 = math.tanh %202 : vector<8x32xf32>
    %204 = vector.extract_strided_slice %189 {offsets = [0, 96], sizes = [8, 32], strides = [1, 1]} : vector<8x128xf32> to vector<8x32xf32>
    %205 = arith.negf %204 : vector<8x32xf32>
    %206 = math.exp %205 : vector<8x32xf32>
    %cst_55 = arith.constant 1.000000e+00 : f32
    %207 = vector.broadcast %cst_55 : f32 to vector<8x32xf32>
    %208 = arith.addf %207, %206 : vector<8x32xf32>
    %209 = arith.divf %207, %208 : vector<8x32xf32>
    %210 = arith.mulf %201, %183 : vector<8x32xf32>
    %211 = arith.mulf %195, %203 : vector<8x32xf32>
    %212 = arith.addf %210, %211 : vector<8x32xf32>
    %213 = math.tanh %212 : vector<8x32xf32>
    %214 = arith.mulf %209, %213 : vector<8x32xf32>
    %c0_56 = arith.constant 0 : index
    %c7 = arith.constant 7 : index
    %c0_57 = arith.constant 0 : index
    %215 = vector.load %arg10[%c0_56, %c7, %c0_57] : memref<8x8x128xf32, #tpu.memory_space<vmem>>, vector<8x1x128xf32>
    %216 = vector.shape_cast %215 : vector<8x1x128xf32> to vector<8x128xf32>
    %cst_58 = arith.constant dense<0.000000e+00> : vector<8x128xf32>
    %217 = tpu.matmul %214, %9, %cst_58 {dimension_numbers = #tpu.dot_dimension_numbers<[1], [0], [0], [1], [0, 0, 1, 1], [], []>} : vector<8x32xf32>, vector<32x128xf32>, vector<8x128xf32> -> vector<8x128xf32>
    %218 = arith.addf %216, %217 : vector<8x128xf32>
    %219 = vector.extract_strided_slice %218 {offsets = [0, 0], sizes = [8, 32], strides = [1, 1]} : vector<8x128xf32> to vector<8x32xf32>
    %220 = arith.negf %219 : vector<8x32xf32>
    %221 = math.exp %220 : vector<8x32xf32>
    %cst_59 = arith.constant 1.000000e+00 : f32
    %222 = vector.broadcast %cst_59 : f32 to vector<8x32xf32>
    %223 = arith.addf %222, %221 : vector<8x32xf32>
    %224 = arith.divf %222, %223 : vector<8x32xf32>
    %225 = vector.extract_strided_slice %218 {offsets = [0, 32], sizes = [8, 32], strides = [1, 1]} : vector<8x128xf32> to vector<8x32xf32>
    %226 = arith.negf %225 : vector<8x32xf32>
    %227 = math.exp %226 : vector<8x32xf32>
    %cst_60 = arith.constant 1.000000e+00 : f32
    %228 = vector.broadcast %cst_60 : f32 to vector<8x32xf32>
    %229 = arith.addf %228, %227 : vector<8x32xf32>
    %230 = arith.divf %228, %229 : vector<8x32xf32>
    %231 = vector.extract_strided_slice %218 {offsets = [0, 64], sizes = [8, 32], strides = [1, 1]} : vector<8x128xf32> to vector<8x32xf32>
    %232 = math.tanh %231 : vector<8x32xf32>
    %233 = vector.extract_strided_slice %218 {offsets = [0, 96], sizes = [8, 32], strides = [1, 1]} : vector<8x128xf32> to vector<8x32xf32>
    %234 = arith.negf %233 : vector<8x32xf32>
    %235 = math.exp %234 : vector<8x32xf32>
    %cst_61 = arith.constant 1.000000e+00 : f32
    %236 = vector.broadcast %cst_61 : f32 to vector<8x32xf32>
    %237 = arith.addf %236, %235 : vector<8x32xf32>
    %238 = arith.divf %236, %237 : vector<8x32xf32>
    %239 = arith.mulf %230, %212 : vector<8x32xf32>
    %240 = arith.mulf %224, %232 : vector<8x32xf32>
    %241 = arith.addf %239, %240 : vector<8x32xf32>
    %242 = math.tanh %241 : vector<8x32xf32>
    %243 = arith.mulf %238, %242 : vector<8x32xf32>
    %c0_62 = arith.constant 0 : index
    %244 = memref.load %arg8[%c0_62] : memref<4xf32, #tpu.memory_space<smem>>
    %c1_63 = arith.constant 1 : index
    %245 = memref.load %arg8[%c1_63] : memref<4xf32, #tpu.memory_space<smem>>
    %c2_64 = arith.constant 2 : index
    %246 = memref.load %arg8[%c2_64] : memref<4xf32, #tpu.memory_space<smem>>
    %c3_65 = arith.constant 3 : index
    %247 = memref.load %arg8[%c3_65] : memref<4xf32, #tpu.memory_space<smem>>
    %c0_66 = arith.constant 0 : index
    %248 = memref.load %arg7[%c0_66] : memref<4xf32, #tpu.memory_space<smem>>
    %c0_67 = arith.constant 0 : index
    %c0_68 = arith.constant 0 : index
    %c0_69 = arith.constant 0 : index
    %249 = vector.load %arg4[%c0_67, %c0_68, %c0_69] : memref<4x8x8xf32, #tpu.memory_space<vmem>>, vector<1x8x8xf32>
    %250 = vector.shape_cast %249 : vector<1x8x8xf32> to vector<8x8xf32>
    %251 = vector.broadcast %248 : f32 to vector<8x8xf32>
    %252 = arith.mulf %251, %250 : vector<8x8xf32>
    %253 = vector.broadcast %244 : f32 to vector<8x8xf32>
    %254 = arith.addf %252, %253 : vector<8x8xf32>
    %c1_70 = arith.constant 1 : index
    %255 = memref.load %arg7[%c1_70] : memref<4xf32, #tpu.memory_space<smem>>
    %c1_71 = arith.constant 1 : index
    %c0_72 = arith.constant 0 : index
    %c0_73 = arith.constant 0 : index
    %256 = vector.load %arg4[%c1_71, %c0_72, %c0_73] : memref<4x8x8xf32, #tpu.memory_space<vmem>>, vector<1x8x8xf32>
    %257 = vector.shape_cast %256 : vector<1x8x8xf32> to vector<8x8xf32>
    %258 = vector.broadcast %255 : f32 to vector<8x8xf32>
    %259 = arith.mulf %258, %257 : vector<8x8xf32>
    %260 = arith.addf %254, %259 : vector<8x8xf32>
    %c2_74 = arith.constant 2 : index
    %261 = memref.load %arg7[%c2_74] : memref<4xf32, #tpu.memory_space<smem>>
    %c2_75 = arith.constant 2 : index
    %c0_76 = arith.constant 0 : index
    %c0_77 = arith.constant 0 : index
    %262 = vector.load %arg4[%c2_75, %c0_76, %c0_77] : memref<4x8x8xf32, #tpu.memory_space<vmem>>, vector<1x8x8xf32>
    %263 = vector.shape_cast %262 : vector<1x8x8xf32> to vector<8x8xf32>
    %264 = vector.broadcast %261 : f32 to vector<8x8xf32>
    %265 = arith.mulf %264, %263 : vector<8x8xf32>
    %266 = arith.addf %260, %265 : vector<8x8xf32>
    %c3_78 = arith.constant 3 : index
    %267 = memref.load %arg7[%c3_78] : memref<4xf32, #tpu.memory_space<smem>>
    %c3_79 = arith.constant 3 : index
    %c0_80 = arith.constant 0 : index
    %c0_81 = arith.constant 0 : index
    %268 = vector.load %arg4[%c3_79, %c0_80, %c0_81] : memref<4x8x8xf32, #tpu.memory_space<vmem>>, vector<1x8x8xf32>
    %269 = vector.shape_cast %268 : vector<1x8x8xf32> to vector<8x8xf32>
    %270 = vector.broadcast %267 : f32 to vector<8x8xf32>
    %271 = arith.mulf %270, %269 : vector<8x8xf32>
    %272 = arith.addf %266, %271 : vector<8x8xf32>
    %c0_82 = arith.constant 0 : index
    %c0_83 = arith.constant 0 : index
    %273 = vector.load %arg6[%c0_82, %c0_83] : memref<32x4xf32, #tpu.memory_space<vmem>>, vector<32x4xf32>
    %cst_84 = arith.constant dense<0.000000e+00> : vector<8x4xf32>
    %274 = tpu.matmul %243, %273, %cst_84 {dimension_numbers = #tpu.dot_dimension_numbers<[1], [0], [0], [1], [0, 0, 1, 1], [], []>} : vector<8x32xf32>, vector<32x4xf32>, vector<8x4xf32> -> vector<8x4xf32>
    %275 = vector.extract_strided_slice %274 {offsets = [0, 0], sizes = [8, 1], strides = [1, 1]} : vector<8x4xf32> to vector<8x1xf32>
    %276 = vector.broadcast %245 : f32 to vector<8x1xf32>
    %277 = arith.addf %275, %276 : vector<8x1xf32>
    %278 = vector.extract_strided_slice %274 {offsets = [0, 1], sizes = [8, 1], strides = [1, 1]} : vector<8x4xf32> to vector<8x1xf32>
    %279 = vector.broadcast %246 : f32 to vector<8x1xf32>
    %280 = arith.addf %278, %279 : vector<8x1xf32>
    %c0_85 = arith.constant 0 : index
    %c0_86 = arith.constant 0 : index
    %281 = vector.load %arg5[%c0_85, %c0_86] : memref<8x8xf32, #tpu.memory_space<vmem>>, vector<8x8xf32>
    %282 = vector.broadcast %277 : vector<8x1xf32> to vector<8x8xf32>
    %283 = arith.addf %281, %282 : vector<8x8xf32>
    %284 = tpu.transpose %280, [1, 0] : vector<8x1xf32> -> vector<1x8xf32>
    %285 = vector.broadcast %284 : vector<1x8xf32> to vector<8x8xf32>
    %286 = arith.addf %283, %285 : vector<8x8xf32>
    %287 = arith.addf %286, %272 : vector<8x8xf32>
    %cst_87 = arith.constant dense<0xFF800000> : vector<8xf32>
    %288 = vector.multi_reduction <maximumf>, %287, %cst_87 [0] : vector<8x8xf32> to vector<8xf32>
    %289 = vector.shape_cast %288 : vector<8xf32> to vector<1x8xf32>
    %290 = vector.broadcast %289 : vector<1x8xf32> to vector<8x8xf32>
    %291 = arith.subf %287, %290 : vector<8x8xf32>
    %292 = math.exp %291 : vector<8x8xf32>
    %cst_88 = arith.constant dense<0.000000e+00> : vector<8xf32>
    %293 = vector.multi_reduction <add>, %292, %cst_88 [0] : vector<8x8xf32> to vector<8xf32>
    %294 = vector.shape_cast %293 : vector<8xf32> to vector<1x8xf32>
    %295 = vector.broadcast %294 : vector<1x8xf32> to vector<8x8xf32>
    %296 = arith.divf %292, %295 : vector<8x8xf32>
    %297 = vector.extract_strided_slice %274 {offsets = [0, 2], sizes = [8, 1], strides = [1, 1]} : vector<8x4xf32> to vector<8x1xf32>
    %298 = vector.extract_strided_slice %274 {offsets = [0, 3], sizes = [8, 1], strides = [1, 1]} : vector<8x4xf32> to vector<8x1xf32>
    %cst_89 = arith.constant dense<0.000000e+00> : vector<8x1xf32>
    %299 = tpu.matmul %296, %298, %cst_89 {dimension_numbers = #tpu.dot_dimension_numbers<[1], [0], [0], [1], [0, 0, 1, 1], [], []>} : vector<8x8xf32>, vector<8x1xf32>, vector<8x1xf32> -> vector<8x1xf32>
    %300 = arith.addf %297, %299 : vector<8x1xf32>
    %301 = vector.broadcast %247 : f32 to vector<8x1xf32>
    %302 = arith.addf %300, %301 : vector<8x1xf32>
    %c0_90 = arith.constant 0 : index
    %c0_91 = arith.constant 0 : index
    %303 = vector.load %arg9[%c0_90, %c0_91] : memref<8x1xf32, #tpu.memory_space<vmem>>, vector<8x1xf32>
    tpu.vector_store %arg9[%c0_90, %c0_91], %302 {strides = array<i32>} : memref<8x1xf32, #tpu.memory_space<vmem>>, vector<8x1xf32>,
    return
  }
}

</mosaic_0001>

<llo_original>
// kernel: graph_network_forward.1
$region0: #{graph_network_forward.1}
  #allocation0 [shape = 'u32[]', space=smem, size = 0x4, offset = 0x4, fixed_abs, tag = 'smem constant byte address 0x4 - core index']
  #allocation1 [shape = 'u32[72,128]{1,0:T(1,128)}', space=vmem, size = 0x9000, scoped, tag = 'internal scratch']
  #allocation2 [shape = 'f32[8,8,128]{2,1,0:T(8,128)}', space=vmem, size = 0x8000, scoped, tag = 'scratch operand']
  %s0 = inlined_call_operand.vmem [shape: f32[8,8,16], index: 0, kind: input, shape index: {}]
  %s1 = inlined_call_operand.vmem [shape: f32[16,128], index: 1, kind: input, shape index: {}]
  %s2 = inlined_call_operand.hbm [shape: f32[32,128], index: 2, kind: input, shape index: {}]
  %s3 = inlined_call_operand.vmem [shape: f32[1,128], index: 3, kind: input, shape index: {}]
  %s4 = inlined_call_operand.vmem [shape: f32[4,8,8], index: 4, kind: input, shape index: {}]
  %s5 = inlined_call_operand.vmem [shape: f32[8,8], index: 5, kind: input, shape index: {}]
  %s6 = inlined_call_operand.vmem [shape: f32[32,4], index: 6, kind: input, shape index: {}]
  %s7 = inlined_call_operand.vmem [shape: f32[4], index: 7, kind: input, shape index: {}]
  %s8 = inlined_call_operand.vmem [shape: f32[4], index: 8, kind: input, shape index: {}]
  %s9 = inlined_call_operand.vmem [shape: f32[8,1], index: 9, kind: output, shape index: {}]
  %s10 = sld [smem:[#allocation0]]
  $region58: #{graph_network_forward.1} parent=0
    _
  %s12 = ssub.s32 1, %s10
  %s13 = scalar_select 0, %s12, %s10
  $region1: #{graph_network_forward.1} parent=0
    #allocation3 [shape = 'u8[16384]{0}', space=vmem, size = 0x4000, scoped, tag = 'input window, operand 2, single buffered']
    #allocation4 [shape = 's32[1]{0}', space=sflag, size = 0x4, scoped, tag = 'scoped memory for graph_network_forward.1']
    #allocation5 [shape = 's32[1]{0}', space=sflag, size = 0x4, scoped, tag = 'scoped memory for graph_network_forward.1']
    #allocation6 [shape = 'u8[512]{0}', space=smem, size = 0x200, scoped, tag = 'input window, operand 7, single buffered']
    #allocation7 [shape = 'u8[512]{0}', space=smem, size = 0x200, scoped, tag = 'input window, operand 8, single buffered']
    #allocation8 [shape = 's32[1]{0}', space=sflag, size = 0x4, scoped, tag = 'scoped memory for graph_network_forward.1']
    %14 = vsyncpa [#allocation4], 0
    %15 = vsyncpa [#allocation5], 0
    %16 = vsyncpa [#allocation8], 0
    // Predicated region
    $region2: #{graph_network_forward.1} parent=1 // pred_check
      _
    $region3: #{graph_network_forward.1} parent=1 // pred_check_branch
      %18 = sbr.rel (0) target = $region5
    $region4: #{graph_network_forward.1} parent=1 // pred_region
      _
    $region5: #{graph_network_forward.1} parent=1 // pred_fallthru
      _
    // Predicated region
    $region6: #{graph_network_forward.1} parent=1 // pred_check
      _
    $region7: #{graph_network_forward.1} parent=1 // pred_check_branch
      %20 = sbr.rel (0) target = $region9
    $region8: #{graph_network_forward.1} parent=1 // pred_region
      _
    $region9: #{graph_network_forward.1} parent=1 // pred_fallthru
      _
    // Predicated region
    $region10: #{graph_network_forward.1} parent=1 // pred_check
      _
    $region11: #{graph_network_forward.1} parent=1 // pred_check_branch
      %22 = sbr.rel (0) target = $region13
    $region12: #{graph_network_forward.1} parent=1 // pred_region
      %24 = vsyncadd [#allocation4], 0
      %s25 = sshll.u32 %s2, 4
      %s26 = int_to_ptr.hbm [resolvable:$true] %s25
      %s27 = sshll.u32 [#allocation3], 4
      %s28 = int_to_ptr.vmem [resolvable:$true] %s27
      %33 = dma.hbm_to_vmem [thread:$0]  %s26, 512, %s28, [#allocation4], 128, 128, 8
    $region13: #{graph_network_forward.1} parent=1 // pred_fallthru
      _
    // Predicated region
    $region14: #{graph_network_forward.1} parent=1 // pred_check
      _
    $region15: #{graph_network_forward.1} parent=1 // pred_check_branch
      %35 = sbr.rel (0) target = $region17
    $region16: #{graph_network_forward.1} parent=1 // pred_region
      _
    $region17: #{graph_network_forward.1} parent=1 // pred_fallthru
      _
    // Predicated region
    $region18: #{graph_network_forward.1} parent=1 // pred_check
      _
    $region19: #{graph_network_forward.1} parent=1 // pred_check_branch
      %37 = sbr.rel (0) target = $region21
    $region20: #{graph_network_forward.1} parent=1 // pred_region
      _
    $region21: #{graph_network_forward.1} parent=1 // pred_fallthru
      _
    // Predicated region
    $region22: #{graph_network_forward.1} parent=1 // pred_check
      _
    $region23: #{graph_network_forward.1} parent=1 // pred_check_branch
      %39 = sbr.rel (0) target = $region25
    $region24: #{graph_network_forward.1} parent=1 // pred_region
      _
    $region25: #{graph_network_forward.1} parent=1 // pred_fallthru
      _
    // Predicated region
    $region26: #{graph_network_forward.1} parent=1 // pred_check
      _
    $region27: #{graph_network_forward.1} parent=1 // pred_check_branch
      %41 = sbr.rel (0) target = $region29
    $region28: #{graph_network_forward.1} parent=1 // pred_region
      _
    $region29: #{graph_network_forward.1} parent=1 // pred_fallthru
      _
    // Predicated region
    $region30: #{graph_network_forward.1} parent=1 // pred_check
      _
    $region31: #{graph_network_forward.1} parent=1 // pred_check_branch
      %43 = sbr.rel (0) target = $region33
    $region32: #{graph_network_forward.1} parent=1 // pred_region
      %45 = vsyncadd [#allocation5], 0
      %s47 = sshll.u32 %s7, 4
      %s48 = int_to_ptr.vmem [resolvable:$true] %s47
      %50 = dma.vmem_to_smem %s48, 16, [#allocation6], [#allocation5]
    $region33: #{graph_network_forward.1} parent=1 // pred_fallthru
      _
    // Predicated region
    $region34: #{graph_network_forward.1} parent=1 // pred_check
      _
    $region35: #{graph_network_forward.1} parent=1 // pred_check_branch
      %52 = sbr.rel (0) target = $region37
    $region36: #{graph_network_forward.1} parent=1 // pred_region
      %54 = vsyncadd [#allocation8], 0
      %s56 = sshll.u32 %s8, 4
      %s57 = int_to_ptr.vmem [resolvable:$true] %s56
      %59 = dma.vmem_to_smem %s57, 16, [#allocation7], [#allocation8]
    $region37: #{graph_network_forward.1} parent=1 // pred_fallthru
      _
    // Predicated region
    $region38: #{graph_network_forward.1} parent=1 // pred_check
      _
    $region39: #{graph_network_forward.1} parent=1 // pred_check_branch
      %61 = sbr.rel (0) target = $region41
    $region40: #{graph_network_forward.1} parent=1 // pred_region
      %63 = dma.done [#allocation4], 512
    $region41: #{graph_network_forward.1} parent=1 // pred_fallthru
      _
    // Predicated region
    $region42: #{graph_network_forward.1} parent=1 // pred_check
      _
    $region43: #{graph_network_forward.1} parent=1 // pred_check_branch
      %65 = sbr.rel (0) target = $region45
    $region44: #{graph_network_forward.1} parent=1 // pred_region
      %67 = dma.done [#allocation5], 16
    $region45: #{graph_network_forward.1} parent=1 // pred_fallthru
      _
    // Predicated region
    $region46: #{graph_network_forward.1} parent=1 // pred_check
      _
    $region47: #{graph_network_forward.1} parent=1 // pred_check_branch
      %69 = sbr.rel (0) target = $region49
    $region48: #{graph_network_forward.1} parent=1 // pred_region
      %71 = dma.done [#allocation8], 16
    $region49: #{graph_network_forward.1} parent=1 // pred_fallthru
      _
    %72 = sfence
    %v73 = vld [vmem:[%s0] sm:$0xff]
    %v74 = vld [vmem:[%s0 + $0x8] sm:$0xff]
    %v75 = vld [vmem:[%s0 + $0x10] sm:$0xff]
    %v76 = vld [vmem:[%s0 + $0x18] sm:$0xff]
    %v77 = vld [vmem:[%s0 + $0x20] sm:$0xff]
    %v78 = vld [vmem:[%s0 + $0x28] sm:$0xff]
    %v79 = vld [vmem:[%s0 + $0x30] sm:$0xff]
    %v80 = vld [vmem:[%s0 + $0x38] sm:$0xff]
    %v81 = vld [vmem:[%s1] sm:$0xff]
    %v82 = vld [vmem:[%s1 + $0x8] sm:$0xff]
    %v83 = vld [vmem:[%s3] sm:$0x1]
    %v85 = vperm.slane %v83, 0
    %vm87 = vcmask 130048
    %v89 = vsel %vm87, %v73, 0
    %v92 = vsel %vm87, %v74, 0
    %v95 = vsel %vm87, %v75, 0
    %v98 = vsel %vm87, %v76, 0
    %v101 = vsel %vm87, %v77, 0
    %v104 = vsel %vm87, %v78, 0
    %v107 = vsel %vm87, %v79, 0
    %v110 = vsel %vm87, %v80, 0
    %112 = vmatpush.msra.mxu0 0.0
    %113 = vmatpush.msra.mxu0 0.0
    %114 = vmatpush.msra.mxu0 0.0
    %115 = vmatpush.msra.mxu0 0.0
    %116 = vmatpush.msra.mxu0 0.0
    %117 = vmatpush.msra.mxu0 0.0
    %118 = vmatpush.msra.mxu0 0.0
    %119 = vmatpush.msra.mxu0 0.0
    %120 = vmatpush.msra.mxu0 0.0
    %121 = vmatpush.msra.mxu0 0.0
    %122 = vmatpush.msra.mxu0 0.0
    %123 = vmatpush.msra.mxu0 0.0
    %124 = vmatpush.msra.mxu0 0.0
    %125 = vmatpush.msra.mxu0 0.0
    %126 = vmatpush.msra.mxu0 %v82
    %127 = vmatpush.msra.mxu0 %v81
    %128 = vmatmul.f32.gmra.mxu0 %v89
    %v129 = vpop.f32.mrf.mxu0
    %v130 = vadd.f32 %v85, %v129
    %131 = vmatmul.f32.gmra.mxu0 %v92
    %v132 = vpop.f32.mrf.mxu0
    %v133 = vadd.f32 %v85, %v132
    %134 = vmatmul.f32.gmra.mxu0 %v95
    %v135 = vpop.f32.mrf.mxu0
    %v136 = vadd.f32 %v85, %v135
    %137 = vmatmul.f32.gmra.mxu0 %v98
    %v138 = vpop.f32.mrf.mxu0
    %v139 = vadd.f32 %v85, %v138
    %140 = vmatmul.f32.gmra.mxu0 %v101
    %v141 = vpop.f32.mrf.mxu0
    %v142 = vadd.f32 %v85, %v141
    %143 = vmatmul.f32.gmra.mxu0 %v104
    %v144 = vpop.f32.mrf.mxu0
    %v145 = vadd.f32 %v85, %v144
    %146 = vmatmul.f32.gmra.mxu0 %v107
    %v147 = vpop.f32.mrf.mxu0
    %v148 = vadd.f32 %v85, %v147
    %149 = vmatmul.f32.gmra.mxu0 %v110
    %v150 = vpop.f32.mrf.mxu0
    %v151 = vadd.f32 %v85, %v150
    %152 = vdwg.mxu0
    %153 = vst [vmem:[#allocation2] sm:$0xff] %v130
    %154 = vst [vmem:[#allocation2 + $0x8] sm:$0xff] %v133
    %155 = vst [vmem:[#allocation2 + $0x10] sm:$0xff] %v136
    %156 = vst [vmem:[#allocation2 + $0x18] sm:$0xff] %v139
    %157 = vst [vmem:[#allocation2 + $0x20] sm:$0xff] %v142
    %158 = vst [vmem:[#allocation2 + $0x28] sm:$0xff] %v145
    %159 = vst [vmem:[#allocation2 + $0x30] sm:$0xff] %v148
    %160 = vst [vmem:[#allocation2 + $0x38] sm:$0xff] %v151
    %v161 = vld [vmem:[#allocation3] sm:$0xff]
    %v162 = vld [vmem:[#allocation3 + $0x8] sm:$0xff]
    %v163 = vld [vmem:[#allocation3 + $0x10] sm:$0xff]
    %v164 = vld [vmem:[#allocation3 + $0x18] sm:$0xff]
    %v165 = vld [vmem:[#allocation2] sm:$0x1]
    %v166 = vld [vmem:[#allocation2 + $0x8] sm:$0x1]
    %v167 = vld [vmem:[#allocation2 + $0x10] sm:$0x1]
    %v168 = vld [vmem:[#allocation2 + $0x18] sm:$0x1]
    %v169 = vld [vmem:[#allocation2 + $0x20] sm:$0x1]
    %v170 = vld [vmem:[#allocation2 + $0x28] sm:$0x1]
    %v171 = vld [vmem:[#allocation2 + $0x30] sm:$0x1]
    %v172 = vld [vmem:[#allocation2 + $0x38] sm:$0x1]
    %vm173 = vcmask 261120
    %v175 = vsel %vm173, 0.0, 0
    %177 = vmatpush.msra.mxu0 0.0
    %178 = vmatpush.msra.mxu0 0.0
    %179 = vmatpush.msra.mxu0 0.0
    %180 = vmatpush.msra.mxu0 0.0
    %181 = vmatpush.msra.mxu0 0.0
    %182 = vmatpush.msra.mxu0 0.0
    %183 = vmatpush.msra.mxu0 0.0
    %184 = vmatpush.msra.mxu0 0.0
    %185 = vmatpush.msra.mxu0 0.0
    %186 = vmatpush.msra.mxu0 0.0
    %187 = vmatpush.msra.mxu0 0.0
    %188 = vmatpush.msra.mxu0 0.0
    %189 = vmatpush.msra.mxu0 %v164
    %190 = vmatpush.msra.mxu0 %v163
    %191 = vmatpush.msra.mxu0 %v162
    %192 = vmatpush.msra.mxu0 %v161
    %193 = vmatmul.f32.gmra.mxu0 %v175
    %v194 = vpop.f32.mrf.mxu0
    %v195 = vadd.f32 0.0, %v194
    %196 = vdwg.mxu0
    %v198 = vrot.slane %v195, 1
    %v199 = vrot.slane %v195, 2
    %v200 = vrot.slane %v195, 3
    %v201 = vrot.slane %v195, 4
    %v202 = vrot.slane %v195, 5
    %v203 = vrot.slane %v195, 6
    %v204 = vrot.slane %v195, 7
    %v213 = vadd.f32 %v165, %v195
    %v214 = vadd.f32 %v166, %v198
    %v215 = vadd.f32 %v167, %v199
    %v216 = vadd.f32 %v168, %v200
    %v217 = vadd.f32 %v169, %v201
    %v218 = vadd.f32 %v170, %v202
    %v219 = vadd.f32 %v171, %v203
    %v220 = vadd.f32 %v172, %v204
    %v221 = vxor.u32 %v213, 2147483648
    %v222 = vxor.u32 %v214, 2147483648
    %v223 = vxor.u32 %v215, 2147483648
    %v224 = vxor.u32 %v216, 2147483648
    %v225 = vxor.u32 %v217, 2147483648
    %v226 = vxor.u32 %v218, 2147483648
    %v227 = vxor.u32 %v219, 2147483648
    %v228 = vxor.u32 %v220, 2147483648
    %v229 = vmul.f32 %v221, 1.442695
    %v230 = vpow.pop %v229
    %v231 = vmul.f32 %v222, 1.442695
    %v232 = vpow.pop %v231
    %v233 = vmul.f32 %v223, 1.442695
    %v234 = vpow.pop %v233
    %v235 = vmul.f32 %v224, 1.442695
    %v236 = vpow.pop %v235
    %v237 = vmul.f32 %v225, 1.442695
    %v238 = vpow.pop %v237
    %v239 = vmul.f32 %v226, 1.442695
    %v240 = vpow.pop %v239
    %v241 = vmul.f32 %v227, 1.442695
    %v242 = vpow.pop %v241
    %v243 = vmul.f32 %v228, 1.442695
    %v244 = vpow.pop %v243
    %v245 = vadd.f32 %v230, 1.0
    %v246 = vadd.f32 %v232, 1.0
    %v247 = vadd.f32 %v234, 1.0
    %v248 = vadd.f32 %v236, 1.0
    %v249 = vadd.f32 %v238, 1.0
    %v250 = vadd.f32 %v240, 1.0
    %v251 = vadd.f32 %v242, 1.0
    %v252 = vadd.f32 %v244, 1.0
    %v253 = vrcp.pop %v245
    %v254 = vmul.f32 %v245, %v253
    %v255 = vsub.f32 1.0, %v254
    %v256 = vmul.f32 %v253, %v255
    %v257 = vadd.f32 %v253, %v256
    %vm258 = vweird.f32 %v245
    %vm259 = vweird.f32 %v253
    %vm260 = vmor %vm258, %vm259
    %v261 = vsel %vm260, %v253, %v257
    %v262 = vand.u32 2147483647, %v245
    %vm263 = vcmp.eq.f32.partialorder %v262, 8.507059e+37
    %v264 = vand.u32 %v245, 2147483648
    %v265 = vor.u32 1.1754944e-38, %v264
    %v266 = vsel %vm263, %v265, %v261
    %v267 = vmul.f32 1.0, %v266
    %v268 = vrcp.pop %v246
    %v269 = vmul.f32 %v246, %v268
    %v270 = vsub.f32 1.0, %v269
    %v271 = vmul.f32 %v268, %v270
    %v272 = vadd.f32 %v268, %v271
    %vm273 = vweird.f32 %v246
    %vm274 = vweird.f32 %v268
    %vm275 = vmor %vm273, %vm274
    %v276 = vsel %vm275, %v268, %v272
    %v277 = vand.u32 2147483647, %v246
    %vm278 = vcmp.eq.f32.partialorder %v277, 8.507059e+37
    %v279 = vand.u32 %v246, 2147483648
    %v280 = vor.u32 1.1754944e-38, %v279
    %v281 = vsel %vm278, %v280, %v276
    %v282 = vmul.f32 1.0, %v281
    %v283 = vrcp.pop %v247
    %v284 = vmul.f32 %v247, %v283
    %v285 = vsub.f32 1.0, %v284
    %v286 = vmul.f32 %v283, %v285
    %v287 = vadd.f32 %v283, %v286
    %vm288 = vweird.f32 %v247
    %vm289 = vweird.f32 %v283
    %vm290 = vmor %vm288, %vm289
    %v291 = vsel %vm290, %v283, %v287
    %v292 = vand.u32 2147483647, %v247
    %vm293 = vcmp.eq.f32.partialorder %v292, 8.507059e+37
    %v294 = vand.u32 %v247, 2147483648
    %v295 = vor.u32 1.1754944e-38, %v294
    %v296 = vsel %vm293, %v295, %v291
    %v297 = vmul.f32 1.0, %v296
    %v298 = vrcp.pop %v248
    %v299 = vmul.f32 %v248, %v298
    %v300 = vsub.f32 1.0, %v299
    %v301 = vmul.f32 %v298, %v300
    %v302 = vadd.f32 %v298, %v301
    %vm303 = vweird.f32 %v248
    %vm304 = vweird.f32 %v298
    %vm305 = vmor %vm303, %vm304
    %v306 = vsel %vm305, %v298, %v302
    %v307 = vand.u32 2147483647, %v248
    %vm308 = vcmp.eq.f32.partialorder %v307, 8.507059e+37
    %v309 = vand.u32 %v248, 2147483648
    %v310 = vor.u32 1.1754944e-38, %v309
    %v311 = vsel %vm308, %v310, %v306
    %v312 = vmul.f32 1.0, %v311
    %v313 = vrcp.pop %v249
    %v314 = vmul.f32 %v249, %v313
    %v315 = vsub.f32 1.0, %v314
    %v316 = vmul.f32 %v313, %v315
    %v317 = vadd.f32 %v313, %v316
    %vm318 = vweird.f32 %v249
    %vm319 = vweird.f32 %v313
    %vm320 = vmor %vm318, %vm319
    %v321 = vsel %vm320, %v313, %v317
    %v322 = vand.u32 2147483647, %v249
    %vm323 = vcmp.eq.f32.partialorder %v322, 8.507059e+37
    %v324 = vand.u32 %v249, 2147483648
    %v325 = vor.u32 1.1754944e-38, %v324
    %v326 = vsel %vm323, %v325, %v321
    %v327 = vmul.f32 1.0, %v326
    %v328 = vrcp.pop %v250
    %v329 = vmul.f32 %v250, %v328
    %v330 = vsub.f32 1.0, %v329
    %v331 = vmul.f32 %v328, %v330
    %v332 = vadd.f32 %v328, %v331
    %vm333 = vweird.f32 %v250
    %vm334 = vweird.f32 %v328
    %vm335 = vmor %vm333, %vm334
    %v336 = vsel %vm335, %v328, %v332
    %v337 = vand.u32 2147483647, %v250
    %vm338 = vcmp.eq.f32.partialorder %v337, 8.507059e+37
    %v339 = vand.u32 %v250, 2147483648
    %v340 = vor.u32 1.1754944e-38, %v339
    %v341 = vsel %vm338, %v340, %v336
    %v342 = vmul.f32 1.0, %v341
    %v343 = vrcp.pop %v251
    %v344 = vmul.f32 %v251, %v343
    %v345 = vsub.f32 1.0, %v344
    %v346 = vmul.f32 %v343, %v345
    %v347 = vadd.f32 %v343, %v346
    %vm348 = vweird.f32 %v251
    %vm349 = vweird.f32 %v343
    %vm350 = vmor %vm348, %vm349
    %v351 = vsel %vm350, %v343, %v347
    %v352 = vand.u32 2147483647, %v251
    %vm353 = vcmp.eq.f32.partialorder %v352, 8.507059e+37
    %v354 = vand.u32 %v251, 2147483648
    %v355 = vor.u32 1.1754944e-38, %v354
    %v356 = vsel %vm353, %v355, %v351
    %v357 = vmul.f32 1.0, %v356
    %v358 = vrcp.pop %v252
    %v359 = vmul.f32 %v252, %v358
    %v360 = vsub.f32 1.0, %v359
    %v361 = vmul.f32 %v358, %v360
    %v362 = vadd.f32 %v358, %v361
    %vm363 = vweird.f32 %v252
    %vm364 = vweird.f32 %v358
    %vm365 = vmor %vm363, %vm364
    %v366 = vsel %vm365, %v358, %v362
    %v367 = vand.u32 2147483647, %v252
    %vm368 = vcmp.eq.f32.partialorder %v367, 8.507059e+37
    %v369 = vand.u32 %v252, 2147483648
    %v370 = vor.u32 1.1754944e-38, %v369
    %v371 = vsel %vm368, %v370, %v366
    %v372 = vmul.f32 1.0, %v371
    %v373 = vtanh.pop %v213
    %v374 = vtanh.pop %v214
    %v375 = vtanh.pop %v215
    %v376 = vtanh.pop %v216
    %v377 = vtanh.pop %v217
    %v378 = vtanh.pop %v218
    %v379 = vtanh.pop %v219
    %v380 = vtanh.pop %v220
    %v381 = vmul.f32 %v267, 0.0
    %v382 = vmul.f32 %v282, 0.0
    %v383 = vmul.f32 %v297, 0.0
    %v384 = vmul.f32 %v312, 0.0
    %v385 = vmul.f32 %v327, 0.0
    %v386 = vmul.f32 %v342, 0.0
    %v387 = vmul.f32 %v357, 0.0
    %v388 = vmul.f32 %v372, 0.0
    %397 = vrot.lane.b32.xlu0 %v373, 64
    %v398 = vpop.permute.xlu0 %397
    %399 = vrot.lane.b32.xlu0 %v374, 64
    %v400 = vpop.permute.xlu0 %399
    %401 = vrot.lane.b32.xlu0 %v375, 64
    %v402 = vpop.permute.xlu0 %401
    %403 = vrot.lane.b32.xlu0 %v376, 64
    %v404 = vpop.permute.xlu0 %403
    %405 = vrot.lane.b32.xlu0 %v377, 64
    %v406 = vpop.permute.xlu0 %405
    %407 = vrot.lane.b32.xlu0 %v378, 64
    %v408 = vpop.permute.xlu0 %407
    %409 = vrot.lane.b32.xlu0 %v379, 64
    %v410 = vpop.permute.xlu0 %409
    %411 = vrot.lane.b32.xlu0 %v380, 64
    %v412 = vpop.permute.xlu0 %411
    %v421 = vmul.f32 %v267, %v398
    %v422 = vmul.f32 %v282, %v400
    %v423 = vmul.f32 %v297, %v402
    %v424 = vmul.f32 %v312, %v404
    %v425 = vmul.f32 %v327, %v406
    %v426 = vmul.f32 %v342, %v408
    %v427 = vmul.f32 %v357, %v410
    %v428 = vmul.f32 %v372, %v412
    %437 = vrot.lane.b32.xlu0 %v421, 32
    %v438 = vpop.permute.xlu0 %437
    %439 = vrot.lane.b32.xlu0 %v422, 32
    %v440 = vpop.permute.xlu0 %439
    %441 = vrot.lane.b32.xlu0 %v423, 32
    %v442 = vpop.permute.xlu0 %441
    %443 = vrot.lane.b32.xlu0 %v424, 32
    %v444 = vpop.permute.xlu0 %443
    %445 = vrot.lane.b32.xlu0 %v425, 32
    %v446 = vpop.permute.xlu0 %445
    %447 = vrot.lane.b32.xlu0 %v426, 32
    %v448 = vpop.permute.xlu0 %447
    %449 = vrot.lane.b32.xlu0 %v427, 32
    %v450 = vpop.permute.xlu0 %449
    %451 = vrot.lane.b32.xlu0 %v428, 32
    %v452 = vpop.permute.xlu0 %451
    %v461 = vadd.f32 %v381, %v438
    %v462 = vadd.f32 %v382, %v440
    %v463 = vadd.f32 %v383, %v442
    %v464 = vadd.f32 %v384, %v444
    %v465 = vadd.f32 %v385, %v446
    %v466 = vadd.f32 %v386, %v448
    %v467 = vadd.f32 %v387, %v450
    %v468 = vadd.f32 %v388, %v452
    %v469 = vtanh.pop %v461
    %v470 = vtanh.pop %v462
    %v471 = vtanh.pop %v463
    %v472 = vtanh.pop %v464
    %v473 = vtanh.pop %v465
    %v474 = vtanh.pop %v466
    %v475 = vtanh.pop %v467
    %v476 = vtanh.pop %v468
    %485 = vrot.lane.b32.xlu0 %v469, 64
    %v486 = vpop.permute.xlu0 %485
    %487 = vrot.lane.b32.xlu0 %v470, 64
    %v488 = vpop.permute.xlu0 %487
    %489 = vrot.lane.b32.xlu0 %v471, 64
    %v490 = vpop.permute.xlu0 %489
    %491 = vrot.lane.b32.xlu0 %v472, 64
    %v492 = vpop.permute.xlu0 %491
    %493 = vrot.lane.b32.xlu0 %v473, 64
    %v494 = vpop.permute.xlu0 %493
    %495 = vrot.lane.b32.xlu0 %v474, 64
    %v496 = vpop.permute.xlu0 %495
    %497 = vrot.lane.b32.xlu0 %v475, 64
    %v498 = vpop.permute.xlu0 %497
    %499 = vrot.lane.b32.xlu0 %v476, 64
    %v500 = vpop.permute.xlu0 %499
    %v509 = vmul.f32 %v267, %v486
    %v510 = vmul.f32 %v282, %v488
    %v511 = vmul.f32 %v297, %v490
    %v512 = vmul.f32 %v312, %v492
    %v513 = vmul.f32 %v327, %v494
    %v514 = vmul.f32 %v342, %v496
    %v515 = vmul.f32 %v357, %v498
    %v516 = vmul.f32 %v372, %v500
    %v517 = vld [vmem:[#allocation2 + $0x1] sm:$0x1]
    %v518 = vld [vmem:[#allocation2 + $0x9] sm:$0x1]
    %v519 = vld [vmem:[#allocation2 + $0x11] sm:$0x1]
    %v520 = vld [vmem:[#allocation2 + $0x19] sm:$0x1]
    %v521 = vld [vmem:[#allocation2 + $0x21] sm:$0x1]
    %v522 = vld [vmem:[#allocation2 + $0x29] sm:$0x1]
    %v523 = vld [vmem:[#allocation2 + $0x31] sm:$0x1]
    %v524 = vld [vmem:[#allocation2 + $0x39] sm:$0x1]
    %v533 = vrot.slane %v510, 7
    %vm534 = vcmask 1041409
    %v535 = vsel %vm534, %v533, %v509
    %v536 = vrot.slane %v511, 6
    %vm537 = vcmask 1042434
    %v538 = vsel %vm537, %v536, %v535
    %v539 = vrot.slane %v512, 5
    %vm540 = vcmask 1043459
    %v541 = vsel %vm540, %v539, %v538
    %v542 = vrot.slane %v513, 4
    %vm543 = vcmask 1044484
    %v544 = vsel %vm543, %v542, %v541
    %v545 = vrot.slane %v514, 3
    %vm546 = vcmask 1045509
    %v547 = vsel %vm546, %v545, %v544
    %v548 = vrot.slane %v515, 2
    %vm549 = vcmask 1046534
    %v550 = vsel %vm549, %v548, %v547
    %v551 = vrot.slane %v516, 1
    %vm552 = vcmask 1047559
    %v553 = vsel %vm552, %v551, %v550
    %554 = vrot.lane.b32.xlu0 %v553, 32
    %v555 = vpop.permute.xlu0 %554
    %v556 = vsel %vm173, %v555, 0
    %558 = vmatpush.msra.mxu0 0.0
    %559 = vmatpush.msra.mxu0 0.0
    %560 = vmatpush.msra.mxu0 0.0
    %561 = vmatpush.msra.mxu0 0.0
    %562 = vmatpush.msra.mxu0 0.0
    %563 = vmatpush.msra.mxu0 0.0
    %564 = vmatpush.msra.mxu0 0.0
    %565 = vmatpush.msra.mxu0 0.0
    %566 = vmatpush.msra.mxu0 0.0
    %567 = vmatpush.msra.mxu0 0.0
    %568 = vmatpush.msra.mxu0 0.0
    %569 = vmatpush.msra.mxu0 0.0
    %570 = vmatpush.msra.mxu0 %v164
    %571 = vmatpush.msra.mxu0 %v163
    %572 = vmatpush.msra.mxu0 %v162
    %573 = vmatpush.msra.mxu0 %v161
    %574 = vmatmul.f32.gmra.mxu0 %v556
    %v575 = vpop.f32.mrf.mxu0
    %v576 = vadd.f32 0.0, %v575
    %577 = vdwg.mxu0
    %v579 = vrot.slane %v576, 1
    %v580 = vrot.slane %v576, 2
    %v581 = vrot.slane %v576, 3
    %v582 = vrot.slane %v576, 4
    %v583 = vrot.slane %v576, 5
    %v584 = vrot.slane %v576, 6
    %v585 = vrot.slane %v576, 7
    %v594 = vadd.f32 %v517, %v576
    %v595 = vadd.f32 %v518, %v579
    %v596 = vadd.f32 %v519, %v580
    %v597 = vadd.f32 %v520, %v581
    %v598 = vadd.f32 %v521, %v582
    %v599 = vadd.f32 %v522, %v583
    %v600 = vadd.f32 %v523, %v584
    %v601 = vadd.f32 %v524, %v585
    %v602 = vxor.u32 %v594, 2147483648
    %v603 = vxor.u32 %v595, 2147483648
    %v604 = vxor.u32 %v596, 2147483648
    %v605 = vxor.u32 %v597, 2147483648
    %v606 = vxor.u32 %v598, 2147483648
    %v607 = vxor.u32 %v599, 2147483648
    %v608 = vxor.u32 %v600, 2147483648
    %v609 = vxor.u32 %v601, 2147483648
    %v610 = vmul.f32 %v602, 1.442695
    %v611 = vpow.pop %v610
    %v612 = vmul.f32 %v603, 1.442695
    %v613 = vpow.pop %v612
    %v614 = vmul.f32 %v604, 1.442695
    %v615 = vpow.pop %v614
    %v616 = vmul.f32 %v605, 1.442695
    %v617 = vpow.pop %v616
    %v618 = vmul.f32 %v606, 1.442695
    %v619 = vpow.pop %v618
    %v620 = vmul.f32 %v607, 1.442695
    %v621 = vpow.pop %v620
    %v622 = vmul.f32 %v608, 1.442695
    %v623 = vpow.pop %v622
    %v624 = vmul.f32 %v609, 1.442695
    %v625 = vpow.pop %v624
    %v626 = vadd.f32 %v611, 1.0
    %v627 = vadd.f32 %v613, 1.0
    %v628 = vadd.f32 %v615, 1.0
    %v629 = vadd.f32 %v617, 1.0
    %v630 = vadd.f32 %v619, 1.0
    %v631 = vadd.f32 %v621, 1.0
    %v632 = vadd.f32 %v623, 1.0
    %v633 = vadd.f32 %v625, 1.0
    %v634 = vrcp.pop %v626
    %v635 = vmul.f32 %v626, %v634
    %v636 = vsub.f32 1.0, %v635
    %v637 = vmul.f32 %v634, %v636
    %v638 = vadd.f32 %v634, %v637
    %vm639 = vweird.f32 %v626
    %vm640 = vweird.f32 %v634
    %vm641 = vmor %vm639, %vm640
    %v642 = vsel %vm641, %v634, %v638
    %v643 = vand.u32 2147483647, %v626
    %vm644 = vcmp.eq.f32.partialorder %v643, 8.507059e+37
    %v645 = vand.u32 %v626, 2147483648
    %v646 = vor.u32 1.1754944e-38, %v645
    %v647 = vsel %vm644, %v646, %v642
    %v648 = vmul.f32 1.0, %v647
    %v649 = vrcp.pop %v627
    %v650 = vmul.f32 %v627, %v649
    %v651 = vsub.f32 1.0, %v650
    %v652 = vmul.f32 %v649, %v651
    %v653 = vadd.f32 %v649, %v652
    %vm654 = vweird.f32 %v627
    %vm655 = vweird.f32 %v649
    %vm656 = vmor %vm654, %vm655
    %v657 = vsel %vm656, %v649, %v653
    %v658 = vand.u32 2147483647, %v627
    %vm659 = vcmp.eq.f32.partialorder %v658, 8.507059e+37
    %v660 = vand.u32 %v627, 2147483648
    %v661 = vor.u32 1.1754944e-38, %v660
    %v662 = vsel %vm659, %v661, %v657
    %v663 = vmul.f32 1.0, %v662
    %v664 = vrcp.pop %v628
    %v665 = vmul.f32 %v628, %v664
    %v666 = vsub.f32 1.0, %v665
    %v667 = vmul.f32 %v664, %v666
    %v668 = vadd.f32 %v664, %v667
    %vm669 = vweird.f32 %v628
    %vm670 = vweird.f32 %v664
    %vm671 = vmor %vm669, %vm670
    %v672 = vsel %vm671, %v664, %v668
    %v673 = vand.u32 2147483647, %v628
    %vm674 = vcmp.eq.f32.partialorder %v673, 8.507059e+37
    %v675 = vand.u32 %v628, 2147483648
    %v676 = vor.u32 1.1754944e-38, %v675
    %v677 = vsel %vm674, %v676, %v672
    %v678 = vmul.f32 1.0, %v677
    %v679 = vrcp.pop %v629
    %v680 = vmul.f32 %v629, %v679
    %v681 = vsub.f32 1.0, %v680
    %v682 = vmul.f32 %v679, %v681
    %v683 = vadd.f32 %v679, %v682
    %vm684 = vweird.f32 %v629
    %vm685 = vweird.f32 %v679
    %vm686 = vmor %vm684, %vm685
    %v687 = vsel %vm686, %v679, %v683
    %v688 = vand.u32 2147483647, %v629
    %vm689 = vcmp.eq.f32.partialorder %v688, 8.507059e+37
    %v690 = vand.u32 %v629, 2147483648
    %v691 = vor.u32 1.1754944e-38, %v690
    %v692 = vsel %vm689, %v691, %v687
    %v693 = vmul.f32 1.0, %v692
    %v694 = vrcp.pop %v630
    %v695 = vmul.f32 %v630, %v694
    %v696 = vsub.f32 1.0, %v695
    %v697 = vmul.f32 %v694, %v696
    %v698 = vadd.f32 %v694, %v697
    %vm699 = vweird.f32 %v630
    %vm700 = vweird.f32 %v694
    %vm701 = vmor %vm699, %vm700
    %v702 = vsel %vm701, %v694, %v698
    %v703 = vand.u32 2147483647, %v630
    %vm704 = vcmp.eq.f32.partialorder %v703, 8.507059e+37
    %v705 = vand.u32 %v630, 2147483648
    %v706 = vor.u32 1.1754944e-38, %v705
    %v707 = vsel %vm704, %v706, %v702
    %v708 = vmul.f32 1.0, %v707
    %v709 = vrcp.pop %v631
    %v710 = vmul.f32 %v631, %v709
    %v711 = vsub.f32 1.0, %v710
    %v712 = vmul.f32 %v709, %v711
    %v713 = vadd.f32 %v709, %v712
    %vm714 = vweird.f32 %v631
    %vm715 = vweird.f32 %v709
    %vm716 = vmor %vm714, %vm715
    %v717 = vsel %vm716, %v709, %v713
    %v718 = vand.u32 2147483647, %v631
    %vm719 = vcmp.eq.f32.partialorder %v718, 8.507059e+37
    %v720 = vand.u32 %v631, 2147483648
    %v721 = vor.u32 1.1754944e-38, %v720
    %v722 = vsel %vm719, %v721, %v717
    %v723 = vmul.f32 1.0, %v722
    %v724 = vrcp.pop %v632
    %v725 = vmul.f32 %v632, %v724
    %v726 = vsub.f32 1.0, %v725
    %v727 = vmul.f32 %v724, %v726
    %v728 = vadd.f32 %v724, %v727
    %vm729 = vweird.f32 %v632
    %vm730 = vweird.f32 %v724
    %vm731 = vmor %vm729, %vm730
    %v732 = vsel %vm731, %v724, %v728
    %v733 = vand.u32 2147483647, %v632
    %vm734 = vcmp.eq.f32.partialorder %v733, 8.507059e+37
    %v735 = vand.u32 %v632, 2147483648
    %v736 = vor.u32 1.1754944e-38, %v735
    %v737 = vsel %vm734, %v736, %v732
    %v738 = vmul.f32 1.0, %v737
    %v739 = vrcp.pop %v633
    %v740 = vmul.f32 %v633, %v739
    %v741 = vsub.f32 1.0, %v740
    %v742 = vmul.f32 %v739, %v741
    %v743 = vadd.f32 %v739, %v742
    %vm744 = vweird.f32 %v633
    %vm745 = vweird.f32 %v739
    %vm746 = vmor %vm744, %vm745
    %v747 = vsel %vm746, %v739, %v743
    %v748 = vand.u32 2147483647, %v633
    %vm749 = vcmp.eq.f32.partialorder %v748, 8.507059e+37
    %v750 = vand.u32 %v633, 2147483648
    %v751 = vor.u32 1.1754944e-38, %v750
    %v752 = vsel %vm749, %v751, %v747
    %v753 = vmul.f32 1.0, %v752
    %v754 = vtanh.pop %v594
    %v755 = vtanh.pop %v595
    %v756 = vtanh.pop %v596
    %v757 = vtanh.pop %v597
    %v758 = vtanh.pop %v598
    %v759 = vtanh.pop %v599
    %v760 = vtanh.pop %v600
    %v761 = vtanh.pop %v601
    %v762 = vmul.f32 %v648, %v461
    %v763 = vmul.f32 %v663, %v462
    %v764 = vmul.f32 %v678, %v463
    %v765 = vmul.f32 %v693, %v464
    %v766 = vmul.f32 %v708, %v465
    %v767 = vmul.f32 %v723, %v466
    %v768 = vmul.f32 %v738, %v467
    %v769 = vmul.f32 %v753, %v468
    %778 = vrot.lane.b32.xlu0 %v754, 64
    %v779 = vpop.permute.xlu0 %778
    %780 = vrot.lane.b32.xlu0 %v755, 64
    %v781 = vpop.permute.xlu0 %780
    %782 = vrot.lane.b32.xlu0 %v756, 64
    %v783 = vpop.permute.xlu0 %782
    %784 = vrot.lane.b32.xlu0 %v757, 64
    %v785 = vpop.permute.xlu0 %784
    %786 = vrot.lane.b32.xlu0 %v758, 64
    %v787 = vpop.permute.xlu0 %786
    %788 = vrot.lane.b32.xlu0 %v759, 64
    %v789 = vpop.permute.xlu0 %788
    %790 = vrot.lane.b32.xlu0 %v760, 64
    %v791 = vpop.permute.xlu0 %790
    %792 = vrot.lane.b32.xlu0 %v761, 64
    %v793 = vpop.permute.xlu0 %792
    %v802 = vmul.f32 %v648, %v779
    %v803 = vmul.f32 %v663, %v781
    %v804 = vmul.f32 %v678, %v783
    %v805 = vmul.f32 %v693, %v785
    %v806 = vmul.f32 %v708, %v787
    %v807 = vmul.f32 %v723, %v789
    %v808 = vmul.f32 %v738, %v791
    %v809 = vmul.f32 %v753, %v793
    %818 = vrot.lane.b32.xlu0 %v802, 32
    %v819 = vpop.permute.xlu0 %818
    %820 = vrot.lane.b32.xlu0 %v803, 32
    %v821 = vpop.permute.xlu0 %820
    %822 = vrot.lane.b32.xlu0 %v804, 32
    %v823 = vpop.permute.xlu0 %822
    %824 = vrot.lane.b32.xlu0 %v805, 32
    %v825 = vpop.permute.xlu0 %824
    %826 = vrot.lane.b32.xlu0 %v806, 32
    %v827 = vpop.permute.xlu0 %826
    %828 = vrot.lane.b32.xlu0 %v807, 32
    %v829 = vpop.permute.xlu0 %828
    %830 = vrot.lane.b32.xlu0 %v808, 32
    %v831 = vpop.permute.xlu0 %830
    %832 = vrot.lane.b32.xlu0 %v809, 32
    %v833 = vpop.permute.xlu0 %832
    %v842 = vadd.f32 %v762, %v819
    %v843 = vadd.f32 %v763, %v821
    %v844 = vadd.f32 %v764, %v823
    %v845 = vadd.f32 %v765, %v825
    %v846 = vadd.f32 %v766, %v827
    %v847 = vadd.f32 %v767, %v829
    %v848 = vadd.f32 %v768, %v831
    %v849 = vadd.f32 %v769, %v833
    %v850 = vtanh.pop %v842
    %v851 = vtanh.pop %v843
    %v852 = vtanh.pop %v844
    %v853 = vtanh.pop %v845
    %v854 = vtanh.pop %v846
    %v855 = vtanh.pop %v847
    %v856 = vtanh.pop %v848
    %v857 = vtanh.pop %v849
    %866 = vrot.lane.b32.xlu0 %v850, 64
    %v867 = vpop.permute.xlu0 %866
    %868 = vrot.lane.b32.xlu0 %v851, 64
    %v869 = vpop.permute.xlu0 %868
    %870 = vrot.lane.b32.xlu0 %v852, 64
    %v871 = vpop.permute.xlu0 %870
    %872 = vrot.lane.b32.xlu0 %v853, 64
    %v873 = vpop.permute.xlu0 %872
    %874 = vrot.lane.b32.xlu0 %v854, 64
    %v875 = vpop.permute.xlu0 %874
    %876 = vrot.lane.b32.xlu0 %v855, 64
    %v877 = vpop.permute.xlu0 %876
    %878 = vrot.lane.b32.xlu0 %v856, 64
    %v879 = vpop.permute.xlu0 %878
    %880 = vrot.lane.b32.xlu0 %v857, 64
    %v881 = vpop.permute.xlu0 %880
    %v890 = vmul.f32 %v648, %v867
    %v891 = vmul.f32 %v663, %v869
    %v892 = vmul.f32 %v678, %v871
    %v893 = vmul.f32 %v693, %v873
    %v894 = vmul.f32 %v708, %v875
    %v895 = vmul.f32 %v723, %v877
    %v896 = vmul.f32 %v738, %v879
    %v897 = vmul.f32 %v753, %v881
    %v898 = vld [vmem:[#allocation2 + $0x2] sm:$0x1]
    %v899 = vld [vmem:[#allocation2 + $0xa] sm:$0x1]
    %v900 = vld [vmem:[#allocation2 + $0x12] sm:$0x1]
    %v901 = vld [vmem:[#allocation2 + $0x1a] sm:$0x1]
    %v902 = vld [vmem:[#allocation2 + $0x22] sm:$0x1]
    %v903 = vld [vmem:[#allocation2 + $0x2a] sm:$0x1]
    %v904 = vld [vmem:[#allocation2 + $0x32] sm:$0x1]
    %v905 = vld [vmem:[#allocation2 + $0x3a] sm:$0x1]
    %v914 = vrot.slane %v891, 7
    %v915 = vsel %vm534, %v914, %v890
    %v916 = vrot.slane %v892, 6
    %v917 = vsel %vm537, %v916, %v915
    %v918 = vrot.slane %v893, 5
    %v919 = vsel %vm540, %v918, %v917
    %v920 = vrot.slane %v894, 4
    %v921 = vsel %vm543, %v920, %v919
    %v922 = vrot.slane %v895, 3
    %v923 = vsel %vm546, %v922, %v921
    %v924 = vrot.slane %v896, 2
    %v925 = vsel %vm549, %v924, %v923
    %v926 = vrot.slane %v897, 1
    %v927 = vsel %vm552, %v926, %v925
    %928 = vrot.lane.b32.xlu0 %v927, 32
    %v929 = vpop.permute.xlu0 %928
    %v930 = vsel %vm173, %v929, 0
    %932 = vmatpush.msra.mxu0 0.0
    %933 = vmatpush.msra.mxu0 0.0
    %934 = vmatpush.msra.mxu0 0.0
    %935 = vmatpush.msra.mxu0 0.0
    %936 = vmatpush.msra.mxu0 0.0
    %937 = vmatpush.msra.mxu0 0.0
    %938 = vmatpush.msra.mxu0 0.0
    %939 = vmatpush.msra.mxu0 0.0
    %940 = vmatpush.msra.mxu0 0.0
    %941 = vmatpush.msra.mxu0 0.0
    %942 = vmatpush.msra.mxu0 0.0
    %943 = vmatpush.msra.mxu0 0.0
    %944 = vmatpush.msra.mxu0 %v164
    %945 = vmatpush.msra.mxu0 %v163
    %946 = vmatpush.msra.mxu0 %v162
    %947 = vmatpush.msra.mxu0 %v161
    %948 = vmatmul.f32.gmra.mxu0 %v930
    %v949 = vpop.f32.mrf.mxu0
    %v950 = vadd.f32 0.0, %v949
    %951 = vdwg.mxu0
    %v953 = vrot.slane %v950, 1
    %v954 = vrot.slane %v950, 2
    %v955 = vrot.slane %v950, 3
    %v956 = vrot.slane %v950, 4
    %v957 = vrot.slane %v950, 5
    %v958 = vrot.slane %v950, 6
    %v959 = vrot.slane %v950, 7
    %v968 = vadd.f32 %v898, %v950
    %v969 = vadd.f32 %v899, %v953
    %v970 = vadd.f32 %v900, %v954
    %v971 = vadd.f32 %v901, %v955
    %v972 = vadd.f32 %v902, %v956
    %v973 = vadd.f32 %v903, %v957
    %v974 = vadd.f32 %v904, %v958
    %v975 = vadd.f32 %v905, %v959
    %v976 = vxor.u32 %v968, 2147483648
    %v977 = vxor.u32 %v969, 2147483648
    %v978 = vxor.u32 %v970, 2147483648
    %v979 = vxor.u32 %v971, 2147483648
    %v980 = vxor.u32 %v972, 2147483648
    %v981 = vxor.u32 %v973, 2147483648
    %v982 = vxor.u32 %v974, 2147483648
    %v983 = vxor.u32 %v975, 2147483648
    %v984 = vmul.f32 %v976, 1.442695
    %v985 = vpow.pop %v984
    %v986 = vmul.f32 %v977, 1.442695
    %v987 = vpow.pop %v986
    %v988 = vmul.f32 %v978, 1.442695
    %v989 = vpow.pop %v988
    %v990 = vmul.f32 %v979, 1.442695
    %v991 = vpow.pop %v990
    %v992 = vmul.f32 %v980, 1.442695
    %v993 = vpow.pop %v992
    %v994 = vmul.f32 %v981, 1.442695
    %v995 = vpow.pop %v994
    %v996 = vmul.f32 %v982, 1.442695
    %v997 = vpow.pop %v996
    %v998 = vmul.f32 %v983, 1.442695
    %v999 = vpow.pop %v998
    %v1000 = vadd.f32 %v985, 1.0
    %v1001 = vadd.f32 %v987, 1.0
    %v1002 = vadd.f32 %v989, 1.0
    %v1003 = vadd.f32 %v991, 1.0
    %v1004 = vadd.f32 %v993, 1.0
    %v1005 = vadd.f32 %v995, 1.0
    %v1006 = vadd.f32 %v997, 1.0
    %v1007 = vadd.f32 %v999, 1.0
    %v1008 = vrcp.pop %v1000
    %v1009 = vmul.f32 %v1000, %v1008
    %v1010 = vsub.f32 1.0, %v1009
    %v1011 = vmul.f32 %v1008, %v1010
    %v1012 = vadd.f32 %v1008, %v1011
    %vm1013 = vweird.f32 %v1000
    %vm1014 = vweird.f32 %v1008
    %vm1015 = vmor %vm1013, %vm1014
    %v1016 = vsel %vm1015, %v1008, %v1012
    %v1017 = vand.u32 2147483647, %v1000
    %vm1018 = vcmp.eq.f32.partialorder %v1017, 8.507059e+37
    %v1019 = vand.u32 %v1000, 2147483648
    %v1020 = vor.u32 1.1754944e-38, %v1019
    %v1021 = vsel %vm1018, %v1020, %v1016
    %v1022 = vmul.f32 1.0, %v1021
    %v1023 = vrcp.pop %v1001
    %v1024 = vmul.f32 %v1001, %v1023
    %v1025 = vsub.f32 1.0, %v1024
    %v1026 = vmul.f32 %v1023, %v1025
    %v1027 = vadd.f32 %v1023, %v1026
    %vm1028 = vweird.f32 %v1001
    %vm1029 = vweird.f32 %v1023
    %vm1030 = vmor %vm1028, %vm1029
    %v1031 = vsel %vm1030, %v1023, %v1027
    %v1032 = vand.u32 2147483647, %v1001
    %vm1033 = vcmp.eq.f32.partialorder %v1032, 8.507059e+37
    %v1034 = vand.u32 %v1001, 2147483648
    %v1035 = vor.u32 1.1754944e-38, %v1034
    %v1036 = vsel %vm1033, %v1035, %v1031
    %v1037 = vmul.f32 1.0, %v1036
    %v1038 = vrcp.pop %v1002
    %v1039 = vmul.f32 %v1002, %v1038
    %v1040 = vsub.f32 1.0, %v1039
    %v1041 = vmul.f32 %v1038, %v1040
    %v1042 = vadd.f32 %v1038, %v1041
    %vm1043 = vweird.f32 %v1002
    %vm1044 = vweird.f32 %v1038
    %vm1045 = vmor %vm1043, %vm1044
    %v1046 = vsel %vm1045, %v1038, %v1042
    %v1047 = vand.u32 2147483647, %v1002
    %vm1048 = vcmp.eq.f32.partialorder %v1047, 8.507059e+37
    %v1049 = vand.u32 %v1002, 2147483648
    %v1050 = vor.u32 1.1754944e-38, %v1049
    %v1051 = vsel %vm1048, %v1050, %v1046
    %v1052 = vmul.f32 1.0, %v1051
    %v1053 = vrcp.pop %v1003
    %v1054 = vmul.f32 %v1003, %v1053
    %v1055 = vsub.f32 1.0, %v1054
    %v1056 = vmul.f32 %v1053, %v1055
    %v1057 = vadd.f32 %v1053, %v1056
    %vm1058 = vweird.f32 %v1003
    %vm1059 = vweird.f32 %v1053
    %vm1060 = vmor %vm1058, %vm1059
    %v1061 = vsel %vm1060, %v1053, %v1057
    %v1062 = vand.u32 2147483647, %v1003
    %vm1063 = vcmp.eq.f32.partialorder %v1062, 8.507059e+37
    %v1064 = vand.u32 %v1003, 2147483648
    %v1065 = vor.u32 1.1754944e-38, %v1064
    %v1066 = vsel %vm1063, %v1065, %v1061
    %v1067 = vmul.f32 1.0, %v1066
    %v1068 = vrcp.pop %v1004
    %v1069 = vmul.f32 %v1004, %v1068
    %v1070 = vsub.f32 1.0, %v1069
    %v1071 = vmul.f32 %v1068, %v1070
    %v1072 = vadd.f32 %v1068, %v1071
    %vm1073 = vweird.f32 %v1004
    %vm1074 = vweird.f32 %v1068
    %vm1075 = vmor %vm1073, %vm1074
    %v1076 = vsel %vm1075, %v1068, %v1072
    %v1077 = vand.u32 2147483647, %v1004
    %vm1078 = vcmp.eq.f32.partialorder %v1077, 8.507059e+37
    %v1079 = vand.u32 %v1004, 2147483648
    %v1080 = vor.u32 1.1754944e-38, %v1079
    %v1081 = vsel %vm1078, %v1080, %v1076
    %v1082 = vmul.f32 1.0, %v1081
    %v1083 = vrcp.pop %v1005
    %v1084 = vmul.f32 %v1005, %v1083
    %v1085 = vsub.f32 1.0, %v1084
    %v1086 = vmul.f32 %v1083, %v1085
    %v1087 = vadd.f32 %v1083, %v1086
    %vm1088 = vweird.f32 %v1005
    %vm1089 = vweird.f32 %v1083
    %vm1090 = vmor %vm1088, %vm1089
    %v1091 = vsel %vm1090, %v1083, %v1087
    %v1092 = vand.u32 2147483647, %v1005
    %vm1093 = vcmp.eq.f32.partialorder %v1092, 8.507059e+37
    %v1094 = vand.u32 %v1005, 2147483648
    %v1095 = vor.u32 1.1754944e-38, %v1094
    %v1096 = vsel %vm1093, %v1095, %v1091
    %v1097 = vmul.f32 1.0, %v1096
    %v1098 = vrcp.pop %v1006
    %v1099 = vmul.f32 %v1006, %v1098
    %v1100 = vsub.f32 1.0, %v1099
    %v1101 = vmul.f32 %v1098, %v1100
    %v1102 = vadd.f32 %v1098, %v1101
    %vm1103 = vweird.f32 %v1006
    %vm1104 = vweird.f32 %v1098
    %vm1105 = vmor %vm1103, %vm1104
    %v1106 = vsel %vm1105, %v1098, %v1102
    %v1107 = vand.u32 2147483647, %v1006
    %vm1108 = vcmp.eq.f32.partialorder %v1107, 8.507059e+37
    %v1109 = vand.u32 %v1006, 2147483648
    %v1110 = vor.u32 1.1754944e-38, %v1109
    %v1111 = vsel %vm1108, %v1110, %v1106
    %v1112 = vmul.f32 1.0, %v1111
    %v1113 = vrcp.pop %v1007
    %v1114 = vmul.f32 %v1007, %v1113
    %v1115 = vsub.f32 1.0, %v1114
    %v1116 = vmul.f32 %v1113, %v1115
    %v1117 = vadd.f32 %v1113, %v1116
    %vm1118 = vweird.f32 %v1007
    %vm1119 = vweird.f32 %v1113
    %vm1120 = vmor %vm1118, %vm1119
    %v1121 = vsel %vm1120, %v1113, %v1117
    %v1122 = vand.u32 2147483647, %v1007
    %vm1123 = vcmp.eq.f32.partialorder %v1122, 8.507059e+37
    %v1124 = vand.u32 %v1007, 2147483648
    %v1125 = vor.u32 1.1754944e-38, %v1124
    %v1126 = vsel %vm1123, %v1125, %v1121
    %v1127 = vmul.f32 1.0, %v1126
    %v1128 = vtanh.pop %v968
    %v1129 = vtanh.pop %v969
    %v1130 = vtanh.pop %v970
    %v1131 = vtanh.pop %v971
    %v1132 = vtanh.pop %v972
    %v1133 = vtanh.pop %v973
    %v1134 = vtanh.pop %v974
    %v1135 = vtanh.pop %v975
    %v1136 = vmul.f32 %v1022, %v842
    %v1137 = vmul.f32 %v1037, %v843
    %v1138 = vmul.f32 %v1052, %v844
    %v1139 = vmul.f32 %v1067, %v845
    %v1140 = vmul.f32 %v1082, %v846
    %v1141 = vmul.f32 %v1097, %v847
    %v1142 = vmul.f32 %v1112, %v848
    %v1143 = vmul.f32 %v1127, %v849
    %1152 = vrot.lane.b32.xlu0 %v1128, 64
    %v1153 = vpop.permute.xlu0 %1152
    %1154 = vrot.lane.b32.xlu0 %v1129, 64
    %v1155 = vpop.permute.xlu0 %1154
    %1156 = vrot.lane.b32.xlu0 %v1130, 64
    %v1157 = vpop.permute.xlu0 %1156
    %1158 = vrot.lane.b32.xlu0 %v1131, 64
    %v1159 = vpop.permute.xlu0 %1158
    %1160 = vrot.lane.b32.xlu0 %v1132, 64
    %v1161 = vpop.permute.xlu0 %1160
    %1162 = vrot.lane.b32.xlu0 %v1133, 64
    %v1163 = vpop.permute.xlu0 %1162
    %1164 = vrot.lane.b32.xlu0 %v1134, 64
    %v1165 = vpop.permute.xlu0 %1164
    %1166 = vrot.lane.b32.xlu0 %v1135, 64
    %v1167 = vpop.permute.xlu0 %1166
    %v1176 = vmul.f32 %v1022, %v1153
    %v1177 = vmul.f32 %v1037, %v1155
    %v1178 = vmul.f32 %v1052, %v1157
    %v1179 = vmul.f32 %v1067, %v1159
    %v1180 = vmul.f32 %v1082, %v1161
    %v1181 = vmul.f32 %v1097, %v1163
    %v1182 = vmul.f32 %v1112, %v1165
    %v1183 = vmul.f32 %v1127, %v1167
    %1192 = vrot.lane.b32.xlu0 %v1176, 32
    %v1193 = vpop.permute.xlu0 %1192
    %1194 = vrot.lane.b32.xlu0 %v1177, 32
    %v1195 = vpop.permute.xlu0 %1194
    %1196 = vrot.lane.b32.xlu0 %v1178, 32
    %v1197 = vpop.permute.xlu0 %1196
    %1198 = vrot.lane.b32.xlu0 %v1179, 32
    %v1199 = vpop.permute.xlu0 %1198
    %1200 = vrot.lane.b32.xlu0 %v1180, 32
    %v1201 = vpop.permute.xlu0 %1200
    %1202 = vrot.lane.b32.xlu0 %v1181, 32
    %v1203 = vpop.permute.xlu0 %1202
    %1204 = vrot.lane.b32.xlu0 %v1182, 32
    %v1205 = vpop.permute.xlu0 %1204
    %1206 = vrot.lane.b32.xlu0 %v1183, 32
    %v1207 = vpop.permute.xlu0 %1206
    %v1216 = vadd.f32 %v1136, %v1193
    %v1217 = vadd.f32 %v1137, %v1195
    %v1218 = vadd.f32 %v1138, %v1197
    %v1219 = vadd.f32 %v1139, %v1199
    %v1220 = vadd.f32 %v1140, %v1201
    %v1221 = vadd.f32 %v1141, %v1203
    %v1222 = vadd.f32 %v1142, %v1205
    %v1223 = vadd.f32 %v1143, %v1207
    %v1224 = vtanh.pop %v1216
    %v1225 = vtanh.pop %v1217
    %v1226 = vtanh.pop %v1218
    %v1227 = vtanh.pop %v1219
    %v1228 = vtanh.pop %v1220
    %v1229 = vtanh.pop %v1221
    %v1230 = vtanh.pop %v1222
    %v1231 = vtanh.pop %v1223
    %1240 = vrot.lane.b32.xlu0 %v1224, 64
    %v1241 = vpop.permute.xlu0 %1240
    %1242 = vrot.lane.b32.xlu0 %v1225, 64
    %v1243 = vpop.permute.xlu0 %1242
    %1244 = vrot.lane.b32.xlu0 %v1226, 64
    %v1245 = vpop.permute.xlu0 %1244
    %1246 = vrot.lane.b32.xlu0 %v1227, 64
    %v1247 = vpop.permute.xlu0 %1246
    %1248 = vrot.lane.b32.xlu0 %v1228, 64
    %v1249 = vpop.permute.xlu0 %1248
    %1250 = vrot.lane.b32.xlu0 %v1229, 64
    %v1251 = vpop.permute.xlu0 %1250
    %1252 = vrot.lane.b32.xlu0 %v1230, 64
    %v1253 = vpop.permute.xlu0 %1252
    %1254 = vrot.lane.b32.xlu0 %v1231, 64
    %v1255 = vpop.permute.xlu0 %1254
    %v1264 = vmul.f32 %v1022, %v1241
    %v1265 = vmul.f32 %v1037, %v1243
    %v1266 = vmul.f32 %v1052, %v1245
    %v1267 = vmul.f32 %v1067, %v1247
    %v1268 = vmul.f32 %v1082, %v1249
    %v1269 = vmul.f32 %v1097, %v1251
    %v1270 = vmul.f32 %v1112, %v1253
    %v1271 = vmul.f32 %v1127, %v1255
    %v1272 = vld [vmem:[#allocation2 + $0x3] sm:$0x1]
    %v1273 = vld [vmem:[#allocation2 + $0xb] sm:$0x1]
    %v1274 = vld [vmem:[#allocation2 + $0x13] sm:$0x1]
    %v1275 = vld [vmem:[#allocation2 + $0x1b] sm:$0x1]
    %v1276 = vld [vmem:[#allocation2 + $0x23] sm:$0x1]
    %v1277 = vld [vmem:[#allocation2 + $0x2b] sm:$0x1]
    %v1278 = vld [vmem:[#allocation2 + $0x33] sm:$0x1]
    %v1279 = vld [vmem:[#allocation2 + $0x3b] sm:$0x1]
    %v1288 = vrot.slane %v1265, 7
    %v1289 = vsel %vm534, %v1288, %v1264
    %v1290 = vrot.slane %v1266, 6
    %v1291 = vsel %vm537, %v1290, %v1289
    %v1292 = vrot.slane %v1267, 5
    %v1293 = vsel %vm540, %v1292, %v1291
    %v1294 = vrot.slane %v1268, 4
    %v1295 = vsel %vm543, %v1294, %v1293
    %v1296 = vrot.slane %v1269, 3
    %v1297 = vsel %vm546, %v1296, %v1295
    %v1298 = vrot.slane %v1270, 2
    %v1299 = vsel %vm549, %v1298, %v1297
    %v1300 = vrot.slane %v1271, 1
    %v1301 = vsel %vm552, %v1300, %v1299
    %1302 = vrot.lane.b32.xlu0 %v1301, 32
    %v1303 = vpop.permute.xlu0 %1302
    %v1304 = vsel %vm173, %v1303, 0
    %1306 = vmatpush.msra.mxu0 0.0
    %1307 = vmatpush.msra.mxu0 0.0
    %1308 = vmatpush.msra.mxu0 0.0
    %1309 = vmatpush.msra.mxu0 0.0
    %1310 = vmatpush.msra.mxu0 0.0
    %1311 = vmatpush.msra.mxu0 0.0
    %1312 = vmatpush.msra.mxu0 0.0
    %1313 = vmatpush.msra.mxu0 0.0
    %1314 = vmatpush.msra.mxu0 0.0
    %1315 = vmatpush.msra.mxu0 0.0
    %1316 = vmatpush.msra.mxu0 0.0
    %1317 = vmatpush.msra.mxu0 0.0
    %1318 = vmatpush.msra.mxu0 %v164
    %1319 = vmatpush.msra.mxu0 %v163
    %1320 = vmatpush.msra.mxu0 %v162
    %1321 = vmatpush.msra.mxu0 %v161
    %1322 = vmatmul.f32.gmra.mxu0 %v1304
    %v1323 = vpop.f32.mrf.mxu0
    %v1324 = vadd.f32 0.0, %v1323
    %1325 = vdwg.mxu0
    %v1327 = vrot.slane %v1324, 1
    %v1328 = vrot.slane %v1324, 2
    %v1329 = vrot.slane %v1324, 3
    %v1330 = vrot.slane %v1324, 4
    %v1331 = vrot.slane %v1324, 5
    %v1332 = vrot.slane %v1324, 6
    %v1333 = vrot.slane %v1324, 7
    %v1342 = vadd.f32 %v1272, %v1324
    %v1343 = vadd.f32 %v1273, %v1327
    %v1344 = vadd.f32 %v1274, %v1328
    %v1345 = vadd.f32 %v1275, %v1329
    %v1346 = vadd.f32 %v1276, %v1330
    %v1347 = vadd.f32 %v1277, %v1331
    %v1348 = vadd.f32 %v1278, %v1332
    %v1349 = vadd.f32 %v1279, %v1333
    %v1350 = vxor.u32 %v1342, 2147483648
    %v1351 = vxor.u32 %v1343, 2147483648
    %v1352 = vxor.u32 %v1344, 2147483648
    %v1353 = vxor.u32 %v1345, 2147483648
    %v1354 = vxor.u32 %v1346, 2147483648
    %v1355 = vxor.u32 %v1347, 2147483648
    %v1356 = vxor.u32 %v1348, 2147483648
    %v1357 = vxor.u32 %v1349, 2147483648
    %v1358 = vmul.f32 %v1350, 1.442695
    %v1359 = vpow.pop %v1358
    %v1360 = vmul.f32 %v1351, 1.442695
    %v1361 = vpow.pop %v1360
    %v1362 = vmul.f32 %v1352, 1.442695
    %v1363 = vpow.pop %v1362
    %v1364 = vmul.f32 %v1353, 1.442695
    %v1365 = vpow.pop %v1364
    %v1366 = vmul.f32 %v1354, 1.442695
    %v1367 = vpow.pop %v1366
    %v1368 = vmul.f32 %v1355, 1.442695
    %v1369 = vpow.pop %v1368
    %v1370 = vmul.f32 %v1356, 1.442695
    %v1371 = vpow.pop %v1370
    %v1372 = vmul.f32 %v1357, 1.442695
    %v1373 = vpow.pop %v1372
    %v1374 = vadd.f32 %v1359, 1.0
    %v1375 = vadd.f32 %v1361, 1.0
    %v1376 = vadd.f32 %v1363, 1.0
    %v1377 = vadd.f32 %v1365, 1.0
    %v1378 = vadd.f32 %v1367, 1.0
    %v1379 = vadd.f32 %v1369, 1.0
    %v1380 = vadd.f32 %v1371, 1.0
    %v1381 = vadd.f32 %v1373, 1.0
    %v1382 = vrcp.pop %v1374
    %v1383 = vmul.f32 %v1374, %v1382
    %v1384 = vsub.f32 1.0, %v1383
    %v1385 = vmul.f32 %v1382, %v1384
    %v1386 = vadd.f32 %v1382, %v1385
    %vm1387 = vweird.f32 %v1374
    %vm1388 = vweird.f32 %v1382
    %vm1389 = vmor %vm1387, %vm1388
    %v1390 = vsel %vm1389, %v1382, %v1386
    %v1391 = vand.u32 2147483647, %v1374
    %vm1392 = vcmp.eq.f32.partialorder %v1391, 8.507059e+37
    %v1393 = vand.u32 %v1374, 2147483648
    %v1394 = vor.u32 1.1754944e-38, %v1393
    %v1395 = vsel %vm1392, %v1394, %v1390
    %v1396 = vmul.f32 1.0, %v1395
    %v1397 = vrcp.pop %v1375
    %v1398 = vmul.f32 %v1375, %v1397
    %v1399 = vsub.f32 1.0, %v1398
    %v1400 = vmul.f32 %v1397, %v1399
    %v1401 = vadd.f32 %v1397, %v1400
    %vm1402 = vweird.f32 %v1375
    %vm1403 = vweird.f32 %v1397
    %vm1404 = vmor %vm1402, %vm1403
    %v1405 = vsel %vm1404, %v1397, %v1401
    %v1406 = vand.u32 2147483647, %v1375
    %vm1407 = vcmp.eq.f32.partialorder %v1406, 8.507059e+37
    %v1408 = vand.u32 %v1375, 2147483648
    %v1409 = vor.u32 1.1754944e-38, %v1408
    %v1410 = vsel %vm1407, %v1409, %v1405
    %v1411 = vmul.f32 1.0, %v1410
    %v1412 = vrcp.pop %v1376
    %v1413 = vmul.f32 %v1376, %v1412
    %v1414 = vsub.f32 1.0, %v1413
    %v1415 = vmul.f32 %v1412, %v1414
    %v1416 = vadd.f32 %v1412, %v1415
    %vm1417 = vweird.f32 %v1376
    %vm1418 = vweird.f32 %v1412
    %vm1419 = vmor %vm1417, %vm1418
    %v1420 = vsel %vm1419, %v1412, %v1416
    %v1421 = vand.u32 2147483647, %v1376
    %vm1422 = vcmp.eq.f32.partialorder %v1421, 8.507059e+37
    %v1423 = vand.u32 %v1376, 2147483648
    %v1424 = vor.u32 1.1754944e-38, %v1423
    %v1425 = vsel %vm1422, %v1424, %v1420
    %v1426 = vmul.f32 1.0, %v1425
    %v1427 = vrcp.pop %v1377
    %v1428 = vmul.f32 %v1377, %v1427
    %v1429 = vsub.f32 1.0, %v1428
    %v1430 = vmul.f32 %v1427, %v1429
    %v1431 = vadd.f32 %v1427, %v1430
    %vm1432 = vweird.f32 %v1377
    %vm1433 = vweird.f32 %v1427
    %vm1434 = vmor %vm1432, %vm1433
    %v1435 = vsel %vm1434, %v1427, %v1431
    %v1436 = vand.u32 2147483647, %v1377
    %vm1437 = vcmp.eq.f32.partialorder %v1436, 8.507059e+37
    %v1438 = vand.u32 %v1377, 2147483648
    %v1439 = vor.u32 1.1754944e-38, %v1438
    %v1440 = vsel %vm1437, %v1439, %v1435
    %v1441 = vmul.f32 1.0, %v1440
    %v1442 = vrcp.pop %v1378
    %v1443 = vmul.f32 %v1378, %v1442
    %v1444 = vsub.f32 1.0, %v1443
    %v1445 = vmul.f32 %v1442, %v1444
    %v1446 = vadd.f32 %v1442, %v1445
    %vm1447 = vweird.f32 %v1378
    %vm1448 = vweird.f32 %v1442
    %vm1449 = vmor %vm1447, %vm1448
    %v1450 = vsel %vm1449, %v1442, %v1446
    %v1451 = vand.u32 2147483647, %v1378
    %vm1452 = vcmp.eq.f32.partialorder %v1451, 8.507059e+37
    %v1453 = vand.u32 %v1378, 2147483648
    %v1454 = vor.u32 1.1754944e-38, %v1453
    %v1455 = vsel %vm1452, %v1454, %v1450
    %v1456 = vmul.f32 1.0, %v1455
    %v1457 = vrcp.pop %v1379
    %v1458 = vmul.f32 %v1379, %v1457
    %v1459 = vsub.f32 1.0, %v1458
    %v1460 = vmul.f32 %v1457, %v1459
    %v1461 = vadd.f32 %v1457, %v1460
    %vm1462 = vweird.f32 %v1379
    %vm1463 = vweird.f32 %v1457
    %vm1464 = vmor %vm1462, %vm1463
    %v1465 = vsel %vm1464, %v1457, %v1461
    %v1466 = vand.u32 2147483647, %v1379
    %vm1467 = vcmp.eq.f32.partialorder %v1466, 8.507059e+37
    %v1468 = vand.u32 %v1379, 2147483648
    %v1469 = vor.u32 1.1754944e-38, %v1468
    %v1470 = vsel %vm1467, %v1469, %v1465
    %v1471 = vmul.f32 1.0, %v1470
    %v1472 = vrcp.pop %v1380
    %v1473 = vmul.f32 %v1380, %v1472
    %v1474 = vsub.f32 1.0, %v1473
    %v1475 = vmul.f32 %v1472, %v1474
    %v1476 = vadd.f32 %v1472, %v1475
    %vm1477 = vweird.f32 %v1380
    %vm1478 = vweird.f32 %v1472
    %vm1479 = vmor %vm1477, %vm1478
    %v1480 = vsel %vm1479, %v1472, %v1476
    %v1481 = vand.u32 2147483647, %v1380
    %vm1482 = vcmp.eq.f32.partialorder %v1481, 8.507059e+37
    %v1483 = vand.u32 %v1380, 2147483648
    %v1484 = vor.u32 1.1754944e-38, %v1483
    %v1485 = vsel %vm1482, %v1484, %v1480
    %v1486 = vmul.f32 1.0, %v1485
    %v1487 = vrcp.pop %v1381
    %v1488 = vmul.f32 %v1381, %v1487
    %v1489 = vsub.f32 1.0, %v1488
    %v1490 = vmul.f32 %v1487, %v1489
    %v1491 = vadd.f32 %v1487, %v1490
    %vm1492 = vweird.f32 %v1381
    %vm1493 = vweird.f32 %v1487
    %vm1494 = vmor %vm1492, %vm1493
    %v1495 = vsel %vm1494, %v1487, %v1491
    %v1496 = vand.u32 2147483647, %v1381
    %vm1497 = vcmp.eq.f32.partialorder %v1496, 8.507059e+37
    %v1498 = vand.u32 %v1381, 2147483648
    %v1499 = vor.u32 1.1754944e-38, %v1498
    %v1500 = vsel %vm1497, %v1499, %v1495
    %v1501 = vmul.f32 1.0, %v1500
    %v1502 = vtanh.pop %v1342
    %v1503 = vtanh.pop %v1343
    %v1504 = vtanh.pop %v1344
    %v1505 = vtanh.pop %v1345
    %v1506 = vtanh.pop %v1346
    %v1507 = vtanh.pop %v1347
    %v1508 = vtanh.pop %v1348
    %v1509 = vtanh.pop %v1349
    %v1510 = vmul.f32 %v1396, %v1216
    %v1511 = vmul.f32 %v1411, %v1217
    %v1512 = vmul.f32 %v1426, %v1218
    %v1513 = vmul.f32 %v1441, %v1219
    %v1514 = vmul.f32 %v1456, %v1220
    %v1515 = vmul.f32 %v1471, %v1221
    %v1516 = vmul.f32 %v1486, %v1222
    %v1517 = vmul.f32 %v1501, %v1223
    %1526 = vrot.lane.b32.xlu0 %v1502, 64
    %v1527 = vpop.permute.xlu0 %1526
    %1528 = vrot.lane.b32.xlu0 %v1503, 64
    %v1529 = vpop.permute.xlu0 %1528
    %1530 = vrot.lane.b32.xlu0 %v1504, 64
    %v1531 = vpop.permute.xlu0 %1530
    %1532 = vrot.lane.b32.xlu0 %v1505, 64
    %v1533 = vpop.permute.xlu0 %1532
    %1534 = vrot.lane.b32.xlu0 %v1506, 64
    %v1535 = vpop.permute.xlu0 %1534
    %1536 = vrot.lane.b32.xlu0 %v1507, 64
    %v1537 = vpop.permute.xlu0 %1536
    %1538 = vrot.lane.b32.xlu0 %v1508, 64
    %v1539 = vpop.permute.xlu0 %1538
    %1540 = vrot.lane.b32.xlu0 %v1509, 64
    %v1541 = vpop.permute.xlu0 %1540
    %v1550 = vmul.f32 %v1396, %v1527
    %v1551 = vmul.f32 %v1411, %v1529
    %v1552 = vmul.f32 %v1426, %v1531
    %v1553 = vmul.f32 %v1441, %v1533
    %v1554 = vmul.f32 %v1456, %v1535
    %v1555 = vmul.f32 %v1471, %v1537
    %v1556 = vmul.f32 %v1486, %v1539
    %v1557 = vmul.f32 %v1501, %v1541
    %1566 = vrot.lane.b32.xlu0 %v1550, 32
    %v1567 = vpop.permute.xlu0 %1566
    %1568 = vrot.lane.b32.xlu0 %v1551, 32
    %v1569 = vpop.permute.xlu0 %1568
    %1570 = vrot.lane.b32.xlu0 %v1552, 32
    %v1571 = vpop.permute.xlu0 %1570
    %1572 = vrot.lane.b32.xlu0 %v1553, 32
    %v1573 = vpop.permute.xlu0 %1572
    %1574 = vrot.lane.b32.xlu0 %v1554, 32
    %v1575 = vpop.permute.xlu0 %1574
    %1576 = vrot.lane.b32.xlu0 %v1555, 32
    %v1577 = vpop.permute.xlu0 %1576
    %1578 = vrot.lane.b32.xlu0 %v1556, 32
    %v1579 = vpop.permute.xlu0 %1578
    %1580 = vrot.lane.b32.xlu0 %v1557, 32
    %v1581 = vpop.permute.xlu0 %1580
    %v1590 = vadd.f32 %v1510, %v1567
    %v1591 = vadd.f32 %v1511, %v1569
    %v1592 = vadd.f32 %v1512, %v1571
    %v1593 = vadd.f32 %v1513, %v1573
    %v1594 = vadd.f32 %v1514, %v1575
    %v1595 = vadd.f32 %v1515, %v1577
    %v1596 = vadd.f32 %v1516, %v1579
    %v1597 = vadd.f32 %v1517, %v1581
    %v1598 = vtanh.pop %v1590
    %v1599 = vtanh.pop %v1591
    %v1600 = vtanh.pop %v1592
    %v1601 = vtanh.pop %v1593
    %v1602 = vtanh.pop %v1594
    %v1603 = vtanh.pop %v1595
    %v1604 = vtanh.pop %v1596
    %v1605 = vtanh.pop %v1597
    %1614 = vrot.lane.b32.xlu0 %v1598, 64
    %v1615 = vpop.permute.xlu0 %1614
    %1616 = vrot.lane.b32.xlu0 %v1599, 64
    %v1617 = vpop.permute.xlu0 %1616
    %1618 = vrot.lane.b32.xlu0 %v1600, 64
    %v1619 = vpop.permute.xlu0 %1618
    %1620 = vrot.lane.b32.xlu0 %v1601, 64
    %v1621 = vpop.permute.xlu0 %1620
    %1622 = vrot.lane.b32.xlu0 %v1602, 64
    %v1623 = vpop.permute.xlu0 %1622
    %1624 = vrot.lane.b32.xlu0 %v1603, 64
    %v1625 = vpop.permute.xlu0 %1624
    %1626 = vrot.lane.b32.xlu0 %v1604, 64
    %v1627 = vpop.permute.xlu0 %1626
    %1628 = vrot.lane.b32.xlu0 %v1605, 64
    %v1629 = vpop.permute.xlu0 %1628
    %v1638 = vmul.f32 %v1396, %v1615
    %v1639 = vmul.f32 %v1411, %v1617
    %v1640 = vmul.f32 %v1426, %v1619
    %v1641 = vmul.f32 %v1441, %v1621
    %v1642 = vmul.f32 %v1456, %v1623
    %v1643 = vmul.f32 %v1471, %v1625
    %v1644 = vmul.f32 %v1486, %v1627
    %v1645 = vmul.f32 %v1501, %v1629
    %v1646 = vld [vmem:[#allocation2 + $0x4] sm:$0x1]
    %v1647 = vld [vmem:[#allocation2 + $0xc] sm:$0x1]
    %v1648 = vld [vmem:[#allocation2 + $0x14] sm:$0x1]
    %v1649 = vld [vmem:[#allocation2 + $0x1c] sm:$0x1]
    %v1650 = vld [vmem:[#allocation2 + $0x24] sm:$0x1]
    %v1651 = vld [vmem:[#allocation2 + $0x2c] sm:$0x1]
    %v1652 = vld [vmem:[#allocation2 + $0x34] sm:$0x1]
    %v1653 = vld [vmem:[#allocation2 + $0x3c] sm:$0x1]
    %v1662 = vrot.slane %v1639, 7
    %v1663 = vsel %vm534, %v1662, %v1638
    %v1664 = vrot.slane %v1640, 6
    %v1665 = vsel %vm537, %v1664, %v1663
    %v1666 = vrot.slane %v1641, 5
    %v1667 = vsel %vm540, %v1666, %v1665
    %v1668 = vrot.slane %v1642, 4
    %v1669 = vsel %vm543, %v1668, %v1667
    %v1670 = vrot.slane %v1643, 3
    %v1671 = vsel %vm546, %v1670, %v1669
    %v1672 = vrot.slane %v1644, 2
    %v1673 = vsel %vm549, %v1672, %v1671
    %v1674 = vrot.slane %v1645, 1
    %v1675 = vsel %vm552, %v1674, %v1673
    %1676 = vrot.lane.b32.xlu0 %v1675, 32
    %v1677 = vpop.permute.xlu0 %1676
    %v1678 = vsel %vm173, %v1677, 0
    %1680 = vmatpush.msra.mxu0 0.0
    %1681 = vmatpush.msra.mxu0 0.0
    %1682 = vmatpush.msra.mxu0 0.0
    %1683 = vmatpush.msra.mxu0 0.0
    %1684 = vmatpush.msra.mxu0 0.0
    %1685 = vmatpush.msra.mxu0 0.0
    %1686 = vmatpush.msra.mxu0 0.0
    %1687 = vmatpush.msra.mxu0 0.0
    %1688 = vmatpush.msra.mxu0 0.0
    %1689 = vmatpush.msra.mxu0 0.0
    %1690 = vmatpush.msra.mxu0 0.0
    %1691 = vmatpush.msra.mxu0 0.0
    %1692 = vmatpush.msra.mxu0 %v164
    %1693 = vmatpush.msra.mxu0 %v163
    %1694 = vmatpush.msra.mxu0 %v162
    %1695 = vmatpush.msra.mxu0 %v161
    %1696 = vmatmul.f32.gmra.mxu0 %v1678
    %v1697 = vpop.f32.mrf.mxu0
    %v1698 = vadd.f32 0.0, %v1697
    %1699 = vdwg.mxu0
    %v1701 = vrot.slane %v1698, 1
    %v1702 = vrot.slane %v1698, 2
    %v1703 = vrot.slane %v1698, 3
    %v1704 = vrot.slane %v1698, 4
    %v1705 = vrot.slane %v1698, 5
    %v1706 = vrot.slane %v1698, 6
    %v1707 = vrot.slane %v1698, 7
    %v1716 = vadd.f32 %v1646, %v1698
    %v1717 = vadd.f32 %v1647, %v1701
    %v1718 = vadd.f32 %v1648, %v1702
    %v1719 = vadd.f32 %v1649, %v1703
    %v1720 = vadd.f32 %v1650, %v1704
    %v1721 = vadd.f32 %v1651, %v1705
    %v1722 = vadd.f32 %v1652, %v1706
    %v1723 = vadd.f32 %v1653, %v1707
    %v1724 = vxor.u32 %v1716, 2147483648
    %v1725 = vxor.u32 %v1717, 2147483648
    %v1726 = vxor.u32 %v1718, 2147483648
    %v1727 = vxor.u32 %v1719, 2147483648
    %v1728 = vxor.u32 %v1720, 2147483648
    %v1729 = vxor.u32 %v1721, 2147483648
    %v1730 = vxor.u32 %v1722, 2147483648
    %v1731 = vxor.u32 %v1723, 2147483648
    %v1732 = vmul.f32 %v1724, 1.442695
    %v1733 = vpow.pop %v1732
    %v1734 = vmul.f32 %v1725, 1.442695
    %v1735 = vpow.pop %v1734
    %v1736 = vmul.f32 %v1726, 1.442695
    %v1737 = vpow.pop %v1736
    %v1738 = vmul.f32 %v1727, 1.442695
    %v1739 = vpow.pop %v1738
    %v1740 = vmul.f32 %v1728, 1.442695
    %v1741 = vpow.pop %v1740
    %v1742 = vmul.f32 %v1729, 1.442695
    %v1743 = vpow.pop %v1742
    %v1744 = vmul.f32 %v1730, 1.442695
    %v1745 = vpow.pop %v1744
    %v1746 = vmul.f32 %v1731, 1.442695
    %v1747 = vpow.pop %v1746
    %v1748 = vadd.f32 %v1733, 1.0
    %v1749 = vadd.f32 %v1735, 1.0
    %v1750 = vadd.f32 %v1737, 1.0
    %v1751 = vadd.f32 %v1739, 1.0
    %v1752 = vadd.f32 %v1741, 1.0
    %v1753 = vadd.f32 %v1743, 1.0
    %v1754 = vadd.f32 %v1745, 1.0
    %v1755 = vadd.f32 %v1747, 1.0
    %v1756 = vrcp.pop %v1748
    %v1757 = vmul.f32 %v1748, %v1756
    %v1758 = vsub.f32 1.0, %v1757
    %v1759 = vmul.f32 %v1756, %v1758
    %v1760 = vadd.f32 %v1756, %v1759
    %vm1761 = vweird.f32 %v1748
    %vm1762 = vweird.f32 %v1756
    %vm1763 = vmor %vm1761, %vm1762
    %v1764 = vsel %vm1763, %v1756, %v1760
    %v1765 = vand.u32 2147483647, %v1748
    %vm1766 = vcmp.eq.f32.partialorder %v1765, 8.507059e+37
    %v1767 = vand.u32 %v1748, 2147483648
    %v1768 = vor.u32 1.1754944e-38, %v1767
    %v1769 = vsel %vm1766, %v1768, %v1764
    %v1770 = vmul.f32 1.0, %v1769
    %v1771 = vrcp.pop %v1749
    %v1772 = vmul.f32 %v1749, %v1771
    %v1773 = vsub.f32 1.0, %v1772
    %v1774 = vmul.f32 %v1771, %v1773
    %v1775 = vadd.f32 %v1771, %v1774
    %vm1776 = vweird.f32 %v1749
    %vm1777 = vweird.f32 %v1771
    %vm1778 = vmor %vm1776, %vm1777
    %v1779 = vsel %vm1778, %v1771, %v1775
    %v1780 = vand.u32 2147483647, %v1749
    %vm1781 = vcmp.eq.f32.partialorder %v1780, 8.507059e+37
    %v1782 = vand.u32 %v1749, 2147483648
    %v1783 = vor.u32 1.1754944e-38, %v1782
    %v1784 = vsel %vm1781, %v1783, %v1779
    %v1785 = vmul.f32 1.0, %v1784
    %v1786 = vrcp.pop %v1750
    %v1787 = vmul.f32 %v1750, %v1786
    %v1788 = vsub.f32 1.0, %v1787
    %v1789 = vmul.f32 %v1786, %v1788
    %v1790 = vadd.f32 %v1786, %v1789
    %vm1791 = vweird.f32 %v1750
    %vm1792 = vweird.f32 %v1786
    %vm1793 = vmor %vm1791, %vm1792
    %v1794 = vsel %vm1793, %v1786, %v1790
    %v1795 = vand.u32 2147483647, %v1750
    %vm1796 = vcmp.eq.f32.partialorder %v1795, 8.507059e+37
    %v1797 = vand.u32 %v1750, 2147483648
    %v1798 = vor.u32 1.1754944e-38, %v1797
    %v1799 = vsel %vm1796, %v1798, %v1794
    %v1800 = vmul.f32 1.0, %v1799
    %v1801 = vrcp.pop %v1751
    %v1802 = vmul.f32 %v1751, %v1801
    %v1803 = vsub.f32 1.0, %v1802
    %v1804 = vmul.f32 %v1801, %v1803
    %v1805 = vadd.f32 %v1801, %v1804
    %vm1806 = vweird.f32 %v1751
    %vm1807 = vweird.f32 %v1801
    %vm1808 = vmor %vm1806, %vm1807
    %v1809 = vsel %vm1808, %v1801, %v1805
    %v1810 = vand.u32 2147483647, %v1751
    %vm1811 = vcmp.eq.f32.partialorder %v1810, 8.507059e+37
    %v1812 = vand.u32 %v1751, 2147483648
    %v1813 = vor.u32 1.1754944e-38, %v1812
    %v1814 = vsel %vm1811, %v1813, %v1809
    %v1815 = vmul.f32 1.0, %v1814
    %v1816 = vrcp.pop %v1752
    %v1817 = vmul.f32 %v1752, %v1816
    %v1818 = vsub.f32 1.0, %v1817
    %v1819 = vmul.f32 %v1816, %v1818
    %v1820 = vadd.f32 %v1816, %v1819
    %vm1821 = vweird.f32 %v1752
    %vm1822 = vweird.f32 %v1816
    %vm1823 = vmor %vm1821, %vm1822
    %v1824 = vsel %vm1823, %v1816, %v1820
    %v1825 = vand.u32 2147483647, %v1752
    %vm1826 = vcmp.eq.f32.partialorder %v1825, 8.507059e+37
    %v1827 = vand.u32 %v1752, 2147483648
    %v1828 = vor.u32 1.1754944e-38, %v1827
    %v1829 = vsel %vm1826, %v1828, %v1824
    %v1830 = vmul.f32 1.0, %v1829
    %v1831 = vrcp.pop %v1753
    %v1832 = vmul.f32 %v1753, %v1831
    %v1833 = vsub.f32 1.0, %v1832
    %v1834 = vmul.f32 %v1831, %v1833
    %v1835 = vadd.f32 %v1831, %v1834
    %vm1836 = vweird.f32 %v1753
    %vm1837 = vweird.f32 %v1831
    %vm1838 = vmor %vm1836, %vm1837
    %v1839 = vsel %vm1838, %v1831, %v1835
    %v1840 = vand.u32 2147483647, %v1753
    %vm1841 = vcmp.eq.f32.partialorder %v1840, 8.507059e+37
    %v1842 = vand.u32 %v1753, 2147483648
    %v1843 = vor.u32 1.1754944e-38, %v1842
    %v1844 = vsel %vm1841, %v1843, %v1839
    %v1845 = vmul.f32 1.0, %v1844
    %v1846 = vrcp.pop %v1754
    %v1847 = vmul.f32 %v1754, %v1846
    %v1848 = vsub.f32 1.0, %v1847
    %v1849 = vmul.f32 %v1846, %v1848
    %v1850 = vadd.f32 %v1846, %v1849
    %vm1851 = vweird.f32 %v1754
    %vm1852 = vweird.f32 %v1846
    %vm1853 = vmor %vm1851, %vm1852
    %v1854 = vsel %vm1853, %v1846, %v1850
    %v1855 = vand.u32 2147483647, %v1754
    %vm1856 = vcmp.eq.f32.partialorder %v1855, 8.507059e+37
    %v1857 = vand.u32 %v1754, 2147483648
    %v1858 = vor.u32 1.1754944e-38, %v1857
    %v1859 = vsel %vm1856, %v1858, %v1854
    %v1860 = vmul.f32 1.0, %v1859
    %v1861 = vrcp.pop %v1755
    %v1862 = vmul.f32 %v1755, %v1861
    %v1863 = vsub.f32 1.0, %v1862
    %v1864 = vmul.f32 %v1861, %v1863
    %v1865 = vadd.f32 %v1861, %v1864
    %vm1866 = vweird.f32 %v1755
    %vm1867 = vweird.f32 %v1861
    %vm1868 = vmor %vm1866, %vm1867
    %v1869 = vsel %vm1868, %v1861, %v1865
    %v1870 = vand.u32 2147483647, %v1755
    %vm1871 = vcmp.eq.f32.partialorder %v1870, 8.507059e+37
    %v1872 = vand.u32 %v1755, 2147483648
    %v1873 = vor.u32 1.1754944e-38, %v1872
    %v1874 = vsel %vm1871, %v1873, %v1869
    %v1875 = vmul.f32 1.0, %v1874
    %v1876 = vtanh.pop %v1716
    %v1877 = vtanh.pop %v1717
    %v1878 = vtanh.pop %v1718
    %v1879 = vtanh.pop %v1719
    %v1880 = vtanh.pop %v1720
    %v1881 = vtanh.pop %v1721
    %v1882 = vtanh.pop %v1722
    %v1883 = vtanh.pop %v1723
    %v1884 = vmul.f32 %v1770, %v1590
    %v1885 = vmul.f32 %v1785, %v1591
    %v1886 = vmul.f32 %v1800, %v1592
    %v1887 = vmul.f32 %v1815, %v1593
    %v1888 = vmul.f32 %v1830, %v1594
    %v1889 = vmul.f32 %v1845, %v1595
    %v1890 = vmul.f32 %v1860, %v1596
    %v1891 = vmul.f32 %v1875, %v1597
    %1900 = vrot.lane.b32.xlu0 %v1876, 64
    %v1901 = vpop.permute.xlu0 %1900
    %1902 = vrot.lane.b32.xlu0 %v1877, 64
    %v1903 = vpop.permute.xlu0 %1902
    %1904 = vrot.lane.b32.xlu0 %v1878, 64
    %v1905 = vpop.permute.xlu0 %1904
    %1906 = vrot.lane.b32.xlu0 %v1879, 64
    %v1907 = vpop.permute.xlu0 %1906
    %1908 = vrot.lane.b32.xlu0 %v1880, 64
    %v1909 = vpop.permute.xlu0 %1908
    %1910 = vrot.lane.b32.xlu0 %v1881, 64
    %v1911 = vpop.permute.xlu0 %1910
    %1912 = vrot.lane.b32.xlu0 %v1882, 64
    %v1913 = vpop.permute.xlu0 %1912
    %1914 = vrot.lane.b32.xlu0 %v1883, 64
    %v1915 = vpop.permute.xlu0 %1914
    %v1924 = vmul.f32 %v1770, %v1901
    %v1925 = vmul.f32 %v1785, %v1903
    %v1926 = vmul.f32 %v1800, %v1905
    %v1927 = vmul.f32 %v1815, %v1907
    %v1928 = vmul.f32 %v1830, %v1909
    %v1929 = vmul.f32 %v1845, %v1911
    %v1930 = vmul.f32 %v1860, %v1913
    %v1931 = vmul.f32 %v1875, %v1915
    %1940 = vrot.lane.b32.xlu0 %v1924, 32
    %v1941 = vpop.permute.xlu0 %1940
    %1942 = vrot.lane.b32.xlu0 %v1925, 32
    %v1943 = vpop.permute.xlu0 %1942
    %1944 = vrot.lane.b32.xlu0 %v1926, 32
    %v1945 = vpop.permute.xlu0 %1944
    %1946 = vrot.lane.b32.xlu0 %v1927, 32
    %v1947 = vpop.permute.xlu0 %1946
    %1948 = vrot.lane.b32.xlu0 %v1928, 32
    %v1949 = vpop.permute.xlu0 %1948
    %1950 = vrot.lane.b32.xlu0 %v1929, 32
    %v1951 = vpop.permute.xlu0 %1950
    %1952 = vrot.lane.b32.xlu0 %v1930, 32
    %v1953 = vpop.permute.xlu0 %1952
    %1954 = vrot.lane.b32.xlu0 %v1931, 32
    %v1955 = vpop.permute.xlu0 %1954
    %v1964 = vadd.f32 %v1884, %v1941
    %v1965 = vadd.f32 %v1885, %v1943
    %v1966 = vadd.f32 %v1886, %v1945
    %v1967 = vadd.f32 %v1887, %v1947
    %v1968 = vadd.f32 %v1888, %v1949
    %v1969 = vadd.f32 %v1889, %v1951
    %v1970 = vadd.f32 %v1890, %v1953
    %v1971 = vadd.f32 %v1891, %v1955
    %v1972 = vtanh.pop %v1964
    %v1973 = vtanh.pop %v1965
    %v1974 = vtanh.pop %v1966
    %v1975 = vtanh.pop %v1967
    %v1976 = vtanh.pop %v1968
    %v1977 = vtanh.pop %v1969
    %v1978 = vtanh.pop %v1970
    %v1979 = vtanh.pop %v1971
    %1988 = vrot.lane.b32.xlu0 %v1972, 64
    %v1989 = vpop.permute.xlu0 %1988
    %1990 = vrot.lane.b32.xlu0 %v1973, 64
    %v1991 = vpop.permute.xlu0 %1990
    %1992 = vrot.lane.b32.xlu0 %v1974, 64
    %v1993 = vpop.permute.xlu0 %1992
    %1994 = vrot.lane.b32.xlu0 %v1975, 64
    %v1995 = vpop.permute.xlu0 %1994
    %1996 = vrot.lane.b32.xlu0 %v1976, 64
    %v1997 = vpop.permute.xlu0 %1996
    %1998 = vrot.lane.b32.xlu0 %v1977, 64
    %v1999 = vpop.permute.xlu0 %1998
    %2000 = vrot.lane.b32.xlu0 %v1978, 64
    %v2001 = vpop.permute.xlu0 %2000
    %2002 = vrot.lane.b32.xlu0 %v1979, 64
    %v2003 = vpop.permute.xlu0 %2002
    %v2012 = vmul.f32 %v1770, %v1989
    %v2013 = vmul.f32 %v1785, %v1991
    %v2014 = vmul.f32 %v1800, %v1993
    %v2015 = vmul.f32 %v1815, %v1995
    %v2016 = vmul.f32 %v1830, %v1997
    %v2017 = vmul.f32 %v1845, %v1999
    %v2018 = vmul.f32 %v1860, %v2001
    %v2019 = vmul.f32 %v1875, %v2003
    %v2020 = vld [vmem:[#allocation2 + $0x5] sm:$0x1]
    %v2021 = vld [vmem:[#allocation2 + $0xd] sm:$0x1]
    %v2022 = vld [vmem:[#allocation2 + $0x15] sm:$0x1]
    %v2023 = vld [vmem:[#allocation2 + $0x1d] sm:$0x1]
    %v2024 = vld [vmem:[#allocation2 + $0x25] sm:$0x1]
    %v2025 = vld [vmem:[#allocation2 + $0x2d] sm:$0x1]
    %v2026 = vld [vmem:[#allocation2 + $0x35] sm:$0x1]
    %v2027 = vld [vmem:[#allocation2 + $0x3d] sm:$0x1]
    %v2036 = vrot.slane %v2013, 7
    %v2037 = vsel %vm534, %v2036, %v2012
    %v2038 = vrot.slane %v2014, 6
    %v2039 = vsel %vm537, %v2038, %v2037
    %v2040 = vrot.slane %v2015, 5
    %v2041 = vsel %vm540, %v2040, %v2039
    %v2042 = vrot.slane %v2016, 4
    %v2043 = vsel %vm543, %v2042, %v2041
    %v2044 = vrot.slane %v2017, 3
    %v2045 = vsel %vm546, %v2044, %v2043
    %v2046 = vrot.slane %v2018, 2
    %v2047 = vsel %vm549, %v2046, %v2045
    %v2048 = vrot.slane %v2019, 1
    %v2049 = vsel %vm552, %v2048, %v2047
    %2050 = vrot.lane.b32.xlu0 %v2049, 32
    %v2051 = vpop.permute.xlu0 %2050
    %v2052 = vsel %vm173, %v2051, 0
    %2054 = vmatpush.msra.mxu0 0.0
    %2055 = vmatpush.msra.mxu0 0.0
    %2056 = vmatpush.msra.mxu0 0.0
    %2057 = vmatpush.msra.mxu0 0.0
    %2058 = vmatpush.msra.mxu0 0.0
    %2059 = vmatpush.msra.mxu0 0.0
    %2060 = vmatpush.msra.mxu0 0.0
    %2061 = vmatpush.msra.mxu0 0.0
    %2062 = vmatpush.msra.mxu0 0.0
    %2063 = vmatpush.msra.mxu0 0.0
    %2064 = vmatpush.msra.mxu0 0.0
    %2065 = vmatpush.msra.mxu0 0.0
    %2066 = vmatpush.msra.mxu0 %v164
    %2067 = vmatpush.msra.mxu0 %v163
    %2068 = vmatpush.msra.mxu0 %v162
    %2069 = vmatpush.msra.mxu0 %v161
    %2070 = vmatmul.f32.gmra.mxu0 %v2052
    %v2071 = vpop.f32.mrf.mxu0
    %v2072 = vadd.f32 0.0, %v2071
    %2073 = vdwg.mxu0
    %v2075 = vrot.slane %v2072, 1
    %v2076 = vrot.slane %v2072, 2
    %v2077 = vrot.slane %v2072, 3
    %v2078 = vrot.slane %v2072, 4
    %v2079 = vrot.slane %v2072, 5
    %v2080 = vrot.slane %v2072, 6
    %v2081 = vrot.slane %v2072, 7
    %v2090 = vadd.f32 %v2020, %v2072
    %v2091 = vadd.f32 %v2021, %v2075
    %v2092 = vadd.f32 %v2022, %v2076
    %v2093 = vadd.f32 %v2023, %v2077
    %v2094 = vadd.f32 %v2024, %v2078
    %v2095 = vadd.f32 %v2025, %v2079
    %v2096 = vadd.f32 %v2026, %v2080
    %v2097 = vadd.f32 %v2027, %v2081
    %v2098 = vxor.u32 %v2090, 2147483648
    %v2099 = vxor.u32 %v2091, 2147483648
    %v2100 = vxor.u32 %v2092, 2147483648
    %v2101 = vxor.u32 %v2093, 2147483648
    %v2102 = vxor.u32 %v2094, 2147483648
    %v2103 = vxor.u32 %v2095, 2147483648
    %v2104 = vxor.u32 %v2096, 2147483648
    %v2105 = vxor.u32 %v2097, 2147483648
    %v2106 = vmul.f32 %v2098, 1.442695
    %v2107 = vpow.pop %v2106
    %v2108 = vmul.f32 %v2099, 1.442695
    %v2109 = vpow.pop %v2108
    %v2110 = vmul.f32 %v2100, 1.442695
    %v2111 = vpow.pop %v2110
    %v2112 = vmul.f32 %v2101, 1.442695
    %v2113 = vpow.pop %v2112
    %v2114 = vmul.f32 %v2102, 1.442695
    %v2115 = vpow.pop %v2114
    %v2116 = vmul.f32 %v2103, 1.442695
    %v2117 = vpow.pop %v2116
    %v2118 = vmul.f32 %v2104, 1.442695
    %v2119 = vpow.pop %v2118
    %v2120 = vmul.f32 %v2105, 1.442695
    %v2121 = vpow.pop %v2120
    %v2122 = vadd.f32 %v2107, 1.0
    %v2123 = vadd.f32 %v2109, 1.0
    %v2124 = vadd.f32 %v2111, 1.0
    %v2125 = vadd.f32 %v2113, 1.0
    %v2126 = vadd.f32 %v2115, 1.0
    %v2127 = vadd.f32 %v2117, 1.0
    %v2128 = vadd.f32 %v2119, 1.0
    %v2129 = vadd.f32 %v2121, 1.0
    %v2130 = vrcp.pop %v2122
    %v2131 = vmul.f32 %v2122, %v2130
    %v2132 = vsub.f32 1.0, %v2131
    %v2133 = vmul.f32 %v2130, %v2132
    %v2134 = vadd.f32 %v2130, %v2133
    %vm2135 = vweird.f32 %v2122
    %vm2136 = vweird.f32 %v2130
    %vm2137 = vmor %vm2135, %vm2136
    %v2138 = vsel %vm2137, %v2130, %v2134
    %v2139 = vand.u32 2147483647, %v2122
    %vm2140 = vcmp.eq.f32.partialorder %v2139, 8.507059e+37
    %v2141 = vand.u32 %v2122, 2147483648
    %v2142 = vor.u32 1.1754944e-38, %v2141
    %v2143 = vsel %vm2140, %v2142, %v2138
    %v2144 = vmul.f32 1.0, %v2143
    %v2145 = vrcp.pop %v2123
    %v2146 = vmul.f32 %v2123, %v2145
    %v2147 = vsub.f32 1.0, %v2146
    %v2148 = vmul.f32 %v2145, %v2147
    %v2149 = vadd.f32 %v2145, %v2148
    %vm2150 = vweird.f32 %v2123
    %vm2151 = vweird.f32 %v2145
    %vm2152 = vmor %vm2150, %vm2151
    %v2153 = vsel %vm2152, %v2145, %v2149
    %v2154 = vand.u32 2147483647, %v2123
    %vm2155 = vcmp.eq.f32.partialorder %v2154, 8.507059e+37
    %v2156 = vand.u32 %v2123, 2147483648
    %v2157 = vor.u32 1.1754944e-38, %v2156
    %v2158 = vsel %vm2155, %v2157, %v2153
    %v2159 = vmul.f32 1.0, %v2158
    %v2160 = vrcp.pop %v2124
    %v2161 = vmul.f32 %v2124, %v2160
    %v2162 = vsub.f32 1.0, %v2161
    %v2163 = vmul.f32 %v2160, %v2162
    %v2164 = vadd.f32 %v2160, %v2163
    %vm2165 = vweird.f32 %v2124
    %vm2166 = vweird.f32 %v2160
    %vm2167 = vmor %vm2165, %vm2166
    %v2168 = vsel %vm2167, %v2160, %v2164
    %v2169 = vand.u32 2147483647, %v2124
    %vm2170 = vcmp.eq.f32.partialorder %v2169, 8.507059e+37
    %v2171 = vand.u32 %v2124, 2147483648
    %v2172 = vor.u32 1.1754944e-38, %v2171
    %v2173 = vsel %vm2170, %v2172, %v2168
    %v2174 = vmul.f32 1.0, %v2173
    %v2175 = vrcp.pop %v2125
    %v2176 = vmul.f32 %v2125, %v2175
    %v2177 = vsub.f32 1.0, %v2176
    %v2178 = vmul.f32 %v2175, %v2177
    %v2179 = vadd.f32 %v2175, %v2178
    %vm2180 = vweird.f32 %v2125
    %vm2181 = vweird.f32 %v2175
    %vm2182 = vmor %vm2180, %vm2181
    %v2183 = vsel %vm2182, %v2175, %v2179
    %v2184 = vand.u32 2147483647, %v2125
    %vm2185 = vcmp.eq.f32.partialorder %v2184, 8.507059e+37
    %v2186 = vand.u32 %v2125, 2147483648
    %v2187 = vor.u32 1.1754944e-38, %v2186
    %v2188 = vsel %vm2185, %v2187, %v2183
    %v2189 = vmul.f32 1.0, %v2188
    %v2190 = vrcp.pop %v2126
    %v2191 = vmul.f32 %v2126, %v2190
    %v2192 = vsub.f32 1.0, %v2191
    %v2193 = vmul.f32 %v2190, %v2192
    %v2194 = vadd.f32 %v2190, %v2193
    %vm2195 = vweird.f32 %v2126
    %vm2196 = vweird.f32 %v2190
    %vm2197 = vmor %vm2195, %vm2196
    %v2198 = vsel %vm2197, %v2190, %v2194
    %v2199 = vand.u32 2147483647, %v2126
    %vm2200 = vcmp.eq.f32.partialorder %v2199, 8.507059e+37
    %v2201 = vand.u32 %v2126, 2147483648
    %v2202 = vor.u32 1.1754944e-38, %v2201
    %v2203 = vsel %vm2200, %v2202, %v2198
    %v2204 = vmul.f32 1.0, %v2203
    %v2205 = vrcp.pop %v2127
    %v2206 = vmul.f32 %v2127, %v2205
    %v2207 = vsub.f32 1.0, %v2206
    %v2208 = vmul.f32 %v2205, %v2207
    %v2209 = vadd.f32 %v2205, %v2208
    %vm2210 = vweird.f32 %v2127
    %vm2211 = vweird.f32 %v2205
    %vm2212 = vmor %vm2210, %vm2211
    %v2213 = vsel %vm2212, %v2205, %v2209
    %v2214 = vand.u32 2147483647, %v2127
    %vm2215 = vcmp.eq.f32.partialorder %v2214, 8.507059e+37
    %v2216 = vand.u32 %v2127, 2147483648
    %v2217 = vor.u32 1.1754944e-38, %v2216
    %v2218 = vsel %vm2215, %v2217, %v2213
    %v2219 = vmul.f32 1.0, %v2218
    %v2220 = vrcp.pop %v2128
    %v2221 = vmul.f32 %v2128, %v2220
    %v2222 = vsub.f32 1.0, %v2221
    %v2223 = vmul.f32 %v2220, %v2222
    %v2224 = vadd.f32 %v2220, %v2223
    %vm2225 = vweird.f32 %v2128
    %vm2226 = vweird.f32 %v2220
    %vm2227 = vmor %vm2225, %vm2226
    %v2228 = vsel %vm2227, %v2220, %v2224
    %v2229 = vand.u32 2147483647, %v2128
    %vm2230 = vcmp.eq.f32.partialorder %v2229, 8.507059e+37
    %v2231 = vand.u32 %v2128, 2147483648
    %v2232 = vor.u32 1.1754944e-38, %v2231
    %v2233 = vsel %vm2230, %v2232, %v2228
    %v2234 = vmul.f32 1.0, %v2233
    %v2235 = vrcp.pop %v2129
    %v2236 = vmul.f32 %v2129, %v2235
    %v2237 = vsub.f32 1.0, %v2236
    %v2238 = vmul.f32 %v2235, %v2237
    %v2239 = vadd.f32 %v2235, %v2238
    %vm2240 = vweird.f32 %v2129
    %vm2241 = vweird.f32 %v2235
    %vm2242 = vmor %vm2240, %vm2241
    %v2243 = vsel %vm2242, %v2235, %v2239
    %v2244 = vand.u32 2147483647, %v2129
    %vm2245 = vcmp.eq.f32.partialorder %v2244, 8.507059e+37
    %v2246 = vand.u32 %v2129, 2147483648
    %v2247 = vor.u32 1.1754944e-38, %v2246
    %v2248 = vsel %vm2245, %v2247, %v2243
    %v2249 = vmul.f32 1.0, %v2248
    %v2250 = vtanh.pop %v2090
    %v2251 = vtanh.pop %v2091
    %v2252 = vtanh.pop %v2092
    %v2253 = vtanh.pop %v2093
    %v2254 = vtanh.pop %v2094
    %v2255 = vtanh.pop %v2095
    %v2256 = vtanh.pop %v2096
    %v2257 = vtanh.pop %v2097
    %v2258 = vmul.f32 %v2144, %v1964
    %v2259 = vmul.f32 %v2159, %v1965
    %v2260 = vmul.f32 %v2174, %v1966
    %v2261 = vmul.f32 %v2189, %v1967
    %v2262 = vmul.f32 %v2204, %v1968
    %v2263 = vmul.f32 %v2219, %v1969
    %v2264 = vmul.f32 %v2234, %v1970
    %v2265 = vmul.f32 %v2249, %v1971
    %2274 = vrot.lane.b32.xlu0 %v2250, 64
    %v2275 = vpop.permute.xlu0 %2274
    %2276 = vrot.lane.b32.xlu0 %v2251, 64
    %v2277 = vpop.permute.xlu0 %2276
    %2278 = vrot.lane.b32.xlu0 %v2252, 64
    %v2279 = vpop.permute.xlu0 %2278
    %2280 = vrot.lane.b32.xlu0 %v2253, 64
    %v2281 = vpop.permute.xlu0 %2280
    %2282 = vrot.lane.b32.xlu0 %v2254, 64
    %v2283 = vpop.permute.xlu0 %2282
    %2284 = vrot.lane.b32.xlu0 %v2255, 64
    %v2285 = vpop.permute.xlu0 %2284
    %2286 = vrot.lane.b32.xlu0 %v2256, 64
    %v2287 = vpop.permute.xlu0 %2286
    %2288 = vrot.lane.b32.xlu0 %v2257, 64
    %v2289 = vpop.permute.xlu0 %2288
    %v2298 = vmul.f32 %v2144, %v2275
    %v2299 = vmul.f32 %v2159, %v2277
    %v2300 = vmul.f32 %v2174, %v2279
    %v2301 = vmul.f32 %v2189, %v2281
    %v2302 = vmul.f32 %v2204, %v2283
    %v2303 = vmul.f32 %v2219, %v2285
    %v2304 = vmul.f32 %v2234, %v2287
    %v2305 = vmul.f32 %v2249, %v2289
    %2314 = vrot.lane.b32.xlu0 %v2298, 32
    %v2315 = vpop.permute.xlu0 %2314
    %2316 = vrot.lane.b32.xlu0 %v2299, 32
    %v2317 = vpop.permute.xlu0 %2316
    %2318 = vrot.lane.b32.xlu0 %v2300, 32
    %v2319 = vpop.permute.xlu0 %2318
    %2320 = vrot.lane.b32.xlu0 %v2301, 32
    %v2321 = vpop.permute.xlu0 %2320
    %2322 = vrot.lane.b32.xlu0 %v2302, 32
    %v2323 = vpop.permute.xlu0 %2322
    %2324 = vrot.lane.b32.xlu0 %v2303, 32
    %v2325 = vpop.permute.xlu0 %2324
    %2326 = vrot.lane.b32.xlu0 %v2304, 32
    %v2327 = vpop.permute.xlu0 %2326
    %2328 = vrot.lane.b32.xlu0 %v2305, 32
    %v2329 = vpop.permute.xlu0 %2328
    %v2338 = vadd.f32 %v2258, %v2315
    %v2339 = vadd.f32 %v2259, %v2317
    %v2340 = vadd.f32 %v2260, %v2319
    %v2341 = vadd.f32 %v2261, %v2321
    %v2342 = vadd.f32 %v2262, %v2323
    %v2343 = vadd.f32 %v2263, %v2325
    %v2344 = vadd.f32 %v2264, %v2327
    %v2345 = vadd.f32 %v2265, %v2329
    %v2346 = vtanh.pop %v2338
    %v2347 = vtanh.pop %v2339
    %v2348 = vtanh.pop %v2340
    %v2349 = vtanh.pop %v2341
    %v2350 = vtanh.pop %v2342
    %v2351 = vtanh.pop %v2343
    %v2352 = vtanh.pop %v2344
    %v2353 = vtanh.pop %v2345
    %2362 = vrot.lane.b32.xlu0 %v2346, 64
    %v2363 = vpop.permute.xlu0 %2362
    %2364 = vrot.lane.b32.xlu0 %v2347, 64
    %v2365 = vpop.permute.xlu0 %2364
    %2366 = vrot.lane.b32.xlu0 %v2348, 64
    %v2367 = vpop.permute.xlu0 %2366
    %2368 = vrot.lane.b32.xlu0 %v2349, 64
    %v2369 = vpop.permute.xlu0 %2368
    %2370 = vrot.lane.b32.xlu0 %v2350, 64
    %v2371 = vpop.permute.xlu0 %2370
    %2372 = vrot.lane.b32.xlu0 %v2351, 64
    %v2373 = vpop.permute.xlu0 %2372
    %2374 = vrot.lane.b32.xlu0 %v2352, 64
    %v2375 = vpop.permute.xlu0 %2374
    %2376 = vrot.lane.b32.xlu0 %v2353, 64
    %v2377 = vpop.permute.xlu0 %2376
    %v2386 = vmul.f32 %v2144, %v2363
    %v2387 = vmul.f32 %v2159, %v2365
    %v2388 = vmul.f32 %v2174, %v2367
    %v2389 = vmul.f32 %v2189, %v2369
    %v2390 = vmul.f32 %v2204, %v2371
    %v2391 = vmul.f32 %v2219, %v2373
    %v2392 = vmul.f32 %v2234, %v2375
    %v2393 = vmul.f32 %v2249, %v2377
    %v2394 = vld [vmem:[#allocation2 + $0x6] sm:$0x1]
    %v2395 = vld [vmem:[#allocation2 + $0xe] sm:$0x1]
    %v2396 = vld [vmem:[#allocation2 + $0x16] sm:$0x1]
    %v2397 = vld [vmem:[#allocation2 + $0x1e] sm:$0x1]
    %v2398 = vld [vmem:[#allocation2 + $0x26] sm:$0x1]
    %v2399 = vld [vmem:[#allocation2 + $0x2e] sm:$0x1]
    %v2400 = vld [vmem:[#allocation2 + $0x36] sm:$0x1]
    %v2401 = vld [vmem:[#allocation2 + $0x3e] sm:$0x1]
    %v2410 = vrot.slane %v2387, 7
    %v2411 = vsel %vm534, %v2410, %v2386
    %v2412 = vrot.slane %v2388, 6
    %v2413 = vsel %vm537, %v2412, %v2411
    %v2414 = vrot.slane %v2389, 5
    %v2415 = vsel %vm540, %v2414, %v2413
    %v2416 = vrot.slane %v2390, 4
    %v2417 = vsel %vm543, %v2416, %v2415
    %v2418 = vrot.slane %v2391, 3
    %v2419 = vsel %vm546, %v2418, %v2417
    %v2420 = vrot.slane %v2392, 2
    %v2421 = vsel %vm549, %v2420, %v2419
    %v2422 = vrot.slane %v2393, 1
    %v2423 = vsel %vm552, %v2422, %v2421
    %2424 = vrot.lane.b32.xlu0 %v2423, 32
    %v2425 = vpop.permute.xlu0 %2424
    %v2426 = vsel %vm173, %v2425, 0
    %2428 = vmatpush.msra.mxu0 0.0
    %2429 = vmatpush.msra.mxu0 0.0
    %2430 = vmatpush.msra.mxu0 0.0
    %2431 = vmatpush.msra.mxu0 0.0
    %2432 = vmatpush.msra.mxu0 0.0
    %2433 = vmatpush.msra.mxu0 0.0
    %2434 = vmatpush.msra.mxu0 0.0
    %2435 = vmatpush.msra.mxu0 0.0
    %2436 = vmatpush.msra.mxu0 0.0
    %2437 = vmatpush.msra.mxu0 0.0
    %2438 = vmatpush.msra.mxu0 0.0
    %2439 = vmatpush.msra.mxu0 0.0
    %2440 = vmatpush.msra.mxu0 %v164
    %2441 = vmatpush.msra.mxu0 %v163
    %2442 = vmatpush.msra.mxu0 %v162
    %2443 = vmatpush.msra.mxu0 %v161
    %2444 = vmatmul.f32.gmra.mxu0 %v2426
    %v2445 = vpop.f32.mrf.mxu0
    %v2446 = vadd.f32 0.0, %v2445
    %2447 = vdwg.mxu0
    %v2449 = vrot.slane %v2446, 1
    %v2450 = vrot.slane %v2446, 2
    %v2451 = vrot.slane %v2446, 3
    %v2452 = vrot.slane %v2446, 4
    %v2453 = vrot.slane %v2446, 5
    %v2454 = vrot.slane %v2446, 6
    %v2455 = vrot.slane %v2446, 7
    %v2464 = vadd.f32 %v2394, %v2446
    %v2465 = vadd.f32 %v2395, %v2449
    %v2466 = vadd.f32 %v2396, %v2450
    %v2467 = vadd.f32 %v2397, %v2451
    %v2468 = vadd.f32 %v2398, %v2452
    %v2469 = vadd.f32 %v2399, %v2453
    %v2470 = vadd.f32 %v2400, %v2454
    %v2471 = vadd.f32 %v2401, %v2455
    %v2472 = vxor.u32 %v2464, 2147483648
    %v2473 = vxor.u32 %v2465, 2147483648
    %v2474 = vxor.u32 %v2466, 2147483648
    %v2475 = vxor.u32 %v2467, 2147483648
    %v2476 = vxor.u32 %v2468, 2147483648
    %v2477 = vxor.u32 %v2469, 2147483648
    %v2478 = vxor.u32 %v2470, 2147483648
    %v2479 = vxor.u32 %v2471, 2147483648
    %v2480 = vmul.f32 %v2472, 1.442695
    %v2481 = vpow.pop %v2480
    %v2482 = vmul.f32 %v2473, 1.442695
    %v2483 = vpow.pop %v2482
    %v2484 = vmul.f32 %v2474, 1.442695
    %v2485 = vpow.pop %v2484
    %v2486 = vmul.f32 %v2475, 1.442695
    %v2487 = vpow.pop %v2486
    %v2488 = vmul.f32 %v2476, 1.442695
    %v2489 = vpow.pop %v2488
    %v2490 = vmul.f32 %v2477, 1.442695
    %v2491 = vpow.pop %v2490
    %v2492 = vmul.f32 %v2478, 1.442695
    %v2493 = vpow.pop %v2492
    %v2494 = vmul.f32 %v2479, 1.442695
    %v2495 = vpow.pop %v2494
    %v2496 = vadd.f32 %v2481, 1.0
    %v2497 = vadd.f32 %v2483, 1.0
    %v2498 = vadd.f32 %v2485, 1.0
    %v2499 = vadd.f32 %v2487, 1.0
    %v2500 = vadd.f32 %v2489, 1.0
    %v2501 = vadd.f32 %v2491, 1.0
    %v2502 = vadd.f32 %v2493, 1.0
    %v2503 = vadd.f32 %v2495, 1.0
    %v2504 = vrcp.pop %v2496
    %v2505 = vmul.f32 %v2496, %v2504
    %v2506 = vsub.f32 1.0, %v2505
    %v2507 = vmul.f32 %v2504, %v2506
    %v2508 = vadd.f32 %v2504, %v2507
    %vm2509 = vweird.f32 %v2496
    %vm2510 = vweird.f32 %v2504
    %vm2511 = vmor %vm2509, %vm2510
    %v2512 = vsel %vm2511, %v2504, %v2508
    %v2513 = vand.u32 2147483647, %v2496
    %vm2514 = vcmp.eq.f32.partialorder %v2513, 8.507059e+37
    %v2515 = vand.u32 %v2496, 2147483648
    %v2516 = vor.u32 1.1754944e-38, %v2515
    %v2517 = vsel %vm2514, %v2516, %v2512
    %v2518 = vmul.f32 1.0, %v2517
    %v2519 = vrcp.pop %v2497
    %v2520 = vmul.f32 %v2497, %v2519
    %v2521 = vsub.f32 1.0, %v2520
    %v2522 = vmul.f32 %v2519, %v2521
    %v2523 = vadd.f32 %v2519, %v2522
    %vm2524 = vweird.f32 %v2497
    %vm2525 = vweird.f32 %v2519
    %vm2526 = vmor %vm2524, %vm2525
    %v2527 = vsel %vm2526, %v2519, %v2523
    %v2528 = vand.u32 2147483647, %v2497
    %vm2529 = vcmp.eq.f32.partialorder %v2528, 8.507059e+37
    %v2530 = vand.u32 %v2497, 2147483648
    %v2531 = vor.u32 1.1754944e-38, %v2530
    %v2532 = vsel %vm2529, %v2531, %v2527
    %v2533 = vmul.f32 1.0, %v2532
    %v2534 = vrcp.pop %v2498
    %v2535 = vmul.f32 %v2498, %v2534
    %v2536 = vsub.f32 1.0, %v2535
    %v2537 = vmul.f32 %v2534, %v2536
    %v2538 = vadd.f32 %v2534, %v2537
    %vm2539 = vweird.f32 %v2498
    %vm2540 = vweird.f32 %v2534
    %vm2541 = vmor %vm2539, %vm2540
    %v2542 = vsel %vm2541, %v2534, %v2538
    %v2543 = vand.u32 2147483647, %v2498
    %vm2544 = vcmp.eq.f32.partialorder %v2543, 8.507059e+37
    %v2545 = vand.u32 %v2498, 2147483648
    %v2546 = vor.u32 1.1754944e-38, %v2545
    %v2547 = vsel %vm2544, %v2546, %v2542
    %v2548 = vmul.f32 1.0, %v2547
    %v2549 = vrcp.pop %v2499
    %v2550 = vmul.f32 %v2499, %v2549
    %v2551 = vsub.f32 1.0, %v2550
    %v2552 = vmul.f32 %v2549, %v2551
    %v2553 = vadd.f32 %v2549, %v2552
    %vm2554 = vweird.f32 %v2499
    %vm2555 = vweird.f32 %v2549
    %vm2556 = vmor %vm2554, %vm2555
    %v2557 = vsel %vm2556, %v2549, %v2553
    %v2558 = vand.u32 2147483647, %v2499
    %vm2559 = vcmp.eq.f32.partialorder %v2558, 8.507059e+37
    %v2560 = vand.u32 %v2499, 2147483648
    %v2561 = vor.u32 1.1754944e-38, %v2560
    %v2562 = vsel %vm2559, %v2561, %v2557
    %v2563 = vmul.f32 1.0, %v2562
    %v2564 = vrcp.pop %v2500
    %v2565 = vmul.f32 %v2500, %v2564
    %v2566 = vsub.f32 1.0, %v2565
    %v2567 = vmul.f32 %v2564, %v2566
    %v2568 = vadd.f32 %v2564, %v2567
    %vm2569 = vweird.f32 %v2500
    %vm2570 = vweird.f32 %v2564
    %vm2571 = vmor %vm2569, %vm2570
    %v2572 = vsel %vm2571, %v2564, %v2568
    %v2573 = vand.u32 2147483647, %v2500
    %vm2574 = vcmp.eq.f32.partialorder %v2573, 8.507059e+37
    %v2575 = vand.u32 %v2500, 2147483648
    %v2576 = vor.u32 1.1754944e-38, %v2575
    %v2577 = vsel %vm2574, %v2576, %v2572
    %v2578 = vmul.f32 1.0, %v2577
    %v2579 = vrcp.pop %v2501
    %v2580 = vmul.f32 %v2501, %v2579
    %v2581 = vsub.f32 1.0, %v2580
    %v2582 = vmul.f32 %v2579, %v2581
    %v2583 = vadd.f32 %v2579, %v2582
    %vm2584 = vweird.f32 %v2501
    %vm2585 = vweird.f32 %v2579
    %vm2586 = vmor %vm2584, %vm2585
    %v2587 = vsel %vm2586, %v2579, %v2583
    %v2588 = vand.u32 2147483647, %v2501
    %vm2589 = vcmp.eq.f32.partialorder %v2588, 8.507059e+37
    %v2590 = vand.u32 %v2501, 2147483648
    %v2591 = vor.u32 1.1754944e-38, %v2590
    %v2592 = vsel %vm2589, %v2591, %v2587
    %v2593 = vmul.f32 1.0, %v2592
    %v2594 = vrcp.pop %v2502
    %v2595 = vmul.f32 %v2502, %v2594
    %v2596 = vsub.f32 1.0, %v2595
    %v2597 = vmul.f32 %v2594, %v2596
    %v2598 = vadd.f32 %v2594, %v2597
    %vm2599 = vweird.f32 %v2502
    %vm2600 = vweird.f32 %v2594
    %vm2601 = vmor %vm2599, %vm2600
    %v2602 = vsel %vm2601, %v2594, %v2598
    %v2603 = vand.u32 2147483647, %v2502
    %vm2604 = vcmp.eq.f32.partialorder %v2603, 8.507059e+37
    %v2605 = vand.u32 %v2502, 2147483648
    %v2606 = vor.u32 1.1754944e-38, %v2605
    %v2607 = vsel %vm2604, %v2606, %v2602
    %v2608 = vmul.f32 1.0, %v2607
    %v2609 = vrcp.pop %v2503
    %v2610 = vmul.f32 %v2503, %v2609
    %v2611 = vsub.f32 1.0, %v2610
    %v2612 = vmul.f32 %v2609, %v2611
    %v2613 = vadd.f32 %v2609, %v2612
    %vm2614 = vweird.f32 %v2503
    %vm2615 = vweird.f32 %v2609
    %vm2616 = vmor %vm2614, %vm2615
    %v2617 = vsel %vm2616, %v2609, %v2613
    %v2618 = vand.u32 2147483647, %v2503
    %vm2619 = vcmp.eq.f32.partialorder %v2618, 8.507059e+37
    %v2620 = vand.u32 %v2503, 2147483648
    %v2621 = vor.u32 1.1754944e-38, %v2620
    %v2622 = vsel %vm2619, %v2621, %v2617
    %v2623 = vmul.f32 1.0, %v2622
    %v2624 = vtanh.pop %v2464
    %v2625 = vtanh.pop %v2465
    %v2626 = vtanh.pop %v2466
    %v2627 = vtanh.pop %v2467
    %v2628 = vtanh.pop %v2468
    %v2629 = vtanh.pop %v2469
    %v2630 = vtanh.pop %v2470
    %v2631 = vtanh.pop %v2471
    %v2632 = vmul.f32 %v2518, %v2338
    %v2633 = vmul.f32 %v2533, %v2339
    %v2634 = vmul.f32 %v2548, %v2340
    %v2635 = vmul.f32 %v2563, %v2341
    %v2636 = vmul.f32 %v2578, %v2342
    %v2637 = vmul.f32 %v2593, %v2343
    %v2638 = vmul.f32 %v2608, %v2344
    %v2639 = vmul.f32 %v2623, %v2345
    %2648 = vrot.lane.b32.xlu0 %v2624, 64
    %v2649 = vpop.permute.xlu0 %2648
    %2650 = vrot.lane.b32.xlu0 %v2625, 64
    %v2651 = vpop.permute.xlu0 %2650
    %2652 = vrot.lane.b32.xlu0 %v2626, 64
    %v2653 = vpop.permute.xlu0 %2652
    %2654 = vrot.lane.b32.xlu0 %v2627, 64
    %v2655 = vpop.permute.xlu0 %2654
    %2656 = vrot.lane.b32.xlu0 %v2628, 64
    %v2657 = vpop.permute.xlu0 %2656
    %2658 = vrot.lane.b32.xlu0 %v2629, 64
    %v2659 = vpop.permute.xlu0 %2658
    %2660 = vrot.lane.b32.xlu0 %v2630, 64
    %v2661 = vpop.permute.xlu0 %2660
    %2662 = vrot.lane.b32.xlu0 %v2631, 64
    %v2663 = vpop.permute.xlu0 %2662
    %v2672 = vmul.f32 %v2518, %v2649
    %v2673 = vmul.f32 %v2533, %v2651
    %v2674 = vmul.f32 %v2548, %v2653
    %v2675 = vmul.f32 %v2563, %v2655
    %v2676 = vmul.f32 %v2578, %v2657
    %v2677 = vmul.f32 %v2593, %v2659
    %v2678 = vmul.f32 %v2608, %v2661
    %v2679 = vmul.f32 %v2623, %v2663
    %2688 = vrot.lane.b32.xlu0 %v2672, 32
    %v2689 = vpop.permute.xlu0 %2688
    %2690 = vrot.lane.b32.xlu0 %v2673, 32
    %v2691 = vpop.permute.xlu0 %2690
    %2692 = vrot.lane.b32.xlu0 %v2674, 32
    %v2693 = vpop.permute.xlu0 %2692
    %2694 = vrot.lane.b32.xlu0 %v2675, 32
    %v2695 = vpop.permute.xlu0 %2694
    %2696 = vrot.lane.b32.xlu0 %v2676, 32
    %v2697 = vpop.permute.xlu0 %2696
    %2698 = vrot.lane.b32.xlu0 %v2677, 32
    %v2699 = vpop.permute.xlu0 %2698
    %2700 = vrot.lane.b32.xlu0 %v2678, 32
    %v2701 = vpop.permute.xlu0 %2700
    %2702 = vrot.lane.b32.xlu0 %v2679, 32
    %v2703 = vpop.permute.xlu0 %2702
    %v2712 = vadd.f32 %v2632, %v2689
    %v2713 = vadd.f32 %v2633, %v2691
    %v2714 = vadd.f32 %v2634, %v2693
    %v2715 = vadd.f32 %v2635, %v2695
    %v2716 = vadd.f32 %v2636, %v2697
    %v2717 = vadd.f32 %v2637, %v2699
    %v2718 = vadd.f32 %v2638, %v2701
    %v2719 = vadd.f32 %v2639, %v2703
    %v2720 = vtanh.pop %v2712
    %v2721 = vtanh.pop %v2713
    %v2722 = vtanh.pop %v2714
    %v2723 = vtanh.pop %v2715
    %v2724 = vtanh.pop %v2716
    %v2725 = vtanh.pop %v2717
    %v2726 = vtanh.pop %v2718
    %v2727 = vtanh.pop %v2719
    %2736 = vrot.lane.b32.xlu0 %v2720, 64
    %v2737 = vpop.permute.xlu0 %2736
    %2738 = vrot.lane.b32.xlu0 %v2721, 64
    %v2739 = vpop.permute.xlu0 %2738
    %2740 = vrot.lane.b32.xlu0 %v2722, 64
    %v2741 = vpop.permute.xlu0 %2740
    %2742 = vrot.lane.b32.xlu0 %v2723, 64
    %v2743 = vpop.permute.xlu0 %2742
    %2744 = vrot.lane.b32.xlu0 %v2724, 64
    %v2745 = vpop.permute.xlu0 %2744
    %2746 = vrot.lane.b32.xlu0 %v2725, 64
    %v2747 = vpop.permute.xlu0 %2746
    %2748 = vrot.lane.b32.xlu0 %v2726, 64
    %v2749 = vpop.permute.xlu0 %2748
    %2750 = vrot.lane.b32.xlu0 %v2727, 64
    %v2751 = vpop.permute.xlu0 %2750
    %v2760 = vmul.f32 %v2518, %v2737
    %v2761 = vmul.f32 %v2533, %v2739
    %v2762 = vmul.f32 %v2548, %v2741
    %v2763 = vmul.f32 %v2563, %v2743
    %v2764 = vmul.f32 %v2578, %v2745
    %v2765 = vmul.f32 %v2593, %v2747
    %v2766 = vmul.f32 %v2608, %v2749
    %v2767 = vmul.f32 %v2623, %v2751
    %v2768 = vld [vmem:[#allocation2 + $0x7] sm:$0x1]
    %v2769 = vld [vmem:[#allocation2 + $0xf] sm:$0x1]
    %v2770 = vld [vmem:[#allocation2 + $0x17] sm:$0x1]
    %v2771 = vld [vmem:[#allocation2 + $0x1f] sm:$0x1]
    %v2772 = vld [vmem:[#allocation2 + $0x27] sm:$0x1]
    %v2773 = vld [vmem:[#allocation2 + $0x2f] sm:$0x1]
    %v2774 = vld [vmem:[#allocation2 + $0x37] sm:$0x1]
    %v2775 = vld [vmem:[#allocation2 + $0x3f] sm:$0x1]
    %v2784 = vrot.slane %v2761, 7
    %v2785 = vsel %vm534, %v2784, %v2760
    %v2786 = vrot.slane %v2762, 6
    %v2787 = vsel %vm537, %v2786, %v2785
    %v2788 = vrot.slane %v2763, 5
    %v2789 = vsel %vm540, %v2788, %v2787
    %v2790 = vrot.slane %v2764, 4
    %v2791 = vsel %vm543, %v2790, %v2789
    %v2792 = vrot.slane %v2765, 3
    %v2793 = vsel %vm546, %v2792, %v2791
    %v2794 = vrot.slane %v2766, 2
    %v2795 = vsel %vm549, %v2794, %v2793
    %v2796 = vrot.slane %v2767, 1
    %v2797 = vsel %vm552, %v2796, %v2795
    %2798 = vrot.lane.b32.xlu0 %v2797, 32
    %v2799 = vpop.permute.xlu0 %2798
    %v2800 = vsel %vm173, %v2799, 0
    %2802 = vmatpush.msra.mxu0 0.0
    %2803 = vmatpush.msra.mxu0 0.0
    %2804 = vmatpush.msra.mxu0 0.0
    %2805 = vmatpush.msra.mxu0 0.0
    %2806 = vmatpush.msra.mxu0 0.0
    %2807 = vmatpush.msra.mxu0 0.0
    %2808 = vmatpush.msra.mxu0 0.0
    %2809 = vmatpush.msra.mxu0 0.0
    %2810 = vmatpush.msra.mxu0 0.0
    %2811 = vmatpush.msra.mxu0 0.0
    %2812 = vmatpush.msra.mxu0 0.0
    %2813 = vmatpush.msra.mxu0 0.0
    %2814 = vmatpush.msra.mxu0 %v164
    %2815 = vmatpush.msra.mxu0 %v163
    %2816 = vmatpush.msra.mxu0 %v162
    %2817 = vmatpush.msra.mxu0 %v161
    %2818 = vmatmul.f32.gmra.mxu0 %v2800
    %v2819 = vpop.f32.mrf.mxu0
    %v2820 = vadd.f32 0.0, %v2819
    %2821 = vdwg.mxu0
    %v2823 = vrot.slane %v2820, 1
    %v2824 = vrot.slane %v2820, 2
    %v2825 = vrot.slane %v2820, 3
    %v2826 = vrot.slane %v2820, 4
    %v2827 = vrot.slane %v2820, 5
    %v2828 = vrot.slane %v2820, 6
    %v2829 = vrot.slane %v2820, 7
    %v2838 = vadd.f32 %v2768, %v2820
    %v2839 = vadd.f32 %v2769, %v2823
    %v2840 = vadd.f32 %v2770, %v2824
    %v2841 = vadd.f32 %v2771, %v2825
    %v2842 = vadd.f32 %v2772, %v2826
    %v2843 = vadd.f32 %v2773, %v2827
    %v2844 = vadd.f32 %v2774, %v2828
    %v2845 = vadd.f32 %v2775, %v2829
    %v2846 = vxor.u32 %v2838, 2147483648
    %v2847 = vxor.u32 %v2839, 2147483648
    %v2848 = vxor.u32 %v2840, 2147483648
    %v2849 = vxor.u32 %v2841, 2147483648
    %v2850 = vxor.u32 %v2842, 2147483648
    %v2851 = vxor.u32 %v2843, 2147483648
    %v2852 = vxor.u32 %v2844, 2147483648
    %v2853 = vxor.u32 %v2845, 2147483648
    %v2854 = vmul.f32 %v2846, 1.442695
    %v2855 = vpow.pop %v2854
    %v2856 = vmul.f32 %v2847, 1.442695
    %v2857 = vpow.pop %v2856
    %v2858 = vmul.f32 %v2848, 1.442695
    %v2859 = vpow.pop %v2858
    %v2860 = vmul.f32 %v2849, 1.442695
    %v2861 = vpow.pop %v2860
    %v2862 = vmul.f32 %v2850, 1.442695
    %v2863 = vpow.pop %v2862
    %v2864 = vmul.f32 %v2851, 1.442695
    %v2865 = vpow.pop %v2864
    %v2866 = vmul.f32 %v2852, 1.442695
    %v2867 = vpow.pop %v2866
    %v2868 = vmul.f32 %v2853, 1.442695
    %v2869 = vpow.pop %v2868
    %v2870 = vadd.f32 %v2855, 1.0
    %v2871 = vadd.f32 %v2857, 1.0
    %v2872 = vadd.f32 %v2859, 1.0
    %v2873 = vadd.f32 %v2861, 1.0
    %v2874 = vadd.f32 %v2863, 1.0
    %v2875 = vadd.f32 %v2865, 1.0
    %v2876 = vadd.f32 %v2867, 1.0
    %v2877 = vadd.f32 %v2869, 1.0
    %v2878 = vrcp.pop %v2870
    %v2879 = vmul.f32 %v2870, %v2878
    %v2880 = vsub.f32 1.0, %v2879
    %v2881 = vmul.f32 %v2878, %v2880
    %v2882 = vadd.f32 %v2878, %v2881
    %vm2883 = vweird.f32 %v2870
    %vm2884 = vweird.f32 %v2878
    %vm2885 = vmor %vm2883, %vm2884
    %v2886 = vsel %vm2885, %v2878, %v2882
    %v2887 = vand.u32 2147483647, %v2870
    %vm2888 = vcmp.eq.f32.partialorder %v2887, 8.507059e+37
    %v2889 = vand.u32 %v2870, 2147483648
    %v2890 = vor.u32 1.1754944e-38, %v2889
    %v2891 = vsel %vm2888, %v2890, %v2886
    %v2892 = vmul.f32 1.0, %v2891
    %v2893 = vrcp.pop %v2871
    %v2894 = vmul.f32 %v2871, %v2893
    %v2895 = vsub.f32 1.0, %v2894
    %v2896 = vmul.f32 %v2893, %v2895
    %v2897 = vadd.f32 %v2893, %v2896
    %vm2898 = vweird.f32 %v2871
    %vm2899 = vweird.f32 %v2893
    %vm2900 = vmor %vm2898, %vm2899
    %v2901 = vsel %vm2900, %v2893, %v2897
    %v2902 = vand.u32 2147483647, %v2871
    %vm2903 = vcmp.eq.f32.partialorder %v2902, 8.507059e+37
    %v2904 = vand.u32 %v2871, 2147483648
    %v2905 = vor.u32 1.1754944e-38, %v2904
    %v2906 = vsel %vm2903, %v2905, %v2901
    %v2907 = vmul.f32 1.0, %v2906
    %v2908 = vrcp.pop %v2872
    %v2909 = vmul.f32 %v2872, %v2908
    %v2910 = vsub.f32 1.0, %v2909
    %v2911 = vmul.f32 %v2908, %v2910
    %v2912 = vadd.f32 %v2908, %v2911
    %vm2913 = vweird.f32 %v2872
    %vm2914 = vweird.f32 %v2908
    %vm2915 = vmor %vm2913, %vm2914
    %v2916 = vsel %vm2915, %v2908, %v2912
    %v2917 = vand.u32 2147483647, %v2872
    %vm2918 = vcmp.eq.f32.partialorder %v2917, 8.507059e+37
    %v2919 = vand.u32 %v2872, 2147483648
    %v2920 = vor.u32 1.1754944e-38, %v2919
    %v2921 = vsel %vm2918, %v2920, %v2916
    %v2922 = vmul.f32 1.0, %v2921
    %v2923 = vrcp.pop %v2873
    %v2924 = vmul.f32 %v2873, %v2923
    %v2925 = vsub.f32 1.0, %v2924
    %v2926 = vmul.f32 %v2923, %v2925
    %v2927 = vadd.f32 %v2923, %v2926
    %vm2928 = vweird.f32 %v2873
    %vm2929 = vweird.f32 %v2923
    %vm2930 = vmor %vm2928, %vm2929
    %v2931 = vsel %vm2930, %v2923, %v2927
    %v2932 = vand.u32 2147483647, %v2873
    %vm2933 = vcmp.eq.f32.partialorder %v2932, 8.507059e+37
    %v2934 = vand.u32 %v2873, 2147483648
    %v2935 = vor.u32 1.1754944e-38, %v2934
    %v2936 = vsel %vm2933, %v2935, %v2931
    %v2937 = vmul.f32 1.0, %v2936
    %v2938 = vrcp.pop %v2874
    %v2939 = vmul.f32 %v2874, %v2938
    %v2940 = vsub.f32 1.0, %v2939
    %v2941 = vmul.f32 %v2938, %v2940
    %v2942 = vadd.f32 %v2938, %v2941
    %vm2943 = vweird.f32 %v2874
    %vm2944 = vweird.f32 %v2938
    %vm2945 = vmor %vm2943, %vm2944
    %v2946 = vsel %vm2945, %v2938, %v2942
    %v2947 = vand.u32 2147483647, %v2874
    %vm2948 = vcmp.eq.f32.partialorder %v2947, 8.507059e+37
    %v2949 = vand.u32 %v2874, 2147483648
    %v2950 = vor.u32 1.1754944e-38, %v2949
    %v2951 = vsel %vm2948, %v2950, %v2946
    %v2952 = vmul.f32 1.0, %v2951
    %v2953 = vrcp.pop %v2875
    %v2954 = vmul.f32 %v2875, %v2953
    %v2955 = vsub.f32 1.0, %v2954
    %v2956 = vmul.f32 %v2953, %v2955
    %v2957 = vadd.f32 %v2953, %v2956
    %vm2958 = vweird.f32 %v2875
    %vm2959 = vweird.f32 %v2953
    %vm2960 = vmor %vm2958, %vm2959
    %v2961 = vsel %vm2960, %v2953, %v2957
    %v2962 = vand.u32 2147483647, %v2875
    %vm2963 = vcmp.eq.f32.partialorder %v2962, 8.507059e+37
    %v2964 = vand.u32 %v2875, 2147483648
    %v2965 = vor.u32 1.1754944e-38, %v2964
    %v2966 = vsel %vm2963, %v2965, %v2961
    %v2967 = vmul.f32 1.0, %v2966
    %v2968 = vrcp.pop %v2876
    %v2969 = vmul.f32 %v2876, %v2968
    %v2970 = vsub.f32 1.0, %v2969
    %v2971 = vmul.f32 %v2968, %v2970
    %v2972 = vadd.f32 %v2968, %v2971
    %vm2973 = vweird.f32 %v2876
    %vm2974 = vweird.f32 %v2968
    %vm2975 = vmor %vm2973, %vm2974
    %v2976 = vsel %vm2975, %v2968, %v2972
    %v2977 = vand.u32 2147483647, %v2876
    %vm2978 = vcmp.eq.f32.partialorder %v2977, 8.507059e+37
    %v2979 = vand.u32 %v2876, 2147483648
    %v2980 = vor.u32 1.1754944e-38, %v2979
    %v2981 = vsel %vm2978, %v2980, %v2976
    %v2982 = vmul.f32 1.0, %v2981
    %v2983 = vrcp.pop %v2877
    %v2984 = vmul.f32 %v2877, %v2983
    %v2985 = vsub.f32 1.0, %v2984
    %v2986 = vmul.f32 %v2983, %v2985
    %v2987 = vadd.f32 %v2983, %v2986
    %vm2988 = vweird.f32 %v2877
    %vm2989 = vweird.f32 %v2983
    %vm2990 = vmor %vm2988, %vm2989
    %v2991 = vsel %vm2990, %v2983, %v2987
    %v2992 = vand.u32 2147483647, %v2877
    %vm2993 = vcmp.eq.f32.partialorder %v2992, 8.507059e+37
    %v2994 = vand.u32 %v2877, 2147483648
    %v2995 = vor.u32 1.1754944e-38, %v2994
    %v2996 = vsel %vm2993, %v2995, %v2991
    %v2997 = vmul.f32 1.0, %v2996
    %v2998 = vtanh.pop %v2838
    %v2999 = vtanh.pop %v2839
    %v3000 = vtanh.pop %v2840
    %v3001 = vtanh.pop %v2841
    %v3002 = vtanh.pop %v2842
    %v3003 = vtanh.pop %v2843
    %v3004 = vtanh.pop %v2844
    %v3005 = vtanh.pop %v2845
    %v3006 = vmul.f32 %v2892, %v2712
    %v3007 = vmul.f32 %v2907, %v2713
    %v3008 = vmul.f32 %v2922, %v2714
    %v3009 = vmul.f32 %v2937, %v2715
    %v3010 = vmul.f32 %v2952, %v2716
    %v3011 = vmul.f32 %v2967, %v2717
    %v3012 = vmul.f32 %v2982, %v2718
    %v3013 = vmul.f32 %v2997, %v2719
    %3022 = vrot.lane.b32.xlu0 %v2998, 64
    %v3023 = vpop.permute.xlu0 %3022
    %3024 = vrot.lane.b32.xlu0 %v2999, 64
    %v3025 = vpop.permute.xlu0 %3024
    %3026 = vrot.lane.b32.xlu0 %v3000, 64
    %v3027 = vpop.permute.xlu0 %3026
    %3028 = vrot.lane.b32.xlu0 %v3001, 64
    %v3029 = vpop.permute.xlu0 %3028
    %3030 = vrot.lane.b32.xlu0 %v3002, 64
    %v3031 = vpop.permute.xlu0 %3030
    %3032 = vrot.lane.b32.xlu0 %v3003, 64
    %v3033 = vpop.permute.xlu0 %3032
    %3034 = vrot.lane.b32.xlu0 %v3004, 64
    %v3035 = vpop.permute.xlu0 %3034
    %3036 = vrot.lane.b32.xlu0 %v3005, 64
    %v3037 = vpop.permute.xlu0 %3036
    %v3046 = vmul.f32 %v2892, %v3023
    %v3047 = vmul.f32 %v2907, %v3025
    %v3048 = vmul.f32 %v2922, %v3027
    %v3049 = vmul.f32 %v2937, %v3029
    %v3050 = vmul.f32 %v2952, %v3031
    %v3051 = vmul.f32 %v2967, %v3033
    %v3052 = vmul.f32 %v2982, %v3035
    %v3053 = vmul.f32 %v2997, %v3037
    %3062 = vrot.lane.b32.xlu0 %v3046, 32
    %v3063 = vpop.permute.xlu0 %3062
    %3064 = vrot.lane.b32.xlu0 %v3047, 32
    %v3065 = vpop.permute.xlu0 %3064
    %3066 = vrot.lane.b32.xlu0 %v3048, 32
    %v3067 = vpop.permute.xlu0 %3066
    %3068 = vrot.lane.b32.xlu0 %v3049, 32
    %v3069 = vpop.permute.xlu0 %3068
    %3070 = vrot.lane.b32.xlu0 %v3050, 32
    %v3071 = vpop.permute.xlu0 %3070
    %3072 = vrot.lane.b32.xlu0 %v3051, 32
    %v3073 = vpop.permute.xlu0 %3072
    %3074 = vrot.lane.b32.xlu0 %v3052, 32
    %v3075 = vpop.permute.xlu0 %3074
    %3076 = vrot.lane.b32.xlu0 %v3053, 32
    %v3077 = vpop.permute.xlu0 %3076
    %v3086 = vadd.f32 %v3006, %v3063
    %v3087 = vadd.f32 %v3007, %v3065
    %v3088 = vadd.f32 %v3008, %v3067
    %v3089 = vadd.f32 %v3009, %v3069
    %v3090 = vadd.f32 %v3010, %v3071
    %v3091 = vadd.f32 %v3011, %v3073
    %v3092 = vadd.f32 %v3012, %v3075
    %v3093 = vadd.f32 %v3013, %v3077
    %v3094 = vtanh.pop %v3086
    %v3095 = vtanh.pop %v3087
    %v3096 = vtanh.pop %v3088
    %v3097 = vtanh.pop %v3089
    %v3098 = vtanh.pop %v3090
    %v3099 = vtanh.pop %v3091
    %v3100 = vtanh.pop %v3092
    %v3101 = vtanh.pop %v3093
    %3110 = vrot.lane.b32.xlu0 %v3094, 64
    %v3111 = vpop.permute.xlu0 %3110
    %3112 = vrot.lane.b32.xlu0 %v3095, 64
    %v3113 = vpop.permute.xlu0 %3112
    %3114 = vrot.lane.b32.xlu0 %v3096, 64
    %v3115 = vpop.permute.xlu0 %3114
    %3116 = vrot.lane.b32.xlu0 %v3097, 64
    %v3117 = vpop.permute.xlu0 %3116
    %3118 = vrot.lane.b32.xlu0 %v3098, 64
    %v3119 = vpop.permute.xlu0 %3118
    %3120 = vrot.lane.b32.xlu0 %v3099, 64
    %v3121 = vpop.permute.xlu0 %3120
    %3122 = vrot.lane.b32.xlu0 %v3100, 64
    %v3123 = vpop.permute.xlu0 %3122
    %3124 = vrot.lane.b32.xlu0 %v3101, 64
    %v3125 = vpop.permute.xlu0 %3124
    %v3134 = vmul.f32 %v2892, %v3111
    %v3135 = vmul.f32 %v2907, %v3113
    %v3136 = vmul.f32 %v2922, %v3115
    %v3137 = vmul.f32 %v2937, %v3117
    %v3138 = vmul.f32 %v2952, %v3119
    %v3139 = vmul.f32 %v2967, %v3121
    %v3140 = vmul.f32 %v2982, %v3123
    %v3141 = vmul.f32 %v2997, %v3125
    %s3142 = sld [smem:[#allocation7]]
    %s3143 = sld [smem:[#allocation7 + $0x1]]
    %s3144 = sld [smem:[#allocation7 + $0x2]]
    %s3145 = sld [smem:[#allocation7 + $0x3]]
    %s3146 = sld [smem:[#allocation6]]
    %v3147 = vld [vmem:[%s4] sm:$0xff]
    %v3148 = vstv %s3146
    %v3149 = vmul.f32 %v3148, %v3147
    %v3150 = vstv %s3142
    %v3151 = vadd.f32 %v3149, %v3150
    %s3152 = sld [smem:[#allocation6 + $0x1]]
    %s3153 = scalar_lea.vmem %s4, 8
    %v3154 = vld [vmem:[%s3153] sm:$0xff]
    %v3155 = vstv %s3152
    %v3156 = vmul.f32 %v3155, %v3154
    %v3157 = vadd.f32 %v3151, %v3156
    %s3158 = sld [smem:[#allocation6 + $0x2]]
    %s3159 = scalar_lea.vmem %s4, 16
    %v3160 = vld [vmem:[%s3159] sm:$0xff]
    %v3161 = vstv %s3158
    %v3162 = vmul.f32 %v3161, %v3160
    %v3163 = vadd.f32 %v3157, %v3162
    %s3164 = sld [smem:[#allocation6 + $0x3]]
    %s3165 = scalar_lea.vmem %s4, 24
    %v3166 = vld [vmem:[%s3165] sm:$0xff]
    %v3167 = vstv %s3164
    %v3168 = vmul.f32 %v3167, %v3166
    %v3169 = vadd.f32 %v3163, %v3168
    %v3170 = vld [vmem:[%s6] sm:$0xff]
    %v3171 = vld [vmem:[%s6 + $0x8] sm:$0xff]
    %v3172 = vld [vmem:[%s6 + $0x10] sm:$0xff]
    %v3173 = vld [vmem:[%s6 + $0x18] sm:$0xff]
    %v3182 = vrot.slane %v3135, 7
    %v3183 = vsel %vm534, %v3182, %v3134
    %v3184 = vrot.slane %v3136, 6
    %v3185 = vsel %vm537, %v3184, %v3183
    %v3186 = vrot.slane %v3137, 5
    %v3187 = vsel %vm540, %v3186, %v3185
    %v3188 = vrot.slane %v3138, 4
    %v3189 = vsel %vm543, %v3188, %v3187
    %v3190 = vrot.slane %v3139, 3
    %v3191 = vsel %vm546, %v3190, %v3189
    %v3192 = vrot.slane %v3140, 2
    %v3193 = vsel %vm549, %v3192, %v3191
    %v3194 = vrot.slane %v3141, 1
    %v3195 = vsel %vm552, %v3194, %v3193
    %3196 = vrot.lane.b32.xlu0 %v3195, 32
    %v3197 = vpop.permute.xlu0 %3196
    %v3198 = vsel %vm173, %v3197, 0
    %3200 = vmatpush.msra.mxu0 0.0
    %3201 = vmatpush.msra.mxu0 0.0
    %3202 = vmatpush.msra.mxu0 0.0
    %3203 = vmatpush.msra.mxu0 0.0
    %3204 = vmatpush.msra.mxu0 0.0
    %3205 = vmatpush.msra.mxu0 0.0
    %3206 = vmatpush.msra.mxu0 0.0
    %3207 = vmatpush.msra.mxu0 0.0
    %3208 = vmatpush.msra.mxu0 0.0
    %3209 = vmatpush.msra.mxu0 0.0
    %3210 = vmatpush.msra.mxu0 0.0
    %3211 = vmatpush.msra.mxu0 0.0
    %3212 = vmatpush.msra.mxu0 %v3173
    %3213 = vmatpush.msra.mxu0 %v3172
    %3214 = vmatpush.msra.mxu0 %v3171
    %3215 = vmatpush.msra.mxu0 %v3170
    %3216 = vmatmul.f32.gmra.mxu0 %v3198
    %v3217 = vpop.f32.mrf.mxu0
    %v3218 = vadd.f32 0.0, %v3217
    %3219 = vdwg.mxu0
    %v3220 = vstv %s3143
    %v3221 = vadd.f32 %v3218, %v3220
    %v3222 = vstv %s3144
    %v3223 = vadd.f32 %v3218, %v3222
    %v3224 = vld [vmem:[%s5] sm:$0xff]
    %3226 = vset.pattern.permute.xlu0 0
    %3227 = vperm.xlu0 %3226, %v3221
    %v3228 = vpop.permute.xlu0 %3227
    %v3230 = vadd.f32 %v3224, %v3228
    %3232 = vrot.lane.b32.xlu0 %v3223, 127
    %v3233 = vpop.permute.xlu0 %3232
    %3235 = vxpose.xlu0.b32.start [1/16] %v3233, 128
    %3236 = vxpose.xlu0.b32.cont [2/16] 0.0, 128
    %3237 = vxpose.xlu0.b32.cont [3/16] 0.0, 128
    %3238 = vxpose.xlu0.b32.cont [4/16] 0.0, 128
    %3239 = vxpose.xlu0.b32.cont [5/16] 0.0, 128
    %3240 = vxpose.xlu0.b32.cont [6/16] 0.0, 128
    %3241 = vxpose.xlu0.b32.cont [7/16] 0.0, 128
    %3242 = vxpose.xlu0.b32.cont [8/16] 0.0, 128
    %3243 = vxpose.xlu0.b32.cont [9/16] 0.0, 128
    %3244 = vxpose.xlu0.b32.cont [10/16] 0.0, 128
    %3245 = vxpose.xlu0.b32.cont [11/16] 0.0, 128
    %3246 = vxpose.xlu0.b32.cont [12/16] 0.0, 128
    %3247 = vxpose.xlu0.b32.cont [13/16] 0.0, 128
    %3248 = vxpose.xlu0.b32.cont [14/16] 0.0, 128
    %3249 = vxpose.xlu0.b32.cont [15/16] 0.0, 128
    %3250 = vxpose.xlu0.b32.end [16/16] 0.0, 128
    %v3251 = vpop.trf.xlu0
    %v3252 = vpop.trf.xlu0
    %v3253 = vpop.trf.xlu0
    %v3254 = vpop.trf.xlu0
    %v3255 = vpop.trf.xlu0
    %v3256 = vpop.trf.xlu0
    %v3257 = vpop.trf.xlu0
    %v3258 = vpop.trf.xlu0
    %v3259 = vpop.trf.xlu0
    %v3260 = vpop.trf.xlu0
    %v3261 = vpop.trf.xlu0
    %v3262 = vpop.trf.xlu0
    %v3263 = vpop.trf.xlu0
    %v3264 = vpop.trf.xlu0
    %v3265 = vpop.trf.xlu0
    %v3266 = vpop.trf.xlu0
    %v3267 = vperm.slane %v3251, 0
    %v3268 = vadd.f32 %v3230, %v3267
    %v3269 = vadd.f32 %v3268, %v3169
    %vm3270 = vcmask 64512
    %v3271 = vsel %vm3270, %v3269, -inf
    %v3272 = vrot.slane %v3271, 4
    %v3273 = vmax.f32 %v3271, %v3272
    %v3274 = vrot.slane %v3273, 2
    %v3275 = vmax.f32 %v3273, %v3274
    %v3276 = vrot.slane %v3275, 1
    %v3277 = vmax.f32 %v3275, %v3276
    %v3278 = vsub.f32 %v3269, %v3277
    %v3279 = vmul.f32 %v3278, 1.442695
    %v3280 = vpow.pop %v3279
    %v3281 = vsel %vm3270, %v3280, 0.0
    %v3282 = vrot.slane %v3281, 4
    %v3283 = vadd.f32 %v3281, %v3282
    %v3284 = vrot.slane %v3283, 2
    %v3285 = vadd.f32 %v3283, %v3284
    %v3286 = vrot.slane %v3285, 1
    %v3287 = vadd.f32 %v3285, %v3286
    %v3288 = vrcp.pop %v3287
    %v3289 = vmul.f32 %v3287, %v3288
    %v3290 = vsub.f32 1.0, %v3289
    %v3291 = vmul.f32 %v3288, %v3290
    %v3292 = vadd.f32 %v3288, %v3291
    %vm3293 = vweird.f32 %v3287
    %vm3294 = vweird.f32 %v3288
    %vm3295 = vmor %vm3293, %vm3294
    %v3296 = vsel %vm3295, %v3288, %v3292
    %v3297 = vand.u32 2147483647, %v3287
    %vm3298 = vcmp.eq.f32.partialorder %v3297, 8.507059e+37
    %v3299 = vand.u32 %v3287, 2147483648
    %v3300 = vor.u32 1.1754944e-38, %v3299
    %v3301 = vsel %vm3298, %v3300, %v3296
    %v3302 = vmul.f32 %v3280, %v3301
    %3304 = vrot.lane.b32.xlu0 %v3218, 125
    %v3305 = vpop.permute.xlu0 %3304
    %v3308 = vsel %vm3270, %v3302, 0
    %3310 = vmatpush.msra.mxu0 0.0
    %3311 = vmatpush.msra.mxu0 0.0
    %3312 = vmatpush.msra.mxu0 0.0
    %3313 = vmatpush.msra.mxu0 0.0
    %3314 = vmatpush.msra.mxu0 0.0
    %3315 = vmatpush.msra.mxu0 0.0
    %3316 = vmatpush.msra.mxu0 0.0
    %3317 = vmatpush.msra.mxu0 0.0
    %3318 = vmatpush.msra.mxu0 0.0
    %3319 = vmatpush.msra.mxu0 0.0
    %3320 = vmatpush.msra.mxu0 0.0
    %3321 = vmatpush.msra.mxu0 0.0
    %3322 = vmatpush.msra.mxu0 0.0
    %3323 = vmatpush.msra.mxu0 0.0
    %3324 = vmatpush.msra.mxu0 0.0
    %3325 = vmatpush.msra.mxu0 %v3305
    %3326 = vmatmul.f32.gmra.mxu0 %v3308
    %v3327 = vpop.f32.mrf.mxu0
    %v3328 = vadd.f32 0.0, %v3327
    %3329 = vdwg.mxu0
    %3331 = vrot.lane.b32.xlu0 %v3328, 2
    %v3332 = vpop.permute.xlu0 %3331
    %v3334 = vadd.f32 %v3218, %v3332
    %v3335 = vstv %s3145
    %v3336 = vadd.f32 %v3334, %v3335
    %3338 = vrot.lane.b32.xlu0 %v3336, 126
    %v3339 = vpop.permute.xlu0 %3338
    %vm3341 = vcmask 7168
    %3342 = vst.msk [vmem:[%s9] sm:$0xff] %vm3341, %v3339
    // Predicated region
    $region50: #{graph_network_forward.1} parent=1 // pred_check
      _
    $region51: #{graph_network_forward.1} parent=1 // pred_check_branch
      %3344 = sbr.rel (0) target = $region53
    $region52: #{graph_network_forward.1} parent=1 // pred_region
      _
    $region53: #{graph_network_forward.1} parent=1 // pred_fallthru
      _
    // Predicated region
    $region54: #{graph_network_forward.1} parent=1 // pred_check
      _
    $region55: #{graph_network_forward.1} parent=1 // pred_check_branch
      %3346 = sbr.rel (0) target = $region57
    $region56: #{graph_network_forward.1} parent=1 // pred_region
      _
    $region57: #{graph_network_forward.1} parent=1 // pred_fallthru
      _
    %3347 = vsyncpa [#allocation4], 1
    %3348 = vsyncpa [#allocation5], 1
    %3349 = vsyncpa [#allocation8], 1

</llo_original>
